<compile_context>
chip_gen: v6e
topology: v6e:2x2x1
jax: 0.10.0
libtpu: 0.0.40
codegen_flags: <defaults>
</compile_context>

<pallas_src>
import functools
import math

import jax
import jax.numpy as jnp
from jax import lax
from jax.experimental import pallas as pl
from jax.experimental.pallas import tpu as pltpu

# ----------------------- model hyper-parameters (small) ----------------------
B = 2            # batch
C = 3            # input channels
IMG = 32         # spatial size
PATCH = 8        # patch size -> N = (32/8)^2 = 16 patch tokens
N_TOK = (IMG // PATCH) ** 2
T = N_TOK + 1    # cls + patch tokens = 17
T_PAD = 24       # padded token count (multiple of 8 sublanes)
D = 64           # embed dim
NH = 4           # heads
HD = D // NH     # head dim
DEPTH = 2        # transformer blocks
MLP = 4 * D      # mlp hidden
OUT_DIM = 32     # bottleneck AdaptiveAvgPool1d output size
LN_EPS = 1e-6
CPP = C * PATCH * PATCH
NEG_INF = -1e30


# ------------------------------ fused kernel ---------------------------------
def _ln(x, g, b):
    mean = jnp.mean(x, axis=-1, keepdims=True)
    xc = x - mean
    var = jnp.mean(xc * xc, axis=-1, keepdims=True)
    return xc * lax.rsqrt(var + LN_EPS) * g + b


def _gelu(x):
    # TODO(synk): nn.GELU defaults to the erf form; tanh approximation differs ~1e-3.
    return 0.5 * x * (1.0 + jnp.tanh(0.7978845608028654 * (x + 0.044715 * x * x * x)))


def _encoder_kernel(patches_ref, embed_add_ref, patch_w_ref,
                    attn_bias_ref, head_mask_ref,
                    ln1_g_ref, ln1_b_ref, qkv_w_ref, qkv_b_ref,
                    proj_w_ref, proj_b_ref,
                    ln2_g_ref, ln2_b_ref, fc1_w_ref, fc1_b_ref,
                    fc2_w_ref, fc2_b_ref,
                    norm_g_ref, norm_b_ref, pool_w_ref,
                    out_ref, *, bt):
    # patch embedding (bf16 x bf16 -> f32); cls token, pos embed and patch bias
    # are folded into the additive embed_add table.
    h = jnp.dot(patches_ref[...], patch_w_ref[...],
                preferred_element_type=jnp.float32) + embed_add_ref[...]   # [bt, D]

    attn_bias = attn_bias_ref[...]    # [NH*bt, bt]  0 / -1e30 (batch-block + key pad)
    head_mask = head_mask_ref[...]    # [NH*bt, D]   0/1: head h's 16 cols in row block h

    for li in range(DEPTH):
        # ------------------- attention sub-block -------------------
        y = _ln(h, ln1_g_ref[li], ln1_b_ref[li])
        qkv = jnp.dot(y.astype(jnp.bfloat16), qkv_w_ref[li],
                      preferred_element_type=jnp.float32) + qkv_b_ref[li]  # [bt, 3D]
        q = qkv[:, 0 * D:1 * D]                       # 1/sqrt(HD) folded at prep time
        k = qkv[:, 1 * D:2 * D].astype(jnp.bfloat16)
        v = qkv[:, 2 * D:3 * D].astype(jnp.bfloat16)

        # heads-on-rows: replicate Q along sublanes, zero the off-head columns.
        q_rep = jnp.concatenate([q] * NH, axis=0)                          # [NH*bt, D]
        q_rep = (q_rep * head_mask).astype(jnp.bfloat16)

        # all heads' scores in ONE matmul: S[h*bt + r, c] = <Q_h(r), K(c)>
        s = lax.dot_general(q_rep, k, (((1,), (1,)), ((), ())),
                            preferred_element_type=jnp.float32)            # [NH*bt, bt]
        s = s + attn_bias
        s = s - jnp.max(s, axis=-1, keepdims=True)
        p = jnp.exp(s)
        p = p * pl.reciprocal(jnp.sum(p, axis=-1, keepdims=True), approx=True)

        # all heads' P @ V in ONE matmul; fold head row-blocks back to [bt, D].
        o_all = jnp.dot(p.astype(jnp.bfloat16), v,
                        preferred_element_type=jnp.float32) * head_mask    # [NH*bt, D]
        attn = o_all[0:bt]
        for hh in range(1, NH):
            attn = attn + o_all[hh * bt:(hh + 1) * bt]                     # [bt, D]

        o = jnp.dot(attn.astype(jnp.bfloat16), proj_w_ref[li],
                    preferred_element_type=jnp.float32) + proj_b_ref[li]
        h = h + o                                 # LayerScale folded into proj_w/b

        # ---------------------- MLP sub-block ----------------------
        y = _ln(h, ln2_g_ref[li], ln2_b_ref[li])
        y = jnp.dot(y.astype(jnp.bfloat16), fc1_w_ref[li],
                    preferred_element_type=jnp.float32) + fc1_b_ref[li]
        y = _gelu(y)
        y = jnp.dot(y.astype(jnp.bfloat16), fc2_w_ref[li],
                    preferred_element_type=jnp.float32) + fc2_b_ref[li]
        h = h + y                                 # LayerScale folded into fc2_w/b

    # final LayerNorm + AdaptiveAvgPool1d (exact averaging matmul) over the full
    # slab; cls/pad rows are dropped cheaply in the wrapper (keeps this store an
    # aligned full-block vst instead of an unaligned row slice).
    hf = _ln(h, norm_g_ref[...], norm_b_ref[...])
    out_ref[...] = jnp.dot(hf, pool_w_ref[...],
                           preferred_element_type=jnp.float32).astype(out_ref.dtype)


def _const_spec(arr):
    nd = arr.ndim
    return pl.BlockSpec(arr.shape, lambda g, _nd=nd: (0,) * _nd)


def encoder_forward(x, fp):
    """x: [B, C, H, W] NCHW. fp: fused/stacked params from prepare_params()."""
    Bx, Cx, H, W = x.shape
    nh, nw = H // PATCH, W // PATCH
    n_tok = nh * nw
    bt = fp["embed_add"].shape[0]            # batch_per_block * T_PAD
    n_blocks = (Bx * T_PAD) // bt

    # patchify glue: NCHW -> [B, N, C*p*p] with (C, ph, pw) flatten order
    # (matches Conv2d(C, D, kernel=p, stride=p)); cast to bf16 so the only
    # per-step DMA of non-trivial size is half-width; pad row 0 = cls slot.
    patches = (x.reshape(Bx, Cx, nh, PATCH, nw, PATCH)
                 .transpose(0, 2, 4, 1, 3, 5)
                 .reshape(Bx, n_tok, Cx * PATCH * PATCH)).astype(jnp.bfloat16)
    patches_pad = jnp.pad(patches, ((0, 0), (1, T_PAD - 1 - n_tok), (0, 0)))
    patches_pad = patches_pad.reshape(Bx * T_PAD, CPP)

    inputs = [patches_pad, fp["embed_add"], fp["patch_w"],
              fp["attn_bias"], fp["head_mask"],
              fp["ln1_g"], fp["ln1_b"], fp["qkv_w"], fp["qkv_b"],
              fp["proj_w"], fp["proj_b"],
              fp["ln2_g"], fp["ln2_b"], fp["fc1_w"], fp["fc1_b"],
              fp["fc2_w"], fp["fc2_b"],
              fp["norm_g"], fp["norm_b"], fp["pool_w"]]

    in_specs = [pl.BlockSpec((bt, CPP), lambda g: (g, 0))]
    in_specs += [_const_spec(a) for a in inputs[1:]]

    out_full = pl.pallas_call(
        functools.partial(_encoder_kernel, bt=bt),
        grid=(n_blocks,),
        in_specs=in_specs,
        out_specs=pl.BlockSpec((bt, OUT_DIM), lambda g: (g, 0)),
        out_shape=jax.ShapeDtypeStruct((Bx * T_PAD, OUT_DIM), jnp.float32),
        compiler_params=pltpu.CompilerParams(
            dimension_semantics=("parallel",)),
    )(*inputs)

    # drop cls + pad rows (tiny XLA slice, fused under jit)
    return out_full.reshape(Bx, T_PAD, OUT_DIM)[:, 1:1 + n_tok, :]


def _batch_per_block():
    """Fold the whole batch into one grid step on single-TensorCore chips
    (v5e/v6e); keep grid=(B,) "parallel" on multi-TensorCore devices (v7x and
    megacore v4/v5p) so batch elements map onto distinct cores."""
    try:
        kind = jax.devices()[0].device_kind.lower()
    except Exception:
        kind = ""
    multi_core = ("v7" in kind) or ("v4" in kind) or ("v5p" in kind)
    return 1 if multi_core else B


# ------------------------------ parameter setup -------------------------------
def adaptive_pool_matrix(d_in, d_out):
    """Exact nn.AdaptiveAvgPool1d as a [d_in, d_out] averaging matrix."""
    cols = []
    for i in range(d_out):
        s = (i * d_in) // d_out
        e = -((-(i + 1) * d_in) // d_out)
        col = [0.0] * d_in
        for j in range(s, e):
            col[j] = 1.0 / (e - s)
        cols.append(col)
    return jnp.array(cols, dtype=jnp.float32).T


def init_params(key):
    def nrm(k, shape, scale=0.02):
        return (scale * jax.random.normal(k, shape)).astype(jnp.float32)

    keys = jax.random.split(key, 4 + DEPTH)
    p = {
        "patch_w": nrm(keys[0], (CPP, D)),
        "patch_b": jnp.zeros((D,), jnp.float32),
        "cls_token": nrm(keys[1], (1, 1, D)),
        # deit3 style: pos embed over patch tokens only (added before cls prepend)
        "pos_embed": nrm(keys[2], (1, N_TOK, D)),
        "norm_g": jnp.ones((D,), jnp.float32),
        "norm_b": jnp.zeros((D,), jnp.float32),
        "pool_w": adaptive_pool_matrix(D, OUT_DIM),
        "blocks": [],
    }
    for li in range(DEPTH):
        bk = jax.random.split(keys[4 + li], 4)
        p["blocks"].append({
            "ln1_g": jnp.ones((D,), jnp.float32),
            "ln1_b": jnp.zeros((D,), jnp.float32),
            "qkv_w": nrm(bk[0], (D, 3 * D)),
            "qkv_b": jnp.zeros((3 * D,), jnp.float32),
            "proj_w": nrm(bk[1], (D, D)),
            "proj_b": jnp.zeros((D,), jnp.float32),
            "ls1": jnp.full((D,), 1e-5, jnp.float32),   # LayerScale (deit3)
            "ln2_g": jnp.ones((D,), jnp.float32),
            "ln2_b": jnp.zeros((D,), jnp.float32),
            "fc1_w": nrm(bk[2], (D, MLP)),
            "fc1_b": jnp.zeros((MLP,), jnp.float32),
            "fc2_w": nrm(bk[3], (MLP, D)),
            "fc2_b": jnp.zeros((D,), jnp.float32),
            "ls2": jnp.full((D,), 1e-5, jnp.float32),
        })
    return p


def prepare_params(p, batch_per_block):
    """Stack per-block params, fold LayerScale / attention scale / biases,
    precompute masks for the chosen batch-per-block, cast matmul weights to bf16."""
    def stack(name):
        return jnp.stack([blk[name] for blk in p["blocks"]], axis=0)

    bt = batch_per_block * T_PAD
    f = {}
    f["patch_w"] = p["patch_w"].astype(jnp.bfloat16)                  # [CPP, D]

    # additive table: row 0 -> cls token, rows 1..N -> pos_embed + patch bias;
    # tiled over the folded batch.
    embed_add = jnp.zeros((T_PAD, D), jnp.float32)
    embed_add = embed_add.at[0].set(p["cls_token"].reshape(D))
    embed_add = embed_add.at[1:1 + N_TOK].set(
        p["pos_embed"].reshape(N_TOK, D) + p["patch_b"][None, :])
    f["embed_add"] = jnp.tile(embed_add, (batch_per_block, 1))        # [bt, D]

    # block-diagonal (batch) + key-padding additive bias; heads tiled on rows.
    row_b = (jnp.arange(NH * bt) % bt) // T_PAD
    col_b = jnp.arange(bt) // T_PAD
    col_k = jnp.arange(bt) % T_PAD
    valid = (row_b[:, None] == col_b[None, :]) & (col_k[None, :] < T)
    f["attn_bias"] = jnp.where(valid, 0.0, NEG_INF).astype(jnp.float32)

    # 0/1 mask selecting head h's HD columns in row block h (used to mask Q_rep
    # before the score matmul and to fold the P@V head row-blocks back).
    row_h = jnp.arange(NH * bt) // bt
    col_h = jnp.arange(D) // HD
    f["head_mask"] = (row_h[:, None] == col_h[None, :]).astype(jnp.float32)

    for name in ("ln1_g", "ln1_b", "ln2_g", "ln2_b"):
        f[name] = stack(name).reshape(DEPTH, 1, D)

    # fold 1/sqrt(HD) attention scale into the Q columns of qkv_w / qkv_b
    qscale = jnp.concatenate([jnp.full((D,), 1.0 / math.sqrt(HD), jnp.float32),
                              jnp.ones((2 * D,), jnp.float32)])
    f["qkv_w"] = (stack("qkv_w") * qscale[None, None, :]).astype(jnp.bfloat16)
    f["qkv_b"] = (stack("qkv_b") * qscale[None, :]).reshape(DEPTH, 1, 3 * D)

    ls1 = stack("ls1")                                                # [DEPTH, D]
    ls2 = stack("ls2")
    f["proj_w"] = (stack("proj_w") * ls1[:, None, :]).astype(jnp.bfloat16)
    f["proj_b"] = (stack("proj_b") * ls1).reshape(DEPTH, 1, D)
    f["fc1_w"] = stack("fc1_w").astype(jnp.bfloat16)                  # [DEPTH, D, MLP]
    f["fc1_b"] = stack("fc1_b").reshape(DEPTH, 1, MLP)
    f["fc2_w"] = (stack("fc2_w") * ls2[:, None, :]).astype(jnp.bfloat16)
    f["fc2_b"] = (stack("fc2_b") * ls2).reshape(DEPTH, 1, D)

    f["norm_g"] = p["norm_g"].reshape(1, D)
    f["norm_b"] = p["norm_b"].reshape(1, D)
    f["pool_w"] = p["pool_w"]                 # exact averaging kept in f32
    return f


# ---------------------- pure-JAX reference (f32, unfused) ---------------------
def encoder_reference(x, p):
    Bx, Cx, H, W = x.shape
    nh, nw = H // PATCH, W // PATCH
    n_tok = nh * nw
    patches = (x.reshape(Bx, Cx, nh, PATCH, nw, PATCH)
                 .transpose(0, 2, 4, 1, 3, 5)
                 .reshape(Bx, n_tok, Cx * PATCH * PATCH))
    tok = patches @ p["patch_w"] + p["patch_b"] + p["pos_embed"]
    cls = jnp.broadcast_to(p["cls_token"], (Bx, 1, D))
    h = jnp.concatenate([cls, tok], axis=1)

    def ln(v, g, b):
        m = v.mean(-1, keepdims=True)
        var = ((v - m) ** 2).mean(-1, keepdims=True)
        return (v - m) * lax.rsqrt(var + LN_EPS) * g + b

    for blk in p["blocks"]:
        y = ln(h, blk["ln1_g"], blk["ln1_b"])
        qkv = (y @ blk["qkv_w"] + blk["qkv_b"]).reshape(Bx, T, 3, NH, HD)
        qkv = qkv.transpose(2, 0, 3, 1, 4)
        q, k, v = qkv[0], qkv[1], qkv[2]
        s = jnp.einsum("bhqd,bhkd->bhqk", q, k) / math.sqrt(HD)
        a = jax.nn.softmax(s, axis=-1)
        o = jnp.einsum("bhqk,bhkd->bhqd", a, v).transpose(0, 2, 1, 3).reshape(Bx, T, D)
        h = h + (o @ blk["proj_w"] + blk["proj_b"]) * blk["ls1"]
        y = ln(h, blk["ln2_g"], blk["ln2_b"])
        y = y @ blk["fc1_w"] + blk["fc1_b"]
        y = 0.5 * y * (1.0 + jnp.tanh(0.7978845608028654 * (y + 0.044715 * y ** 3)))
        h = h + (y @ blk["fc2_w"] + blk["fc2_b"]) * blk["ls2"]

    h = ln(h, p["norm_g"], p["norm_b"])
    return h[:, 1:] @ p["pool_w"]


# ----------------------------------- main -------------------------------------
if __name__ == "__main__":
    key = jax.random.PRNGKey(0)
    kx, kp = jax.random.split(key)
    x = jax.random.normal(kx, (B, C, IMG, IMG), dtype=jnp.float32)
    params = init_params(kp)

    bb = _batch_per_block()                 # B (fold) on v5e/v6e, 1 on v7x/megacore
    fused = prepare_params(params, bb)

    run = jax.jit(encoder_forward)
    out = jax.block_until_ready(run(x, fused))

    assert out.shape == (B, N_TOK, OUT_DIM), out.shape
    assert bool(jnp.all(jnp.isfinite(out)))
    ref = encoder_reference(x, params)
    err = float(jnp.max(jnp.abs(out - ref)))
    assert err < 5e-2, f"max abs error vs f32 reference: {err}"
    print("KERNEL_OK")
</pallas_src>

<mosaic_0001>
module attributes {stable_mosaic.version = 11 : i64} {
  func.func @_encoder_kernel(%arg0: i32, %arg1: memref<48x192xbf16, #tpu.memory_space<vmem>>, %arg2: memref<48x64xf32, #tpu.memory_space<vmem>>, %arg3: memref<192x64xbf16, #tpu.memory_space<vmem>>, %arg4: memref<192x48xf32, #tpu.memory_space<vmem>>, %arg5: memref<192x64xf32, #tpu.memory_space<vmem>>, %arg6: memref<2x1x64xf32, #tpu.memory_space<vmem>>, %arg7: memref<2x1x64xf32, #tpu.memory_space<vmem>>, %arg8: memref<2x64x192xbf16, #tpu.memory_space<vmem>>, %arg9: memref<2x1x192xf32, #tpu.memory_space<vmem>>, %arg10: memref<2x64x64xbf16, #tpu.memory_space<vmem>>, %arg11: memref<2x1x64xf32, #tpu.memory_space<vmem>>, %arg12: memref<2x1x64xf32, #tpu.memory_space<vmem>>, %arg13: memref<2x1x64xf32, #tpu.memory_space<vmem>>, %arg14: memref<2x64x256xbf16, #tpu.memory_space<vmem>>, %arg15: memref<2x1x256xf32, #tpu.memory_space<vmem>>, %arg16: memref<2x256x64xbf16, #tpu.memory_space<vmem>>, %arg17: memref<2x1x64xf32, #tpu.memory_space<vmem>>, %arg18: memref<1x64xf32, #tpu.memory_space<vmem>>, %arg19: memref<1x64xf32, #tpu.memory_space<vmem>>, %arg20: memref<64x32xf32, #tpu.memory_space<vmem>>, %arg21: memref<48x32xf32, #tpu.memory_space<vmem>>) attributes {dimension_semantics = [#tpu.dimension_semantics<parallel>], iteration_bounds = array<i64: 1>, scalar_prefetch = 0 : i64, scratch_operands = 0 : i64, tpu.core_type = #tpu.core_type<tc>, window_params = [{transform_indices = @transform_0, window_bounds = array<i64: 48, 192>}, {pipeline_mode = #tpu.pipeline_mode<synchronous>, transform_indices = @transform_1, window_bounds = array<i64: 48, 64>}, {pipeline_mode = #tpu.pipeline_mode<synchronous>, transform_indices = @transform_2, window_bounds = array<i64: 192, 64>}, {pipeline_mode = #tpu.pipeline_mode<synchronous>, transform_indices = @transform_3, window_bounds = array<i64: 192, 48>}, {pipeline_mode = #tpu.pipeline_mode<synchronous>, transform_indices = @transform_4, window_bounds = array<i64: 192, 64>}, {pipeline_mode = #tpu.pipeline_mode<synchronous>, transform_indices = @transform_5, window_bounds = array<i64: 2, 1, 64>}, {pipeline_mode = #tpu.pipeline_mode<synchronous>, transform_indices = @transform_6, window_bounds = array<i64: 2, 1, 64>}, {pipeline_mode = #tpu.pipeline_mode<synchronous>, transform_indices = @transform_7, window_bounds = array<i64: 2, 64, 192>}, {pipeline_mode = #tpu.pipeline_mode<synchronous>, transform_indices = @transform_8, window_bounds = array<i64: 2, 1, 192>}, {pipeline_mode = #tpu.pipeline_mode<synchronous>, transform_indices = @transform_9, window_bounds = array<i64: 2, 64, 64>}, {pipeline_mode = #tpu.pipeline_mode<synchronous>, transform_indices = @transform_10, window_bounds = array<i64: 2, 1, 64>}, {pipeline_mode = #tpu.pipeline_mode<synchronous>, transform_indices = @transform_11, window_bounds = array<i64: 2, 1, 64>}, {pipeline_mode = #tpu.pipeline_mode<synchronous>, transform_indices = @transform_12, window_bounds = array<i64: 2, 1, 64>}, {pipeline_mode = #tpu.pipeline_mode<synchronous>, transform_indices = @transform_13, window_bounds = array<i64: 2, 64, 256>}, {pipeline_mode = #tpu.pipeline_mode<synchronous>, transform_indices = @transform_14, window_bounds = array<i64: 2, 1, 256>}, {pipeline_mode = #tpu.pipeline_mode<synchronous>, transform_indices = @transform_15, window_bounds = array<i64: 2, 256, 64>}, {pipeline_mode = #tpu.pipeline_mode<synchronous>, transform_indices = @transform_16, window_bounds = array<i64: 2, 1, 64>}, {pipeline_mode = #tpu.pipeline_mode<synchronous>, transform_indices = @transform_17, window_bounds = array<i64: 1, 64>}, {pipeline_mode = #tpu.pipeline_mode<synchronous>, transform_indices = @transform_18, window_bounds = array<i64: 1, 64>}, {pipeline_mode = #tpu.pipeline_mode<synchronous>, transform_indices = @transform_19, window_bounds = array<i64: 64, 32>}, {transform_indices = @transform_20, window_bounds = array<i64: 48, 32>}]} {
    %c0 = arith.constant 0 : index
    %c0_0 = arith.constant 0 : index
    %0 = vector.load %arg1[%c0, %c0_0] : memref<48x192xbf16, #tpu.memory_space<vmem>>, vector<48x192xbf16>
    %c0_1 = arith.constant 0 : index
    %c0_2 = arith.constant 0 : index
    %1 = vector.load %arg3[%c0_1, %c0_2] : memref<192x64xbf16, #tpu.memory_space<vmem>>, vector<192x64xbf16>
    %cst = arith.constant dense<0.000000e+00> : vector<48x64xf32>
    %2 = tpu.matmul %0, %1, %cst {dimension_numbers = #tpu.dot_dimension_numbers<[1], [0], [0], [1], [0, 0, 1, 1], [], []>} : vector<48x192xbf16>, vector<192x64xbf16>, vector<48x64xf32> -> vector<48x64xf32>
    %c0_3 = arith.constant 0 : index
    %c0_4 = arith.constant 0 : index
    %3 = vector.load %arg2[%c0_3, %c0_4] : memref<48x64xf32, #tpu.memory_space<vmem>>, vector<48x64xf32>
    %4 = arith.addf %2, %3 : vector<48x64xf32>
    %c0_5 = arith.constant 0 : index
    %c0_6 = arith.constant 0 : index
    %5 = vector.load %arg4[%c0_5, %c0_6] : memref<192x48xf32, #tpu.memory_space<vmem>>, vector<192x48xf32>
    %c0_7 = arith.constant 0 : index
    %c0_8 = arith.constant 0 : index
    %6 = vector.load %arg5[%c0_7, %c0_8] : memref<192x64xf32, #tpu.memory_space<vmem>>, vector<192x64xf32>
    %c0_9 = arith.constant 0 : index
    %c0_10 = arith.constant 0 : index
    %c0_11 = arith.constant 0 : index
    %7 = vector.load %arg6[%c0_9, %c0_10, %c0_11] : memref<2x1x64xf32, #tpu.memory_space<vmem>>, vector<1x1x64xf32>
    %8 = vector.shape_cast %7 : vector<1x1x64xf32> to vector<1x64xf32>
    %c0_12 = arith.constant 0 : index
    %c0_13 = arith.constant 0 : index
    %c0_14 = arith.constant 0 : index
    %9 = vector.load %arg7[%c0_12, %c0_13, %c0_14] : memref<2x1x64xf32, #tpu.memory_space<vmem>>, vector<1x1x64xf32>
    %10 = vector.shape_cast %9 : vector<1x1x64xf32> to vector<1x64xf32>
    %cst_15 = arith.constant dense<0.000000e+00> : vector<48xf32>
    %11 = vector.multi_reduction <add>, %4, %cst_15 [1] : vector<48x64xf32> to vector<48xf32>
    %12 = vector.shape_cast %11 : vector<48xf32> to vector<48x1xf32>
    %cst_16 = arith.constant 6.400000e+01 : f32
    %13 = vector.broadcast %cst_16 : f32 to vector<48x1xf32>
    %14 = arith.divf %12, %13 : vector<48x1xf32>
    %15 = vector.broadcast %14 : vector<48x1xf32> to vector<48x64xf32>
    %16 = arith.subf %4, %15 : vector<48x64xf32>
    %17 = arith.mulf %16, %16 : vector<48x64xf32>
    %cst_17 = arith.constant dense<0.000000e+00> : vector<48xf32>
    %18 = vector.multi_reduction <add>, %17, %cst_17 [1] : vector<48x64xf32> to vector<48xf32>
    %19 = vector.shape_cast %18 : vector<48xf32> to vector<48x1xf32>
    %cst_18 = arith.constant 6.400000e+01 : f32
    %20 = vector.broadcast %cst_18 : f32 to vector<48x1xf32>
    %21 = arith.divf %19, %20 : vector<48x1xf32>
    %cst_19 = arith.constant 9.99999997E-7 : f32
    %22 = vector.broadcast %cst_19 : f32 to vector<48x1xf32>
    %23 = arith.addf %21, %22 : vector<48x1xf32>
    %24 = math.rsqrt %23 : vector<48x1xf32>
    %25 = vector.broadcast %24 : vector<48x1xf32> to vector<48x64xf32>
    %26 = arith.mulf %16, %25 : vector<48x64xf32>
    %27 = vector.broadcast %8 : vector<1x64xf32> to vector<48x64xf32>
    %28 = arith.mulf %26, %27 : vector<48x64xf32>
    %29 = vector.broadcast %10 : vector<1x64xf32> to vector<48x64xf32>
    %30 = arith.addf %28, %29 : vector<48x64xf32>
    %31 = arith.truncf %30 : vector<48x64xf32> to vector<48x64xbf16>
    %c0_20 = arith.constant 0 : index
    %c0_21 = arith.constant 0 : index
    %c0_22 = arith.constant 0 : index
    %32 = vector.load %arg8[%c0_20, %c0_21, %c0_22] : memref<2x64x192xbf16, #tpu.memory_space<vmem>>, vector<1x64x192xbf16>
    %33 = vector.shape_cast %32 : vector<1x64x192xbf16> to vector<64x192xbf16>
    %cst_23 = arith.constant dense<0.000000e+00> : vector<48x192xf32>
    %34 = tpu.matmul %31, %33, %cst_23 {dimension_numbers = #tpu.dot_dimension_numbers<[1], [0], [0], [1], [0, 0, 1, 1], [], []>} : vector<48x64xbf16>, vector<64x192xbf16>, vector<48x192xf32> -> vector<48x192xf32>
    %c0_24 = arith.constant 0 : index
    %c0_25 = arith.constant 0 : index
    %c0_26 = arith.constant 0 : index
    %35 = vector.load %arg9[%c0_24, %c0_25, %c0_26] : memref<2x1x192xf32, #tpu.memory_space<vmem>>, vector<1x1x192xf32>
    %36 = vector.shape_cast %35 : vector<1x1x192xf32> to vector<1x192xf32>
    %37 = vector.broadcast %36 : vector<1x192xf32> to vector<48x192xf32>
    %38 = arith.addf %34, %37 : vector<48x192xf32>
    %39 = vector.extract_strided_slice %38 {offsets = [0, 0], sizes = [48, 64], strides = [1, 1]} : vector<48x192xf32> to vector<48x64xf32>
    %40 = vector.extract_strided_slice %38 {offsets = [0, 64], sizes = [48, 64], strides = [1, 1]} : vector<48x192xf32> to vector<48x64xf32>
    %41 = arith.truncf %40 : vector<48x64xf32> to vector<48x64xbf16>
    %42 = vector.extract_strided_slice %38 {offsets = [0, 128], sizes = [48, 64], strides = [1, 1]} : vector<48x192xf32> to vector<48x64xf32>
    %43 = arith.truncf %42 : vector<48x64xf32> to vector<48x64xbf16>
    %44 = tpu.concatenate %39, %39, %39, %39 in 0 : vector<48x64xf32>, vector<48x64xf32>, vector<48x64xf32>, vector<48x64xf32> -> vector<192x64xf32>
    %45 = arith.mulf %44, %6 : vector<192x64xf32>
    %46 = arith.truncf %45 : vector<192x64xf32> to vector<192x64xbf16>
    %cst_27 = arith.constant dense<0.000000e+00> : vector<192x48xf32>
    %47 = tpu.matmul %46, %41, %cst_27 {dimension_numbers = #tpu.dot_dimension_numbers<[1], [1], [0], [0], [0, 0, 1, 0], [], []>} : vector<192x64xbf16>, vector<48x64xbf16>, vector<192x48xf32> -> vector<192x48xf32>
    %48 = arith.addf %47, %5 : vector<192x48xf32>
    %cst_28 = arith.constant dense<0xFF800000> : vector<192xf32>
    %49 = vector.multi_reduction <maximumf>, %48, %cst_28 [1] : vector<192x48xf32> to vector<192xf32>
    %50 = vector.shape_cast %49 : vector<192xf32> to vector<192x1xf32>
    %51 = vector.broadcast %50 : vector<192x1xf32> to vector<192x48xf32>
    %52 = arith.subf %48, %51 : vector<192x48xf32>
    %53 = math.exp %52 : vector<192x48xf32>
    %cst_29 = arith.constant dense<0.000000e+00> : vector<192xf32>
    %54 = vector.multi_reduction <add>, %53, %cst_29 [1] : vector<192x48xf32> to vector<192xf32>
    %55 = vector.shape_cast %54 : vector<192xf32> to vector<192x1xf32>
    %56 = tpu.reciprocal %55 {approx = true} : vector<192x1xf32> -> vector<192x1xf32>
    %57 = vector.broadcast %56 : vector<192x1xf32> to vector<192x48xf32>
    %58 = arith.mulf %53, %57 : vector<192x48xf32>
    %59 = arith.truncf %58 : vector<192x48xf32> to vector<192x48xbf16>
    %cst_30 = arith.constant dense<0.000000e+00> : vector<192x64xf32>
    %60 = tpu.matmul %59, %43, %cst_30 {dimension_numbers = #tpu.dot_dimension_numbers<[1], [0], [0], [1], [0, 0, 1, 1], [], []>} : vector<192x48xbf16>, vector<48x64xbf16>, vector<192x64xf32> -> vector<192x64xf32>
    %61 = arith.mulf %60, %6 : vector<192x64xf32>
    %62 = vector.extract_strided_slice %61 {offsets = [0, 0], sizes = [48, 64], strides = [1, 1]} : vector<192x64xf32> to vector<48x64xf32>
    %63 = vector.extract_strided_slice %61 {offsets = [48, 0], sizes = [48, 64], strides = [1, 1]} : vector<192x64xf32> to vector<48x64xf32>
    %64 = arith.addf %62, %63 : vector<48x64xf32>
    %65 = vector.extract_strided_slice %61 {offsets = [96, 0], sizes = [48, 64], strides = [1, 1]} : vector<192x64xf32> to vector<48x64xf32>
    %66 = arith.addf %64, %65 : vector<48x64xf32>
    %67 = vector.extract_strided_slice %61 {offsets = [144, 0], sizes = [48, 64], strides = [1, 1]} : vector<192x64xf32> to vector<48x64xf32>
    %68 = arith.addf %66, %67 : vector<48x64xf32>
    %69 = arith.truncf %68 : vector<48x64xf32> to vector<48x64xbf16>
    %c0_31 = arith.constant 0 : index
    %c0_32 = arith.constant 0 : index
    %c0_33 = arith.constant 0 : index
    %70 = vector.load %arg10[%c0_31, %c0_32, %c0_33] : memref<2x64x64xbf16, #tpu.memory_space<vmem>>, vector<1x64x64xbf16>
    %71 = vector.shape_cast %70 : vector<1x64x64xbf16> to vector<64x64xbf16>
    %cst_34 = arith.constant dense<0.000000e+00> : vector<48x64xf32>
    %72 = tpu.matmul %69, %71, %cst_34 {dimension_numbers = #tpu.dot_dimension_numbers<[1], [0], [0], [1], [0, 0, 1, 1], [], []>} : vector<48x64xbf16>, vector<64x64xbf16>, vector<48x64xf32> -> vector<48x64xf32>
    %c0_35 = arith.constant 0 : index
    %c0_36 = arith.constant 0 : index
    %c0_37 = arith.constant 0 : index
    %73 = vector.load %arg11[%c0_35, %c0_36, %c0_37] : memref<2x1x64xf32, #tpu.memory_space<vmem>>, vector<1x1x64xf32>
    %74 = vector.shape_cast %73 : vector<1x1x64xf32> to vector<1x64xf32>
    %75 = vector.broadcast %74 : vector<1x64xf32> to vector<48x64xf32>
    %76 = arith.addf %72, %75 : vector<48x64xf32>
    %77 = arith.addf %4, %76 : vector<48x64xf32>
    %c0_38 = arith.constant 0 : index
    %c0_39 = arith.constant 0 : index
    %c0_40 = arith.constant 0 : index
    %78 = vector.load %arg12[%c0_38, %c0_39, %c0_40] : memref<2x1x64xf32, #tpu.memory_space<vmem>>, vector<1x1x64xf32>
    %79 = vector.shape_cast %78 : vector<1x1x64xf32> to vector<1x64xf32>
    %c0_41 = arith.constant 0 : index
    %c0_42 = arith.constant 0 : index
    %c0_43 = arith.constant 0 : index
    %80 = vector.load %arg13[%c0_41, %c0_42, %c0_43] : memref<2x1x64xf32, #tpu.memory_space<vmem>>, vector<1x1x64xf32>
    %81 = vector.shape_cast %80 : vector<1x1x64xf32> to vector<1x64xf32>
    %cst_44 = arith.constant dense<0.000000e+00> : vector<48xf32>
    %82 = vector.multi_reduction <add>, %77, %cst_44 [1] : vector<48x64xf32> to vector<48xf32>
    %83 = vector.shape_cast %82 : vector<48xf32> to vector<48x1xf32>
    %cst_45 = arith.constant 6.400000e+01 : f32
    %84 = vector.broadcast %cst_45 : f32 to vector<48x1xf32>
    %85 = arith.divf %83, %84 : vector<48x1xf32>
    %86 = vector.broadcast %85 : vector<48x1xf32> to vector<48x64xf32>
    %87 = arith.subf %77, %86 : vector<48x64xf32>
    %88 = arith.mulf %87, %87 : vector<48x64xf32>
    %cst_46 = arith.constant dense<0.000000e+00> : vector<48xf32>
    %89 = vector.multi_reduction <add>, %88, %cst_46 [1] : vector<48x64xf32> to vector<48xf32>
    %90 = vector.shape_cast %89 : vector<48xf32> to vector<48x1xf32>
    %cst_47 = arith.constant 6.400000e+01 : f32
    %91 = vector.broadcast %cst_47 : f32 to vector<48x1xf32>
    %92 = arith.divf %90, %91 : vector<48x1xf32>
    %cst_48 = arith.constant 9.99999997E-7 : f32
    %93 = vector.broadcast %cst_48 : f32 to vector<48x1xf32>
    %94 = arith.addf %92, %93 : vector<48x1xf32>
    %95 = math.rsqrt %94 : vector<48x1xf32>
    %96 = vector.broadcast %95 : vector<48x1xf32> to vector<48x64xf32>
    %97 = arith.mulf %87, %96 : vector<48x64xf32>
    %98 = vector.broadcast %79 : vector<1x64xf32> to vector<48x64xf32>
    %99 = arith.mulf %97, %98 : vector<48x64xf32>
    %100 = vector.broadcast %81 : vector<1x64xf32> to vector<48x64xf32>
    %101 = arith.addf %99, %100 : vector<48x64xf32>
    %102 = arith.truncf %101 : vector<48x64xf32> to vector<48x64xbf16>
    %c0_49 = arith.constant 0 : index
    %c0_50 = arith.constant 0 : index
    %c0_51 = arith.constant 0 : index
    %103 = vector.load %arg14[%c0_49, %c0_50, %c0_51] : memref<2x64x256xbf16, #tpu.memory_space<vmem>>, vector<1x64x256xbf16>
    %104 = vector.shape_cast %103 : vector<1x64x256xbf16> to vector<64x256xbf16>
    %cst_52 = arith.constant dense<0.000000e+00> : vector<48x256xf32>
    %105 = tpu.matmul %102, %104, %cst_52 {dimension_numbers = #tpu.dot_dimension_numbers<[1], [0], [0], [1], [0, 0, 1, 1], [], []>} : vector<48x64xbf16>, vector<64x256xbf16>, vector<48x256xf32> -> vector<48x256xf32>
    %c0_53 = arith.constant 0 : index
    %c0_54 = arith.constant 0 : index
    %c0_55 = arith.constant 0 : index
    %106 = vector.load %arg15[%c0_53, %c0_54, %c0_55] : memref<2x1x256xf32, #tpu.memory_space<vmem>>, vector<1x1x256xf32>
    %107 = vector.shape_cast %106 : vector<1x1x256xf32> to vector<1x256xf32>
    %108 = vector.broadcast %107 : vector<1x256xf32> to vector<48x256xf32>
    %109 = arith.addf %105, %108 : vector<48x256xf32>
    %cst_56 = arith.constant 5.000000e-01 : f32
    %110 = vector.broadcast %cst_56 : f32 to vector<48x256xf32>
    %111 = arith.mulf %110, %109 : vector<48x256xf32>
    %cst_57 = arith.constant 4.471500e-02 : f32
    %112 = vector.broadcast %cst_57 : f32 to vector<48x256xf32>
    %113 = arith.mulf %112, %109 : vector<48x256xf32>
    %114 = arith.mulf %113, %109 : vector<48x256xf32>
    %115 = arith.mulf %114, %109 : vector<48x256xf32>
    %116 = arith.addf %109, %115 : vector<48x256xf32>
    %cst_58 = arith.constant 0.797884583 : f32
    %117 = vector.broadcast %cst_58 : f32 to vector<48x256xf32>
    %118 = arith.mulf %117, %116 : vector<48x256xf32>
    %119 = math.tanh %118 : vector<48x256xf32>
    %cst_59 = arith.constant 1.000000e+00 : f32
    %120 = vector.broadcast %cst_59 : f32 to vector<48x256xf32>
    %121 = arith.addf %120, %119 : vector<48x256xf32>
    %122 = arith.mulf %111, %121 : vector<48x256xf32>
    %123 = arith.truncf %122 : vector<48x256xf32> to vector<48x256xbf16>
    %c0_60 = arith.constant 0 : index
    %c0_61 = arith.constant 0 : index
    %c0_62 = arith.constant 0 : index
    %124 = vector.load %arg16[%c0_60, %c0_61, %c0_62] : memref<2x256x64xbf16, #tpu.memory_space<vmem>>, vector<1x256x64xbf16>
    %125 = vector.shape_cast %124 : vector<1x256x64xbf16> to vector<256x64xbf16>
    %cst_63 = arith.constant dense<0.000000e+00> : vector<48x64xf32>
    %126 = tpu.matmul %123, %125, %cst_63 {dimension_numbers = #tpu.dot_dimension_numbers<[1], [0], [0], [1], [0, 0, 1, 1], [], []>} : vector<48x256xbf16>, vector<256x64xbf16>, vector<48x64xf32> -> vector<48x64xf32>
    %c0_64 = arith.constant 0 : index
    %c0_65 = arith.constant 0 : index
    %c0_66 = arith.constant 0 : index
    %127 = vector.load %arg17[%c0_64, %c0_65, %c0_66] : memref<2x1x64xf32, #tpu.memory_space<vmem>>, vector<1x1x64xf32>
    %128 = vector.shape_cast %127 : vector<1x1x64xf32> to vector<1x64xf32>
    %129 = vector.broadcast %128 : vector<1x64xf32> to vector<48x64xf32>
    %130 = arith.addf %126, %129 : vector<48x64xf32>
    %131 = arith.addf %77, %130 : vector<48x64xf32>
    %c1 = arith.constant 1 : index
    %c0_67 = arith.constant 0 : index
    %c0_68 = arith.constant 0 : index
    %132 = vector.load %arg6[%c1, %c0_67, %c0_68] : memref<2x1x64xf32, #tpu.memory_space<vmem>>, vector<1x1x64xf32>
    %133 = vector.shape_cast %132 : vector<1x1x64xf32> to vector<1x64xf32>
    %c1_69 = arith.constant 1 : index
    %c0_70 = arith.constant 0 : index
    %c0_71 = arith.constant 0 : index
    %134 = vector.load %arg7[%c1_69, %c0_70, %c0_71] : memref<2x1x64xf32, #tpu.memory_space<vmem>>, vector<1x1x64xf32>
    %135 = vector.shape_cast %134 : vector<1x1x64xf32> to vector<1x64xf32>
    %cst_72 = arith.constant dense<0.000000e+00> : vector<48xf32>
    %136 = vector.multi_reduction <add>, %131, %cst_72 [1] : vector<48x64xf32> to vector<48xf32>
    %137 = vector.shape_cast %136 : vector<48xf32> to vector<48x1xf32>
    %cst_73 = arith.constant 6.400000e+01 : f32
    %138 = vector.broadcast %cst_73 : f32 to vector<48x1xf32>
    %139 = arith.divf %137, %138 : vector<48x1xf32>
    %140 = vector.broadcast %139 : vector<48x1xf32> to vector<48x64xf32>
    %141 = arith.subf %131, %140 : vector<48x64xf32>
    %142 = arith.mulf %141, %141 : vector<48x64xf32>
    %cst_74 = arith.constant dense<0.000000e+00> : vector<48xf32>
    %143 = vector.multi_reduction <add>, %142, %cst_74 [1] : vector<48x64xf32> to vector<48xf32>
    %144 = vector.shape_cast %143 : vector<48xf32> to vector<48x1xf32>
    %cst_75 = arith.constant 6.400000e+01 : f32
    %145 = vector.broadcast %cst_75 : f32 to vector<48x1xf32>
    %146 = arith.divf %144, %145 : vector<48x1xf32>
    %cst_76 = arith.constant 9.99999997E-7 : f32
    %147 = vector.broadcast %cst_76 : f32 to vector<48x1xf32>
    %148 = arith.addf %146, %147 : vector<48x1xf32>
    %149 = math.rsqrt %148 : vector<48x1xf32>
    %150 = vector.broadcast %149 : vector<48x1xf32> to vector<48x64xf32>
    %151 = arith.mulf %141, %150 : vector<48x64xf32>
    %152 = vector.broadcast %133 : vector<1x64xf32> to vector<48x64xf32>
    %153 = arith.mulf %151, %152 : vector<48x64xf32>
    %154 = vector.broadcast %135 : vector<1x64xf32> to vector<48x64xf32>
    %155 = arith.addf %153, %154 : vector<48x64xf32>
    %156 = arith.truncf %155 : vector<48x64xf32> to vector<48x64xbf16>
    %c1_77 = arith.constant 1 : index
    %c0_78 = arith.constant 0 : index
    %c0_79 = arith.constant 0 : index
    %157 = vector.load %arg8[%c1_77, %c0_78, %c0_79] : memref<2x64x192xbf16, #tpu.memory_space<vmem>>, vector<1x64x192xbf16>
    %158 = vector.shape_cast %157 : vector<1x64x192xbf16> to vector<64x192xbf16>
    %cst_80 = arith.constant dense<0.000000e+00> : vector<48x192xf32>
    %159 = tpu.matmul %156, %158, %cst_80 {dimension_numbers = #tpu.dot_dimension_numbers<[1], [0], [0], [1], [0, 0, 1, 1], [], []>} : vector<48x64xbf16>, vector<64x192xbf16>, vector<48x192xf32> -> vector<48x192xf32>
    %c1_81 = arith.constant 1 : index
    %c0_82 = arith.constant 0 : index
    %c0_83 = arith.constant 0 : index
    %160 = vector.load %arg9[%c1_81, %c0_82, %c0_83] : memref<2x1x192xf32, #tpu.memory_space<vmem>>, vector<1x1x192xf32>
    %161 = vector.shape_cast %160 : vector<1x1x192xf32> to vector<1x192xf32>
    %162 = vector.broadcast %161 : vector<1x192xf32> to vector<48x192xf32>
    %163 = arith.addf %159, %162 : vector<48x192xf32>
    %164 = vector.extract_strided_slice %163 {offsets = [0, 0], sizes = [48, 64], strides = [1, 1]} : vector<48x192xf32> to vector<48x64xf32>
    %165 = vector.extract_strided_slice %163 {offsets = [0, 64], sizes = [48, 64], strides = [1, 1]} : vector<48x192xf32> to vector<48x64xf32>
    %166 = arith.truncf %165 : vector<48x64xf32> to vector<48x64xbf16>
    %167 = vector.extract_strided_slice %163 {offsets = [0, 128], sizes = [48, 64], strides = [1, 1]} : vector<48x192xf32> to vector<48x64xf32>
    %168 = arith.truncf %167 : vector<48x64xf32> to vector<48x64xbf16>
    %169 = tpu.concatenate %164, %164, %164, %164 in 0 : vector<48x64xf32>, vector<48x64xf32>, vector<48x64xf32>, vector<48x64xf32> -> vector<192x64xf32>
    %170 = arith.mulf %169, %6 : vector<192x64xf32>
    %171 = arith.truncf %170 : vector<192x64xf32> to vector<192x64xbf16>
    %cst_84 = arith.constant dense<0.000000e+00> : vector<192x48xf32>
    %172 = tpu.matmul %171, %166, %cst_84 {dimension_numbers = #tpu.dot_dimension_numbers<[1], [1], [0], [0], [0, 0, 1, 0], [], []>} : vector<192x64xbf16>, vector<48x64xbf16>, vector<192x48xf32> -> vector<192x48xf32>
    %173 = arith.addf %172, %5 : vector<192x48xf32>
    %cst_85 = arith.constant dense<0xFF800000> : vector<192xf32>
    %174 = vector.multi_reduction <maximumf>, %173, %cst_85 [1] : vector<192x48xf32> to vector<192xf32>
    %175 = vector.shape_cast %174 : vector<192xf32> to vector<192x1xf32>
    %176 = vector.broadcast %175 : vector<192x1xf32> to vector<192x48xf32>
    %177 = arith.subf %173, %176 : vector<192x48xf32>
    %178 = math.exp %177 : vector<192x48xf32>
    %cst_86 = arith.constant dense<0.000000e+00> : vector<192xf32>
    %179 = vector.multi_reduction <add>, %178, %cst_86 [1] : vector<192x48xf32> to vector<192xf32>
    %180 = vector.shape_cast %179 : vector<192xf32> to vector<192x1xf32>
    %181 = tpu.reciprocal %180 {approx = true} : vector<192x1xf32> -> vector<192x1xf32>
    %182 = vector.broadcast %181 : vector<192x1xf32> to vector<192x48xf32>
    %183 = arith.mulf %178, %182 : vector<192x48xf32>
    %184 = arith.truncf %183 : vector<192x48xf32> to vector<192x48xbf16>
    %cst_87 = arith.constant dense<0.000000e+00> : vector<192x64xf32>
    %185 = tpu.matmul %184, %168, %cst_87 {dimension_numbers = #tpu.dot_dimension_numbers<[1], [0], [0], [1], [0, 0, 1, 1], [], []>} : vector<192x48xbf16>, vector<48x64xbf16>, vector<192x64xf32> -> vector<192x64xf32>
    %186 = arith.mulf %185, %6 : vector<192x64xf32>
    %187 = vector.extract_strided_slice %186 {offsets = [0, 0], sizes = [48, 64], strides = [1, 1]} : vector<192x64xf32> to vector<48x64xf32>
    %188 = vector.extract_strided_slice %186 {offsets = [48, 0], sizes = [48, 64], strides = [1, 1]} : vector<192x64xf32> to vector<48x64xf32>
    %189 = arith.addf %187, %188 : vector<48x64xf32>
    %190 = vector.extract_strided_slice %186 {offsets = [96, 0], sizes = [48, 64], strides = [1, 1]} : vector<192x64xf32> to vector<48x64xf32>
    %191 = arith.addf %189, %190 : vector<48x64xf32>
    %192 = vector.extract_strided_slice %186 {offsets = [144, 0], sizes = [48, 64], strides = [1, 1]} : vector<192x64xf32> to vector<48x64xf32>
    %193 = arith.addf %191, %192 : vector<48x64xf32>
    %194 = arith.truncf %193 : vector<48x64xf32> to vector<48x64xbf16>
    %c1_88 = arith.constant 1 : index
    %c0_89 = arith.constant 0 : index
    %c0_90 = arith.constant 0 : index
    %195 = vector.load %arg10[%c1_88, %c0_89, %c0_90] : memref<2x64x64xbf16, #tpu.memory_space<vmem>>, vector<1x64x64xbf16>
    %196 = vector.shape_cast %195 : vector<1x64x64xbf16> to vector<64x64xbf16>
    %cst_91 = arith.constant dense<0.000000e+00> : vector<48x64xf32>
    %197 = tpu.matmul %194, %196, %cst_91 {dimension_numbers = #tpu.dot_dimension_numbers<[1], [0], [0], [1], [0, 0, 1, 1], [], []>} : vector<48x64xbf16>, vector<64x64xbf16>, vector<48x64xf32> -> vector<48x64xf32>
    %c1_92 = arith.constant 1 : index
    %c0_93 = arith.constant 0 : index
    %c0_94 = arith.constant 0 : index
    %198 = vector.load %arg11[%c1_92, %c0_93, %c0_94] : memref<2x1x64xf32, #tpu.memory_space<vmem>>, vector<1x1x64xf32>
    %199 = vector.shape_cast %198 : vector<1x1x64xf32> to vector<1x64xf32>
    %200 = vector.broadcast %199 : vector<1x64xf32> to vector<48x64xf32>
    %201 = arith.addf %197, %200 : vector<48x64xf32>
    %202 = arith.addf %131, %201 : vector<48x64xf32>
    %c1_95 = arith.constant 1 : index
    %c0_96 = arith.constant 0 : index
    %c0_97 = arith.constant 0 : index
    %203 = vector.load %arg12[%c1_95, %c0_96, %c0_97] : memref<2x1x64xf32, #tpu.memory_space<vmem>>, vector<1x1x64xf32>
    %204 = vector.shape_cast %203 : vector<1x1x64xf32> to vector<1x64xf32>
    %c1_98 = arith.constant 1 : index
    %c0_99 = arith.constant 0 : index
    %c0_100 = arith.constant 0 : index
    %205 = vector.load %arg13[%c1_98, %c0_99, %c0_100] : memref<2x1x64xf32, #tpu.memory_space<vmem>>, vector<1x1x64xf32>
    %206 = vector.shape_cast %205 : vector<1x1x64xf32> to vector<1x64xf32>
    %cst_101 = arith.constant dense<0.000000e+00> : vector<48xf32>
    %207 = vector.multi_reduction <add>, %202, %cst_101 [1] : vector<48x64xf32> to vector<48xf32>
    %208 = vector.shape_cast %207 : vector<48xf32> to vector<48x1xf32>
    %cst_102 = arith.constant 6.400000e+01 : f32
    %209 = vector.broadcast %cst_102 : f32 to vector<48x1xf32>
    %210 = arith.divf %208, %209 : vector<48x1xf32>
    %211 = vector.broadcast %210 : vector<48x1xf32> to vector<48x64xf32>
    %212 = arith.subf %202, %211 : vector<48x64xf32>
    %213 = arith.mulf %212, %212 : vector<48x64xf32>
    %cst_103 = arith.constant dense<0.000000e+00> : vector<48xf32>
    %214 = vector.multi_reduction <add>, %213, %cst_103 [1] : vector<48x64xf32> to vector<48xf32>
    %215 = vector.shape_cast %214 : vector<48xf32> to vector<48x1xf32>
    %cst_104 = arith.constant 6.400000e+01 : f32
    %216 = vector.broadcast %cst_104 : f32 to vector<48x1xf32>
    %217 = arith.divf %215, %216 : vector<48x1xf32>
    %cst_105 = arith.constant 9.99999997E-7 : f32
    %218 = vector.broadcast %cst_105 : f32 to vector<48x1xf32>
    %219 = arith.addf %217, %218 : vector<48x1xf32>
    %220 = math.rsqrt %219 : vector<48x1xf32>
    %221 = vector.broadcast %220 : vector<48x1xf32> to vector<48x64xf32>
    %222 = arith.mulf %212, %221 : vector<48x64xf32>
    %223 = vector.broadcast %204 : vector<1x64xf32> to vector<48x64xf32>
    %224 = arith.mulf %222, %223 : vector<48x64xf32>
    %225 = vector.broadcast %206 : vector<1x64xf32> to vector<48x64xf32>
    %226 = arith.addf %224, %225 : vector<48x64xf32>
    %227 = arith.truncf %226 : vector<48x64xf32> to vector<48x64xbf16>
    %c1_106 = arith.constant 1 : index
    %c0_107 = arith.constant 0 : index
    %c0_108 = arith.constant 0 : index
    %228 = vector.load %arg14[%c1_106, %c0_107, %c0_108] : memref<2x64x256xbf16, #tpu.memory_space<vmem>>, vector<1x64x256xbf16>
    %229 = vector.shape_cast %228 : vector<1x64x256xbf16> to vector<64x256xbf16>
    %cst_109 = arith.constant dense<0.000000e+00> : vector<48x256xf32>
    %230 = tpu.matmul %227, %229, %cst_109 {dimension_numbers = #tpu.dot_dimension_numbers<[1], [0], [0], [1], [0, 0, 1, 1], [], []>} : vector<48x64xbf16>, vector<64x256xbf16>, vector<48x256xf32> -> vector<48x256xf32>
    %c1_110 = arith.constant 1 : index
    %c0_111 = arith.constant 0 : index
    %c0_112 = arith.constant 0 : index
    %231 = vector.load %arg15[%c1_110, %c0_111, %c0_112] : memref<2x1x256xf32, #tpu.memory_space<vmem>>, vector<1x1x256xf32>
    %232 = vector.shape_cast %231 : vector<1x1x256xf32> to vector<1x256xf32>
    %233 = vector.broadcast %232 : vector<1x256xf32> to vector<48x256xf32>
    %234 = arith.addf %230, %233 : vector<48x256xf32>
    %cst_113 = arith.constant 5.000000e-01 : f32
    %235 = vector.broadcast %cst_113 : f32 to vector<48x256xf32>
    %236 = arith.mulf %235, %234 : vector<48x256xf32>
    %cst_114 = arith.constant 4.471500e-02 : f32
    %237 = vector.broadcast %cst_114 : f32 to vector<48x256xf32>
    %238 = arith.mulf %237, %234 : vector<48x256xf32>
    %239 = arith.mulf %238, %234 : vector<48x256xf32>
    %240 = arith.mulf %239, %234 : vector<48x256xf32>
    %241 = arith.addf %234, %240 : vector<48x256xf32>
    %cst_115 = arith.constant 0.797884583 : f32
    %242 = vector.broadcast %cst_115 : f32 to vector<48x256xf32>
    %243 = arith.mulf %242, %241 : vector<48x256xf32>
    %244 = math.tanh %243 : vector<48x256xf32>
    %cst_116 = arith.constant 1.000000e+00 : f32
    %245 = vector.broadcast %cst_116 : f32 to vector<48x256xf32>
    %246 = arith.addf %245, %244 : vector<48x256xf32>
    %247 = arith.mulf %236, %246 : vector<48x256xf32>
    %248 = arith.truncf %247 : vector<48x256xf32> to vector<48x256xbf16>
    %c1_117 = arith.constant 1 : index
    %c0_118 = arith.constant 0 : index
    %c0_119 = arith.constant 0 : index
    %249 = vector.load %arg16[%c1_117, %c0_118, %c0_119] : memref<2x256x64xbf16, #tpu.memory_space<vmem>>, vector<1x256x64xbf16>
    %250 = vector.shape_cast %249 : vector<1x256x64xbf16> to vector<256x64xbf16>
    %cst_120 = arith.constant dense<0.000000e+00> : vector<48x64xf32>
    %251 = tpu.matmul %248, %250, %cst_120 {dimension_numbers = #tpu.dot_dimension_numbers<[1], [0], [0], [1], [0, 0, 1, 1], [], []>} : vector<48x256xbf16>, vector<256x64xbf16>, vector<48x64xf32> -> vector<48x64xf32>
    %c1_121 = arith.constant 1 : index
    %c0_122 = arith.constant 0 : index
    %c0_123 = arith.constant 0 : index
    %252 = vector.load %arg17[%c1_121, %c0_122, %c0_123] : memref<2x1x64xf32, #tpu.memory_space<vmem>>, vector<1x1x64xf32>
    %253 = vector.shape_cast %252 : vector<1x1x64xf32> to vector<1x64xf32>
    %254 = vector.broadcast %253 : vector<1x64xf32> to vector<48x64xf32>
    %255 = arith.addf %251, %254 : vector<48x64xf32>
    %256 = arith.addf %202, %255 : vector<48x64xf32>
    %c0_124 = arith.constant 0 : index
    %c0_125 = arith.constant 0 : index
    %257 = vector.load %arg18[%c0_124, %c0_125] : memref<1x64xf32, #tpu.memory_space<vmem>>, vector<1x64xf32>
    %c0_126 = arith.constant 0 : index
    %c0_127 = arith.constant 0 : index
    %258 = vector.load %arg19[%c0_126, %c0_127] : memref<1x64xf32, #tpu.memory_space<vmem>>, vector<1x64xf32>
    %cst_128 = arith.constant dense<0.000000e+00> : vector<48xf32>
    %259 = vector.multi_reduction <add>, %256, %cst_128 [1] : vector<48x64xf32> to vector<48xf32>
    %260 = vector.shape_cast %259 : vector<48xf32> to vector<48x1xf32>
    %cst_129 = arith.constant 6.400000e+01 : f32
    %261 = vector.broadcast %cst_129 : f32 to vector<48x1xf32>
    %262 = arith.divf %260, %261 : vector<48x1xf32>
    %263 = vector.broadcast %262 : vector<48x1xf32> to vector<48x64xf32>
    %264 = arith.subf %256, %263 : vector<48x64xf32>
    %265 = arith.mulf %264, %264 : vector<48x64xf32>
    %cst_130 = arith.constant dense<0.000000e+00> : vector<48xf32>
    %266 = vector.multi_reduction <add>, %265, %cst_130 [1] : vector<48x64xf32> to vector<48xf32>
    %267 = vector.shape_cast %266 : vector<48xf32> to vector<48x1xf32>
    %cst_131 = arith.constant 6.400000e+01 : f32
    %268 = vector.broadcast %cst_131 : f32 to vector<48x1xf32>
    %269 = arith.divf %267, %268 : vector<48x1xf32>
    %cst_132 = arith.constant 9.99999997E-7 : f32
    %270 = vector.broadcast %cst_132 : f32 to vector<48x1xf32>
    %271 = arith.addf %269, %270 : vector<48x1xf32>
    %272 = math.rsqrt %271 : vector<48x1xf32>
    %273 = vector.broadcast %272 : vector<48x1xf32> to vector<48x64xf32>
    %274 = arith.mulf %264, %273 : vector<48x64xf32>
    %275 = vector.broadcast %257 : vector<1x64xf32> to vector<48x64xf32>
    %276 = arith.mulf %274, %275 : vector<48x64xf32>
    %277 = vector.broadcast %258 : vector<1x64xf32> to vector<48x64xf32>
    %278 = arith.addf %276, %277 : vector<48x64xf32>
    %c0_133 = arith.constant 0 : index
    %c0_134 = arith.constant 0 : index
    %279 = vector.load %arg20[%c0_133, %c0_134] : memref<64x32xf32, #tpu.memory_space<vmem>>, vector<64x32xf32>
    %cst_135 = arith.constant dense<0.000000e+00> : vector<48x32xf32>
    %280 = tpu.matmul %278, %279, %cst_135 {dimension_numbers = #tpu.dot_dimension_numbers<[1], [0], [0], [1], [0, 0, 1, 1], [], []>} : vector<48x64xf32>, vector<64x32xf32>, vector<48x32xf32> -> vector<48x32xf32>
    %c0_136 = arith.constant 0 : index
    %c0_137 = arith.constant 0 : index
    %281 = vector.load %arg21[%c0_136, %c0_137] : memref<48x32xf32, #tpu.memory_space<vmem>>, vector<48x32xf32>
    tpu.vector_store %arg21[%c0_136, %c0_137], %280 {strides = array<i32>} : memref<48x32xf32, #tpu.memory_space<vmem>>, vector<48x32xf32>,
    return
  }
  func.func @transform_0(%arg0: i32) -> (i32, i32) {
    %c0_i32 = arith.constant 0 : i32
    %c0_i32_0 = arith.constant 0 : i32
    return %arg0, %c0_i32 : i32, i32
  }
  func.func @transform_1(%arg0: i32) -> (i32, i32) {
    %c0_i32 = arith.constant 0 : i32
    %c0_i32_0 = arith.constant 0 : i32
    %c0_i32_1 = arith.constant 0 : i32
    return %c0_i32, %c0_i32_0 : i32, i32
  }
  func.func @transform_2(%arg0: i32) -> (i32, i32) {
    %c0_i32 = arith.constant 0 : i32
    %c0_i32_0 = arith.constant 0 : i32
    %c0_i32_1 = arith.constant 0 : i32
    return %c0_i32, %c0_i32_0 : i32, i32
  }
  func.func @transform_3(%arg0: i32) -> (i32, i32) {
    %c0_i32 = arith.constant 0 : i32
    %c0_i32_0 = arith.constant 0 : i32
    %c0_i32_1 = arith.constant 0 : i32
    return %c0_i32, %c0_i32_0 : i32, i32
  }
  func.func @transform_4(%arg0: i32) -> (i32, i32) {
    %c0_i32 = arith.constant 0 : i32
    %c0_i32_0 = arith.constant 0 : i32
    %c0_i32_1 = arith.constant 0 : i32
    return %c0_i32, %c0_i32_0 : i32, i32
  }
  func.func @transform_5(%arg0: i32) -> (i32, i32, i32) {
    %c0_i32 = arith.constant 0 : i32
    %c0_i32_0 = arith.constant 0 : i32
    %c0_i32_1 = arith.constant 0 : i32
    %c0_i32_2 = arith.constant 0 : i32
    return %c0_i32, %c0_i32_0, %c0_i32_1 : i32, i32, i32
  }
  func.func @transform_6(%arg0: i32) -> (i32, i32, i32) {
    %c0_i32 = arith.constant 0 : i32
    %c0_i32_0 = arith.constant 0 : i32
    %c0_i32_1 = arith.constant 0 : i32
    %c0_i32_2 = arith.constant 0 : i32
    return %c0_i32, %c0_i32_0, %c0_i32_1 : i32, i32, i32
  }
  func.func @transform_7(%arg0: i32) -> (i32, i32, i32) {
    %c0_i32 = arith.constant 0 : i32
    %c0_i32_0 = arith.constant 0 : i32
    %c0_i32_1 = arith.constant 0 : i32
    %c0_i32_2 = arith.constant 0 : i32
    return %c0_i32, %c0_i32_0, %c0_i32_1 : i32, i32, i32
  }
  func.func @transform_8(%arg0: i32) -> (i32, i32, i32) {
    %c0_i32 = arith.constant 0 : i32
    %c0_i32_0 = arith.constant 0 : i32
    %c0_i32_1 = arith.constant 0 : i32
    %c0_i32_2 = arith.constant 0 : i32
    return %c0_i32, %c0_i32_0, %c0_i32_1 : i32, i32, i32
  }
  func.func @transform_9(%arg0: i32) -> (i32, i32, i32) {
    %c0_i32 = arith.constant 0 : i32
    %c0_i32_0 = arith.constant 0 : i32
    %c0_i32_1 = arith.constant 0 : i32
    %c0_i32_2 = arith.constant 0 : i32
    return %c0_i32, %c0_i32_0, %c0_i32_1 : i32, i32, i32
  }
  func.func @transform_10(%arg0: i32) -> (i32, i32, i32) {
    %c0_i32 = arith.constant 0 : i32
    %c0_i32_0 = arith.constant 0 : i32
    %c0_i32_1 = arith.constant 0 : i32
    %c0_i32_2 = arith.constant 0 : i32
    return %c0_i32, %c0_i32_0, %c0_i32_1 : i32, i32, i32
  }
  func.func @transform_11(%arg0: i32) -> (i32, i32, i32) {
    %c0_i32 = arith.constant 0 : i32
    %c0_i32_0 = arith.constant 0 : i32
    %c0_i32_1 = arith.constant 0 : i32
    %c0_i32_2 = arith.constant 0 : i32
    return %c0_i32, %c0_i32_0, %c0_i32_1 : i32, i32, i32
  }
  func.func @transform_12(%arg0: i32) -> (i32, i32, i32) {
    %c0_i32 = arith.constant 0 : i32
    %c0_i32_0 = arith.constant 0 : i32
    %c0_i32_1 = arith.constant 0 : i32
    %c0_i32_2 = arith.constant 0 : i32
    return %c0_i32, %c0_i32_0, %c0_i32_1 : i32, i32, i32
  }
  func.func @transform_13(%arg0: i32) -> (i32, i32, i32) {
    %c0_i32 = arith.constant 0 : i32
    %c0_i32_0 = arith.constant 0 : i32
    %c0_i32_1 = arith.constant 0 : i32
    %c0_i32_2 = arith.constant 0 : i32
    return %c0_i32, %c0_i32_0, %c0_i32_1 : i32, i32, i32
  }
  func.func @transform_14(%arg0: i32) -> (i32, i32, i32) {
    %c0_i32 = arith.constant 0 : i32
    %c0_i32_0 = arith.constant 0 : i32
    %c0_i32_1 = arith.constant 0 : i32
    %c0_i32_2 = arith.constant 0 : i32
    return %c0_i32, %c0_i32_0, %c0_i32_1 : i32, i32, i32
  }
  func.func @transform_15(%arg0: i32) -> (i32, i32, i32) {
    %c0_i32 = arith.constant 0 : i32
    %c0_i32_0 = arith.constant 0 : i32
    %c0_i32_1 = arith.constant 0 : i32
    %c0_i32_2 = arith.constant 0 : i32
    return %c0_i32, %c0_i32_0, %c0_i32_1 : i32, i32, i32
  }
  func.func @transform_16(%arg0: i32) -> (i32, i32, i32) {
    %c0_i32 = arith.constant 0 : i32
    %c0_i32_0 = arith.constant 0 : i32
    %c0_i32_1 = arith.constant 0 : i32
    %c0_i32_2 = arith.constant 0 : i32
    return %c0_i32, %c0_i32_0, %c0_i32_1 : i32, i32, i32
  }
  func.func @transform_17(%arg0: i32) -> (i32, i32) {
    %c0_i32 = arith.constant 0 : i32
    %c0_i32_0 = arith.constant 0 : i32
    %c0_i32_1 = arith.constant 0 : i32
    return %c0_i32, %c0_i32_0 : i32, i32
  }
  func.func @transform_18(%arg0: i32) -> (i32, i32) {
    %c0_i32 = arith.constant 0 : i32
    %c0_i32_0 = arith.constant 0 : i32
    %c0_i32_1 = arith.constant 0 : i32
    return %c0_i32, %c0_i32_0 : i32, i32
  }
  func.func @transform_19(%arg0: i32) -> (i32, i32) {
    %c0_i32 = arith.constant 0 : i32
    %c0_i32_0 = arith.constant 0 : i32
    %c0_i32_1 = arith.constant 0 : i32
    return %c0_i32, %c0_i32_0 : i32, i32
  }
  func.func @transform_20(%arg0: i32) -> (i32, i32) {
    %c0_i32 = arith.constant 0 : i32
    %c0_i32_0 = arith.constant 0 : i32
    return %arg0, %c0_i32 : i32, i32
  }
}

</mosaic_0001>

<llo_original>
// kernel: encoder_forward.1
$region0: #{encoder_forward.1}
  #allocation0 [shape = 'u32[]', space=smem, size = 0x4, offset = 0x4, fixed_abs, tag = 'smem constant byte address 0x4 - core index']
  #allocation1 [shape = 'u32[144,128]{1,0:T(1,128)}', space=vmem, size = 0x12000, scoped, tag = 'internal scratch']
  %s0 = inlined_call_operand.vmem [shape: bf16[48,192], index: 0, kind: input, shape index: {}]
  %s1 = inlined_call_operand.vmem [shape: f32[48,64], index: 1, kind: input, shape index: {}]
  %s2 = inlined_call_operand.vmem [shape: bf16[192,64], index: 2, kind: input, shape index: {}]
  %s3 = inlined_call_operand.vmem [shape: f32[192,48], index: 3, kind: input, shape index: {}]
  %s4 = inlined_call_operand.vmem [shape: f32[192,64], index: 4, kind: input, shape index: {}]
  %s5 = inlined_call_operand.vmem [shape: f32[2,1,64], index: 5, kind: input, shape index: {}]
  %s6 = inlined_call_operand.vmem [shape: f32[2,1,64], index: 6, kind: input, shape index: {}]
  %s7 = inlined_call_operand.vmem [shape: bf16[2,64,192], index: 7, kind: input, shape index: {}]
  %s8 = inlined_call_operand.vmem [shape: f32[2,1,192], index: 8, kind: input, shape index: {}]
  %s9 = inlined_call_operand.vmem [shape: bf16[2,64,64], index: 9, kind: input, shape index: {}]
  %s10 = inlined_call_operand.vmem [shape: f32[2,1,64], index: 10, kind: input, shape index: {}]
  %s11 = inlined_call_operand.vmem [shape: f32[2,1,64], index: 11, kind: input, shape index: {}]
  %s12 = inlined_call_operand.vmem [shape: f32[2,1,64], index: 12, kind: input, shape index: {}]
  %s13 = inlined_call_operand.vmem [shape: bf16[2,64,256], index: 13, kind: input, shape index: {}]
  %s14 = inlined_call_operand.vmem [shape: f32[2,1,256], index: 14, kind: input, shape index: {}]
  %s15 = inlined_call_operand.vmem [shape: bf16[2,256,64], index: 15, kind: input, shape index: {}]
  %s16 = inlined_call_operand.vmem [shape: f32[2,1,64], index: 16, kind: input, shape index: {}]
  %s17 = inlined_call_operand.vmem [shape: f32[1,64], index: 17, kind: input, shape index: {}]
  %s18 = inlined_call_operand.vmem [shape: f32[1,64], index: 18, kind: input, shape index: {}]
  %s19 = inlined_call_operand.vmem [shape: f32[64,32], index: 19, kind: input, shape index: {}]
  %s20 = inlined_call_operand.vmem [shape: f32[48,32], index: 20, kind: output, shape index: {}]
  %s21 = sld [smem:[#allocation0]]
  $region90: #{encoder_forward.1} parent=0
    _
  %s23 = ssub.s32 1, %s21
  %s24 = scalar_select 0, %s23, %s21
  // Predicated region
  $region2: #{encoder_forward.1} parent=0 // pred_check
    _
  $region3: #{encoder_forward.1} parent=0 // pred_check_branch
    %26 = sbr.rel (0) target = $region5
  $region4: #{encoder_forward.1} parent=0 // pred_region
    _
  $region5: #{encoder_forward.1} parent=0 // pred_fallthru
    _
  // Predicated region
  $region6: #{encoder_forward.1} parent=0 // pred_check
    _
  $region7: #{encoder_forward.1} parent=0 // pred_check_branch
    %28 = sbr.rel (0) target = $region9
  $region8: #{encoder_forward.1} parent=0 // pred_region
    _
  $region9: #{encoder_forward.1} parent=0 // pred_fallthru
    _
  // Predicated region
  $region10: #{encoder_forward.1} parent=0 // pred_check
    _
  $region11: #{encoder_forward.1} parent=0 // pred_check_branch
    %30 = sbr.rel (0) target = $region13
  $region12: #{encoder_forward.1} parent=0 // pred_region
    _
  $region13: #{encoder_forward.1} parent=0 // pred_fallthru
    _
  // Predicated region
  $region14: #{encoder_forward.1} parent=0 // pred_check
    _
  $region15: #{encoder_forward.1} parent=0 // pred_check_branch
    %32 = sbr.rel (0) target = $region17
  $region16: #{encoder_forward.1} parent=0 // pred_region
    _
  $region17: #{encoder_forward.1} parent=0 // pred_fallthru
    _
  // Predicated region
  $region18: #{encoder_forward.1} parent=0 // pred_check
    _
  $region19: #{encoder_forward.1} parent=0 // pred_check_branch
    %34 = sbr.rel (0) target = $region21
  $region20: #{encoder_forward.1} parent=0 // pred_region
    _
  $region21: #{encoder_forward.1} parent=0 // pred_fallthru
    _
  // Predicated region
  $region22: #{encoder_forward.1} parent=0 // pred_check
    _
  $region23: #{encoder_forward.1} parent=0 // pred_check_branch
    %36 = sbr.rel (0) target = $region25
  $region24: #{encoder_forward.1} parent=0 // pred_region
    _
  $region25: #{encoder_forward.1} parent=0 // pred_fallthru
    _
  // Predicated region
  $region26: #{encoder_forward.1} parent=0 // pred_check
    _
  $region27: #{encoder_forward.1} parent=0 // pred_check_branch
    %38 = sbr.rel (0) target = $region29
  $region28: #{encoder_forward.1} parent=0 // pred_region
    _
  $region29: #{encoder_forward.1} parent=0 // pred_fallthru
    _
  // Predicated region
  $region30: #{encoder_forward.1} parent=0 // pred_check
    _
  $region31: #{encoder_forward.1} parent=0 // pred_check_branch
    %40 = sbr.rel (0) target = $region33
  $region32: #{encoder_forward.1} parent=0 // pred_region
    _
  $region33: #{encoder_forward.1} parent=0 // pred_fallthru
    _
  // Predicated region
  $region34: #{encoder_forward.1} parent=0 // pred_check
    _
  $region35: #{encoder_forward.1} parent=0 // pred_check_branch
    %42 = sbr.rel (0) target = $region37
  $region36: #{encoder_forward.1} parent=0 // pred_region
    _
  $region37: #{encoder_forward.1} parent=0 // pred_fallthru
    _
  // Predicated region
  $region38: #{encoder_forward.1} parent=0 // pred_check
    _
  $region39: #{encoder_forward.1} parent=0 // pred_check_branch
    %44 = sbr.rel (0) target = $region41
  $region40: #{encoder_forward.1} parent=0 // pred_region
    _
  $region41: #{encoder_forward.1} parent=0 // pred_fallthru
    _
  // Predicated region
  $region42: #{encoder_forward.1} parent=0 // pred_check
    _
  $region43: #{encoder_forward.1} parent=0 // pred_check_branch
    %46 = sbr.rel (0) target = $region45
  $region44: #{encoder_forward.1} parent=0 // pred_region
    _
  $region45: #{encoder_forward.1} parent=0 // pred_fallthru
    _
  // Predicated region
  $region46: #{encoder_forward.1} parent=0 // pred_check
    _
  $region47: #{encoder_forward.1} parent=0 // pred_check_branch
    %48 = sbr.rel (0) target = $region49
  $region48: #{encoder_forward.1} parent=0 // pred_region
    _
  $region49: #{encoder_forward.1} parent=0 // pred_fallthru
    _
  // Predicated region
  $region50: #{encoder_forward.1} parent=0 // pred_check
    _
  $region51: #{encoder_forward.1} parent=0 // pred_check_branch
    %50 = sbr.rel (0) target = $region53
  $region52: #{encoder_forward.1} parent=0 // pred_region
    _
  $region53: #{encoder_forward.1} parent=0 // pred_fallthru
    _
  // Predicated region
  $region54: #{encoder_forward.1} parent=0 // pred_check
    _
  $region55: #{encoder_forward.1} parent=0 // pred_check_branch
    %52 = sbr.rel (0) target = $region57
  $region56: #{encoder_forward.1} parent=0 // pred_region
    _
  $region57: #{encoder_forward.1} parent=0 // pred_fallthru
    _
  // Predicated region
  $region58: #{encoder_forward.1} parent=0 // pred_check
    _
  $region59: #{encoder_forward.1} parent=0 // pred_check_branch
    %54 = sbr.rel (0) target = $region61
  $region60: #{encoder_forward.1} parent=0 // pred_region
    _
  $region61: #{encoder_forward.1} parent=0 // pred_fallthru
    _
  // Predicated region
  $region62: #{encoder_forward.1} parent=0 // pred_check
    _
  $region63: #{encoder_forward.1} parent=0 // pred_check_branch
    %56 = sbr.rel (0) target = $region65
  $region64: #{encoder_forward.1} parent=0 // pred_region
    _
  $region65: #{encoder_forward.1} parent=0 // pred_fallthru
    _
  // Predicated region
  $region66: #{encoder_forward.1} parent=0 // pred_check
    _
  $region67: #{encoder_forward.1} parent=0 // pred_check_branch
    %58 = sbr.rel (0) target = $region69
  $region68: #{encoder_forward.1} parent=0 // pred_region
    _
  $region69: #{encoder_forward.1} parent=0 // pred_fallthru
    _
  // Predicated region
  $region70: #{encoder_forward.1} parent=0 // pred_check
    _
  $region71: #{encoder_forward.1} parent=0 // pred_check_branch
    %60 = sbr.rel (0) target = $region73
  $region72: #{encoder_forward.1} parent=0 // pred_region
    _
  $region73: #{encoder_forward.1} parent=0 // pred_fallthru
    _
  // Predicated region
  $region74: #{encoder_forward.1} parent=0 // pred_check
    _
  $region75: #{encoder_forward.1} parent=0 // pred_check_branch
    %62 = sbr.rel (0) target = $region77
  $region76: #{encoder_forward.1} parent=0 // pred_region
    _
  $region77: #{encoder_forward.1} parent=0 // pred_fallthru
    _
  // Predicated region
  $region78: #{encoder_forward.1} parent=0 // pred_check
    _
  $region79: #{encoder_forward.1} parent=0 // pred_check_branch
    %64 = sbr.rel (0) target = $region81
  $region80: #{encoder_forward.1} parent=0 // pred_region
    _
  $region81: #{encoder_forward.1} parent=0 // pred_fallthru
    _
  %v66 = vld [vmem:[%s0] sm:$0xff]
  %v67 = vld [vmem:[%s0 + $0x8] sm:$0xff]
  %v68 = vld [vmem:[%s0 + $0x10] sm:$0xff]
  %v69 = vld [vmem:[%s0 + $0x18] sm:$0xff]
  %v70 = vld [vmem:[%s0 + $0x20] sm:$0xff]
  %v71 = vld [vmem:[%s0 + $0x28] sm:$0xff]
  %v72 = vld [vmem:[%s2] sm:$0xf]
  %v73 = vld [vmem:[%s2 + $0x4] sm:$0xf]
  %v74 = vld [vmem:[%s2 + $0x8] sm:$0xf]
  %v75 = vld [vmem:[%s2 + $0xc] sm:$0xf]
  %v76 = vld [vmem:[%s2 + $0x10] sm:$0xf]
  %v77 = vld [vmem:[%s2 + $0x14] sm:$0xf]
  %v78 = vld [vmem:[%s2 + $0x18] sm:$0xf]
  %v79 = vld [vmem:[%s2 + $0x1c] sm:$0xf]
  %v80 = vld [vmem:[%s2 + $0x20] sm:$0xf]
  %v81 = vld [vmem:[%s2 + $0x24] sm:$0xf]
  %v82 = vld [vmem:[%s2 + $0x28] sm:$0xf]
  %v83 = vld [vmem:[%s2 + $0x2c] sm:$0xf]
  %v84 = vld [vmem:[%s2 + $0x30] sm:$0xf]
  %v85 = vld [vmem:[%s2 + $0x34] sm:$0xf]
  %v86 = vld [vmem:[%s2 + $0x38] sm:$0xf]
  %v87 = vld [vmem:[%s2 + $0x3c] sm:$0xf]
  %v88 = vld [vmem:[%s2 + $0x40] sm:$0xf]
  %v89 = vld [vmem:[%s2 + $0x44] sm:$0xf]
  %v90 = vld [vmem:[%s2 + $0x48] sm:$0xf]
  %v91 = vld [vmem:[%s2 + $0x4c] sm:$0xf]
  %v92 = vld [vmem:[%s2 + $0x50] sm:$0xf]
  %v93 = vld [vmem:[%s2 + $0x54] sm:$0xf]
  %v94 = vld [vmem:[%s2 + $0x58] sm:$0xf]
  %v95 = vld [vmem:[%s2 + $0x5c] sm:$0xf]
  %v96 = vld [vmem:[%s1] sm:$0xff]
  %v97 = vld [vmem:[%s1 + $0x8] sm:$0xff]
  %v98 = vld [vmem:[%s1 + $0x10] sm:$0xff]
  %v99 = vld [vmem:[%s1 + $0x18] sm:$0xff]
  %v100 = vld [vmem:[%s1 + $0x20] sm:$0xff]
  %v101 = vld [vmem:[%s1 + $0x28] sm:$0xff]
  %v108 = vunpack.c.l.b16 %v66
  %v109 = vunpack.c.h.b16 %v66
  %v110 = vunpack.c.l.b16 %v67
  %v111 = vunpack.c.h.b16 %v67
  %v112 = vunpack.c.l.b16 %v68
  %v113 = vunpack.c.h.b16 %v68
  %v114 = vunpack.c.l.b16 %v69
  %v115 = vunpack.c.h.b16 %v69
  %v116 = vunpack.c.l.b16 %v70
  %v117 = vunpack.c.h.b16 %v70
  %v118 = vunpack.c.l.b16 %v71
  %v119 = vunpack.c.h.b16 %v71
  %v120 = vpack.c.b16 %v110, %v108
  %v121 = vpack.c.b16 %v111, %v109
  %v122 = vpack.c.b16 %v114, %v112
  %v123 = vpack.c.b16 %v115, %v113
  %v124 = vpack.c.b16 %v118, %v116
  %v125 = vpack.c.b16 %v119, %v117
  %v153 = vunpack.c.l.b16 %v72
  %v154 = vunpack.c.l.b16 %v73
  %v155 = vunpack.c.l.b16 %v74
  %v156 = vunpack.c.l.b16 %v75
  %v157 = vunpack.c.l.b16 %v76
  %v158 = vunpack.c.l.b16 %v77
  %v159 = vunpack.c.l.b16 %v78
  %v160 = vunpack.c.l.b16 %v79
  %v161 = vunpack.c.l.b16 %v80
  %v162 = vunpack.c.l.b16 %v81
  %v163 = vunpack.c.l.b16 %v82
  %v164 = vunpack.c.l.b16 %v83
  %v165 = vunpack.c.l.b16 %v84
  %v166 = vunpack.c.l.b16 %v85
  %v167 = vunpack.c.l.b16 %v86
  %v168 = vunpack.c.l.b16 %v87
  %v169 = vunpack.c.l.b16 %v88
  %v170 = vunpack.c.l.b16 %v89
  %v171 = vunpack.c.l.b16 %v90
  %v172 = vunpack.c.l.b16 %v91
  %v173 = vunpack.c.l.b16 %v92
  %v174 = vunpack.c.l.b16 %v93
  %v175 = vunpack.c.l.b16 %v94
  %v176 = vunpack.c.l.b16 %v95
  %v177 = vpack.c.b16 %v154, %v153
  %v178 = vpack.c.b16 %v156, %v155
  %v179 = vpack.c.b16 %v158, %v157
  %v180 = vpack.c.b16 %v160, %v159
  %v181 = vpack.c.b16 %v162, %v161
  %v182 = vpack.c.b16 %v164, %v163
  %v183 = vpack.c.b16 %v166, %v165
  %v184 = vpack.c.b16 %v168, %v167
  %v185 = vpack.c.b16 %v170, %v169
  %v186 = vpack.c.b16 %v172, %v171
  %v187 = vpack.c.b16 %v174, %v173
  %v188 = vpack.c.b16 %v176, %v175
  %vm201 = vcmask 523264
  %v203 = vsel %vm201, %v121, 0
  %v206 = vsel %vm201, %v123, 0
  %v209 = vsel %vm201, %v125, 0
  %211 = vmatprep.subr.bf16.mxu0 0
  %212 = vmatpush1.bf16.msra.mxu0 %v184
  %213 = vmatprep.subr.bf16.mxu0 0
  %214 = vmatpush1.bf16.msra.mxu0 %v183
  %215 = vmatprep.subr.bf16.mxu0 0
  %216 = vmatpush1.bf16.msra.mxu0 %v182
  %217 = vmatprep.subr.bf16.mxu0 0
  %218 = vmatpush1.bf16.msra.mxu0 %v181
  %219 = vmatprep.subr.bf16.mxu0 0
  %220 = vmatpush1.bf16.msra.mxu0 %v180
  %221 = vmatprep.subr.bf16.mxu0 0
  %222 = vmatpush1.bf16.msra.mxu0 %v179
  %223 = vmatprep.subr.bf16.mxu0 0
  %224 = vmatpush1.bf16.msra.mxu0 %v178
  %225 = vmatprep.subr.bf16.mxu0 0
  %226 = vmatpush1.bf16.msra.mxu0 %v177
  %227 = vmatprep.subr.bf16.mxu0 0
  %228 = vmatpush2.bf16.msra.mxu0 0
  %229 = vmatprep.subr.bf16.mxu0 0
  %230 = vmatpush2.bf16.msra.mxu0 0
  %231 = vmatprep.subr.bf16.mxu0 0
  %232 = vmatpush2.bf16.msra.mxu0 0
  %233 = vmatprep.subr.bf16.mxu0 0
  %234 = vmatpush2.bf16.msra.mxu0 0
  %235 = vmatprep.subr.bf16.mxu0 0
  %236 = vmatpush2.bf16.msra.mxu0 %v188
  %237 = vmatprep.subr.bf16.mxu0 0
  %238 = vmatpush2.bf16.msra.mxu0 %v187
  %239 = vmatprep.subr.bf16.mxu0 0
  %240 = vmatpush2.bf16.msra.mxu0 %v186
  %241 = vmatprep.subr.bf16.mxu0 0
  %242 = vmatpush2.bf16.msra.mxu0 %v185
  %243 = vmatprep.mubr.bf16.mxu0 %v203
  %244 = vmatmul.mubr.bf16.gmra.mxu0 %v120
  %v245 = vpop.f32.mrf.mxu0
  %v246 = vadd.f32 %v96, %v245
  %v247 = vpop.f32.mrf.mxu0
  %v248 = vpop.f32.mrf.mxu0
  %v249 = vadd.f32 %v97, %v248
  %v250 = vpop.f32.mrf.mxu0
  %251 = vmatprep.mubr.bf16.mxu0 %v206
  %252 = vmatmul.mubr.bf16.gmra.mxu0 %v122
  %v253 = vpop.f32.mrf.mxu0
  %v254 = vadd.f32 %v98, %v253
  %v255 = vpop.f32.mrf.mxu0
  %v256 = vpop.f32.mrf.mxu0
  %v257 = vadd.f32 %v99, %v256
  %v258 = vpop.f32.mrf.mxu0
  %259 = vmatprep.mubr.bf16.mxu0 %v209
  %260 = vmatmul.mubr.bf16.gmra.mxu0 %v124
  %v261 = vpop.f32.mrf.mxu0
  %v262 = vadd.f32 %v100, %v261
  %v263 = vpop.f32.mrf.mxu0
  %v264 = vpop.f32.mrf.mxu0
  %v265 = vadd.f32 %v101, %v264
  %v266 = vpop.f32.mrf.mxu0
  %267 = vdwg.mxu0
  %v268 = vld [vmem:[%s3] sm:$0xff]
  %v269 = vld [vmem:[%s3 + $0x8] sm:$0xff]
  %v270 = vld [vmem:[%s3 + $0x10] sm:$0xff]
  %v271 = vld [vmem:[%s3 + $0x18] sm:$0xff]
  %v272 = vld [vmem:[%s3 + $0x20] sm:$0xff]
  %v273 = vld [vmem:[%s3 + $0x28] sm:$0xff]
  %v274 = vld [vmem:[%s3 + $0x30] sm:$0xff]
  %v275 = vld [vmem:[%s3 + $0x38] sm:$0xff]
  %v276 = vld [vmem:[%s3 + $0x40] sm:$0xff]
  %v277 = vld [vmem:[%s3 + $0x48] sm:$0xff]
  %v278 = vld [vmem:[%s3 + $0x50] sm:$0xff]
  %v279 = vld [vmem:[%s3 + $0x58] sm:$0xff]
  %v280 = vld [vmem:[%s3 + $0x60] sm:$0xff]
  %v281 = vld [vmem:[%s3 + $0x68] sm:$0xff]
  %v282 = vld [vmem:[%s3 + $0x70] sm:$0xff]
  %v283 = vld [vmem:[%s3 + $0x78] sm:$0xff]
  %v284 = vld [vmem:[%s3 + $0x80] sm:$0xff]
  %v285 = vld [vmem:[%s3 + $0x88] sm:$0xff]
  %v286 = vld [vmem:[%s3 + $0x90] sm:$0xff]
  %v287 = vld [vmem:[%s3 + $0x98] sm:$0xff]
  %v288 = vld [vmem:[%s3 + $0xa0] sm:$0xff]
  %v289 = vld [vmem:[%s3 + $0xa8] sm:$0xff]
  %v290 = vld [vmem:[%s3 + $0xb0] sm:$0xff]
  %v291 = vld [vmem:[%s3 + $0xb8] sm:$0xff]
  %v292 = vld [vmem:[%s4] sm:$0xff]
  %v293 = vld [vmem:[%s4 + $0x8] sm:$0xff]
  %v294 = vld [vmem:[%s4 + $0x10] sm:$0xff]
  %v295 = vld [vmem:[%s4 + $0x18] sm:$0xff]
  %v296 = vld [vmem:[%s4 + $0x20] sm:$0xff]
  %v297 = vld [vmem:[%s4 + $0x28] sm:$0xff]
  %v298 = vld [vmem:[%s4 + $0x30] sm:$0xff]
  %v299 = vld [vmem:[%s4 + $0x38] sm:$0xff]
  %v300 = vld [vmem:[%s4 + $0x40] sm:$0xff]
  %v301 = vld [vmem:[%s4 + $0x48] sm:$0xff]
  %v302 = vld [vmem:[%s4 + $0x50] sm:$0xff]
  %v303 = vld [vmem:[%s4 + $0x58] sm:$0xff]
  %v304 = vld [vmem:[%s4 + $0x60] sm:$0xff]
  %v305 = vld [vmem:[%s4 + $0x68] sm:$0xff]
  %v306 = vld [vmem:[%s4 + $0x70] sm:$0xff]
  %v307 = vld [vmem:[%s4 + $0x78] sm:$0xff]
  %v308 = vld [vmem:[%s4 + $0x80] sm:$0xff]
  %v309 = vld [vmem:[%s4 + $0x88] sm:$0xff]
  %v310 = vld [vmem:[%s4 + $0x90] sm:$0xff]
  %v311 = vld [vmem:[%s4 + $0x98] sm:$0xff]
  %v312 = vld [vmem:[%s4 + $0xa0] sm:$0xff]
  %v313 = vld [vmem:[%s4 + $0xa8] sm:$0xff]
  %v314 = vld [vmem:[%s4 + $0xb0] sm:$0xff]
  %v315 = vld [vmem:[%s4 + $0xb8] sm:$0xff]
  %v316 = vld [vmem:[%s5] sm:$0x1]
  %v317 = vld [vmem:[%s6] sm:$0x1]
  %v318 = vsel %vm201, %v246, 0.0
  %319 = vadd.xlane.f32.xlu0 %v318
  %v320 = vpop.xlane.xlu0 %319
  %v321 = vsel %vm201, %v249, 0.0
  %322 = vadd.xlane.f32.xlu0 %v321
  %v323 = vpop.xlane.xlu0 %322
  %v324 = vsel %vm201, %v254, 0.0
  %325 = vadd.xlane.f32.xlu0 %v324
  %v326 = vpop.xlane.xlu0 %325
  %v327 = vsel %vm201, %v257, 0.0
  %328 = vadd.xlane.f32.xlu0 %v327
  %v329 = vpop.xlane.xlu0 %328
  %v330 = vsel %vm201, %v262, 0.0
  %331 = vadd.xlane.f32.xlu0 %v330
  %v332 = vpop.xlane.xlu0 %331
  %v333 = vsel %vm201, %v265, 0.0
  %334 = vadd.xlane.f32.xlu0 %v333
  %v335 = vpop.xlane.xlu0 %334
  %v336 = vrcp.pop 64.0
  %v337 = vmul.f32 %v320, %v336
  %v338 = vmul.f32 %v323, %v336
  %v339 = vmul.f32 %v326, %v336
  %v340 = vmul.f32 %v329, %v336
  %v341 = vmul.f32 %v332, %v336
  %v342 = vmul.f32 %v335, %v336
  %v343 = vsub.f32 %v246, %v337
  %v344 = vsub.f32 %v249, %v338
  %v345 = vsub.f32 %v254, %v339
  %v346 = vsub.f32 %v257, %v340
  %v347 = vsub.f32 %v262, %v341
  %v348 = vsub.f32 %v265, %v342
  %v349 = vmul.f32 %v343, %v343
  %v350 = vmul.f32 %v344, %v344
  %v351 = vmul.f32 %v345, %v345
  %v352 = vmul.f32 %v346, %v346
  %v353 = vmul.f32 %v347, %v347
  %v354 = vmul.f32 %v348, %v348
  %v355 = vsel %vm201, %v349, 0.0
  %356 = vadd.xlane.f32.xlu0 %v355
  %v357 = vpop.xlane.xlu0 %356
  %v358 = vsel %vm201, %v350, 0.0
  %359 = vadd.xlane.f32.xlu0 %v358
  %v360 = vpop.xlane.xlu0 %359
  %v361 = vsel %vm201, %v351, 0.0
  %362 = vadd.xlane.f32.xlu0 %v361
  %v363 = vpop.xlane.xlu0 %362
  %v364 = vsel %vm201, %v352, 0.0
  %365 = vadd.xlane.f32.xlu0 %v364
  %v366 = vpop.xlane.xlu0 %365
  %v367 = vsel %vm201, %v353, 0.0
  %368 = vadd.xlane.f32.xlu0 %v367
  %v369 = vpop.xlane.xlu0 %368
  %v370 = vsel %vm201, %v354, 0.0
  %371 = vadd.xlane.f32.xlu0 %v370
  %v372 = vpop.xlane.xlu0 %371
  %v373 = vmul.f32 %v357, %v336
  %v374 = vmul.f32 %v360, %v336
  %v375 = vmul.f32 %v363, %v336
  %v376 = vmul.f32 %v366, %v336
  %v377 = vmul.f32 %v369, %v336
  %v378 = vmul.f32 %v372, %v336
  %v379 = vadd.f32 %v373, 1e-06
  %v380 = vadd.f32 %v374, 1e-06
  %v381 = vadd.f32 %v375, 1e-06
  %v382 = vadd.f32 %v376, 1e-06
  %v383 = vadd.f32 %v377, 1e-06
  %v384 = vadd.f32 %v378, 1e-06
  %v385 = vrsqrt.pop %v379
  %v386 = vrsqrt.pop %v380
  %v387 = vrsqrt.pop %v381
  %v388 = vrsqrt.pop %v382
  %v389 = vrsqrt.pop %v383
  %v390 = vrsqrt.pop %v384
  %v391 = vmul.f32 %v343, %v385
  %v392 = vmul.f32 %v344, %v386
  %v393 = vmul.f32 %v345, %v387
  %v394 = vmul.f32 %v346, %v388
  %v395 = vmul.f32 %v347, %v389
  %v396 = vmul.f32 %v348, %v390
  %v398 = vlaneseq
  %v399 = vshrl.u32 %v398, 7
  %v400 = vsub.s32 0, %v399
  %v401 = vrot.slane %v316, %v400
  %v403 = vmul.f32 %v391, %v401
  %v404 = vmul.f32 %v392, %v401
  %v405 = vmul.f32 %v393, %v401
  %v406 = vmul.f32 %v394, %v401
  %v407 = vmul.f32 %v395, %v401
  %v408 = vmul.f32 %v396, %v401
  %v410 = vlaneseq
  %v411 = vshrl.u32 %v410, 7
  %v412 = vsub.s32 0, %v411
  %v413 = vrot.slane %v317, %v412
  %v415 = vadd.f32 %v403, %v413
  %v416 = vadd.f32 %v404, %v413
  %v417 = vadd.f32 %v405, %v413
  %v418 = vadd.f32 %v406, %v413
  %v419 = vadd.f32 %v407, %v413
  %v420 = vadd.f32 %v408, %v413
  %v421 = vpack.c.bf16 %v416, %v415
  %v422 = vpack.c.bf16 %v418, %v417
  %v423 = vpack.c.bf16 %v420, %v419
  %v424 = vld [vmem:[%s7] sm:$0xff]
  %v425 = vld [vmem:[%s7 + $0x8] sm:$0xff]
  %v426 = vld [vmem:[%s7 + $0x10] sm:$0xff]
  %v427 = vld [vmem:[%s7 + $0x18] sm:$0xff]
  %v428 = vld [vmem:[%s7 + $0x20] sm:$0xff]
  %v429 = vld [vmem:[%s7 + $0x28] sm:$0xff]
  %v430 = vld [vmem:[%s7 + $0x30] sm:$0xff]
  %v431 = vld [vmem:[%s7 + $0x38] sm:$0xff]
  %v432 = vld [vmem:[%s8] sm:$0x3]
  %v434 = vlaneseq
  %v435 = vshrl.u32 %v434, 7
  %v436 = vsub.s32 0, %v435
  %v437 = vrot.slane %v432, %v436
  %v438 = vlaneseq
  %v439 = vshrl.u32 %v438, 7
  %v440 = vsub.s32 1, %v439
  %v441 = vrot.slane %v432, %v440
  %v452 = vunpack.c.l.b16 %v424
  %v453 = vunpack.c.h.b16 %v424
  %v454 = vunpack.c.l.b16 %v425
  %v455 = vunpack.c.h.b16 %v425
  %v456 = vunpack.c.l.b16 %v426
  %v457 = vunpack.c.h.b16 %v426
  %v458 = vunpack.c.l.b16 %v427
  %v459 = vunpack.c.h.b16 %v427
  %v460 = vunpack.c.l.b16 %v428
  %v461 = vunpack.c.h.b16 %v428
  %v462 = vunpack.c.l.b16 %v429
  %v463 = vunpack.c.h.b16 %v429
  %v464 = vunpack.c.l.b16 %v430
  %v465 = vunpack.c.h.b16 %v430
  %v466 = vunpack.c.l.b16 %v431
  %v467 = vunpack.c.h.b16 %v431
  %v468 = vpack.c.b16 %v454, %v452
  %v469 = vpack.c.b16 %v455, %v453
  %v470 = vpack.c.b16 %v458, %v456
  %v471 = vpack.c.b16 %v459, %v457
  %v472 = vpack.c.b16 %v462, %v460
  %v473 = vpack.c.b16 %v463, %v461
  %v474 = vpack.c.b16 %v466, %v464
  %v475 = vpack.c.b16 %v467, %v465
  %v485 = vsel %vm201, %v421, 0
  %v488 = vsel %vm201, %v422, 0
  %v491 = vsel %vm201, %v423, 0
  %493 = vmatprep.subr.bf16.mxu0 0
  %494 = vmatpush1.bf16.msra.mxu0 0
  %495 = vmatprep.subr.bf16.mxu0 0
  %496 = vmatpush1.bf16.msra.mxu0 0
  %497 = vmatprep.subr.bf16.mxu0 0
  %498 = vmatpush1.bf16.msra.mxu0 0
  %499 = vmatprep.subr.bf16.mxu0 0
  %500 = vmatpush1.bf16.msra.mxu0 0
  %501 = vmatprep.subr.bf16.mxu0 %v475
  %502 = vmatpush1.bf16.msra.mxu0 %v474
  %503 = vmatprep.subr.bf16.mxu0 %v473
  %504 = vmatpush1.bf16.msra.mxu0 %v472
  %505 = vmatprep.subr.bf16.mxu0 %v471
  %506 = vmatpush1.bf16.msra.mxu0 %v470
  %507 = vmatprep.subr.bf16.mxu0 %v469
  %508 = vmatpush1.bf16.msra.mxu0 %v468
  %509 = vmatprep.subr.bf16.mxu0 0
  %510 = vmatpush2.bf16.msra.mxu0 0
  %511 = vmatprep.subr.bf16.mxu0 0
  %512 = vmatpush2.bf16.msra.mxu0 0
  %513 = vmatprep.subr.bf16.mxu0 0
  %514 = vmatpush2.bf16.msra.mxu0 0
  %515 = vmatprep.subr.bf16.mxu0 0
  %516 = vmatpush2.bf16.msra.mxu0 0
  %517 = vmatprep.subr.bf16.mxu0 0
  %518 = vmatpush2.bf16.msra.mxu0 0
  %519 = vmatprep.subr.bf16.mxu0 0
  %520 = vmatpush2.bf16.msra.mxu0 0
  %521 = vmatprep.subr.bf16.mxu0 0
  %522 = vmatpush2.bf16.msra.mxu0 0
  %523 = vmatprep.subr.bf16.mxu0 0
  %524 = vmatpush2.bf16.msra.mxu0 0
  %525 = vmatprep.mubr.bf16.mxu0 0
  %526 = vmatmul.mubr.bf16.gmra.mxu0 %v485
  %v527 = vpop.f32.mrf.mxu0
  %v528 = vadd.f32 %v437, %v527
  %v529 = vpop.f32.mrf.mxu0
  %v530 = vadd.f32 %v441, %v529
  %v531 = vpop.f32.mrf.mxu0
  %v532 = vadd.f32 %v437, %v531
  %v533 = vpop.f32.mrf.mxu0
  %v534 = vadd.f32 %v441, %v533
  %535 = vmatprep.mubr.bf16.mxu0 0
  %536 = vmatmul.mubr.bf16.gmra.mxu0 %v488
  %v537 = vpop.f32.mrf.mxu0
  %v538 = vadd.f32 %v437, %v537
  %v539 = vpop.f32.mrf.mxu0
  %v540 = vadd.f32 %v441, %v539
  %v541 = vpop.f32.mrf.mxu0
  %v542 = vadd.f32 %v437, %v541
  %v543 = vpop.f32.mrf.mxu0
  %v544 = vadd.f32 %v441, %v543
  %545 = vmatprep.mubr.bf16.mxu0 0
  %546 = vmatmul.mubr.bf16.gmra.mxu0 %v491
  %v547 = vpop.f32.mrf.mxu0
  %v548 = vadd.f32 %v437, %v547
  %v549 = vpop.f32.mrf.mxu0
  %v550 = vadd.f32 %v441, %v549
  %v551 = vpop.f32.mrf.mxu0
  %v552 = vadd.f32 %v437, %v551
  %v553 = vpop.f32.mrf.mxu0
  %v554 = vadd.f32 %v441, %v553
  %555 = vdwg.mxu0
  %v556 = vpack.c.bf16 %v532, %v528
  %v557 = vpack.c.bf16 %v542, %v538
  %v558 = vpack.c.bf16 %v552, %v548
  %v559 = vpack.c.bf16 %v534, %v530
  %v560 = vpack.c.bf16 %v544, %v540
  %v561 = vpack.c.bf16 %v554, %v550
  %v562 = vmul.f32 %v528, %v292
  %v563 = vmul.f32 %v532, %v293
  %v564 = vmul.f32 %v538, %v294
  %v565 = vmul.f32 %v542, %v295
  %v566 = vmul.f32 %v548, %v296
  %v567 = vmul.f32 %v552, %v297
  %v568 = vmul.f32 %v528, %v298
  %v569 = vmul.f32 %v532, %v299
  %v570 = vmul.f32 %v538, %v300
  %v571 = vmul.f32 %v542, %v301
  %v572 = vmul.f32 %v548, %v302
  %v573 = vmul.f32 %v552, %v303
  %v574 = vmul.f32 %v528, %v304
  %v575 = vmul.f32 %v532, %v305
  %v576 = vmul.f32 %v538, %v306
  %v577 = vmul.f32 %v542, %v307
  %v578 = vmul.f32 %v548, %v308
  %v579 = vmul.f32 %v552, %v309
  %v580 = vmul.f32 %v528, %v310
  %v581 = vmul.f32 %v532, %v311
  %v582 = vmul.f32 %v538, %v312
  %v583 = vmul.f32 %v542, %v313
  %v584 = vmul.f32 %v548, %v314
  %v585 = vmul.f32 %v552, %v315
  %v586 = vpack.c.bf16 %v563, %v562
  %v587 = vpack.c.bf16 %v565, %v564
  %v588 = vpack.c.bf16 %v567, %v566
  %v589 = vpack.c.bf16 %v569, %v568
  %v590 = vpack.c.bf16 %v571, %v570
  %v591 = vpack.c.bf16 %v573, %v572
  %v592 = vpack.c.bf16 %v575, %v574
  %v593 = vpack.c.bf16 %v577, %v576
  %v594 = vpack.c.bf16 %v579, %v578
  %v595 = vpack.c.bf16 %v581, %v580
  %v596 = vpack.c.bf16 %v583, %v582
  %v597 = vpack.c.bf16 %v585, %v584
  %601 = vrot.lane.b32.xlu0 %v556, 64
  %v602 = vpop.permute.xlu0 %601
  %603 = vrot.lane.b32.xlu0 %v557, 64
  %v604 = vpop.permute.xlu0 %603
  %605 = vrot.lane.b32.xlu0 %v558, 64
  %v606 = vpop.permute.xlu0 %605
  %v608 = vsel %vm201, %v586, 0
  %v611 = vsel %vm201, %v587, 0
  %v614 = vsel %vm201, %v588, 0
  %v617 = vsel %vm201, %v589, 0
  %v620 = vsel %vm201, %v590, 0
  %v623 = vsel %vm201, %v591, 0
  %v626 = vsel %vm201, %v592, 0
  %v629 = vsel %vm201, %v593, 0
  %v632 = vsel %vm201, %v594, 0
  %v635 = vsel %vm201, %v595, 0
  %v638 = vsel %vm201, %v596, 0
  %v641 = vsel %vm201, %v597, 0
  %v644 = vsel %vm201, %v602, 0
  %v647 = vsel %vm201, %v604, 0
  %v650 = vsel %vm201, %v606, 0
  %652 = vmatprep.subr.bf16.mxu0 0
  %653 = vmatpush1.bf16.xpose.msra.mxu0 0
  %654 = vmatprep.subr.bf16.mxu0 0
  %655 = vmatpush1.bf16.xpose.msra.mxu0 0
  %656 = vmatprep.subr.bf16.mxu0 0
  %657 = vmatpush1.bf16.xpose.msra.mxu0 0
  %658 = vmatprep.subr.bf16.mxu0 0
  %659 = vmatpush1.bf16.xpose.msra.mxu0 0
  %660 = vmatprep.subr.bf16.mxu0 0
  %661 = vmatpush1.bf16.xpose.msra.mxu0 0
  %662 = vmatprep.subr.bf16.mxu0 0
  %663 = vmatpush1.bf16.xpose.msra.mxu0 %v650
  %664 = vmatprep.subr.bf16.mxu0 0
  %665 = vmatpush1.bf16.xpose.msra.mxu0 %v647
  %666 = vmatprep.subr.bf16.mxu0 0
  %667 = vmatpush1.bf16.xpose.msra.mxu0 %v644
  %668 = vmatprep.subr.bf16.mxu0 0
  %669 = vmatpush2.bf16.xpose.msra.mxu0 0
  %670 = vmatprep.subr.bf16.mxu0 0
  %671 = vmatpush2.bf16.xpose.msra.mxu0 0
  %672 = vmatprep.subr.bf16.mxu0 0
  %673 = vmatpush2.bf16.xpose.msra.mxu0 0
  %674 = vmatprep.subr.bf16.mxu0 0
  %675 = vmatpush2.bf16.xpose.msra.mxu0 0
  %676 = vmatprep.subr.bf16.mxu0 0
  %677 = vmatpush2.bf16.xpose.msra.mxu0 0
  %678 = vmatprep.subr.bf16.mxu0 0
  %679 = vmatpush2.bf16.xpose.msra.mxu0 0
  %680 = vmatprep.subr.bf16.mxu0 0
  %681 = vmatpush2.bf16.xpose.msra.mxu0 0
  %682 = vmatprep.subr.bf16.mxu0 0
  %683 = vmatpush2.bf16.xpose.msra.mxu0 0
  %684 = vmatprep.mubr.bf16.mxu0 0
  %685 = vmatmul.mubr.bf16.gmra.mxu0 %v608
  %v686 = vpop.f32.mrf.mxu0
  %v687 = vadd.f32 %v268, %v686
  %v688 = vpop.f32.mrf.mxu0
  %v689 = vpop.f32.mrf.mxu0
  %v690 = vadd.f32 %v269, %v689
  %v691 = vpop.f32.mrf.mxu0
  %692 = vmatprep.mubr.bf16.mxu0 0
  %693 = vmatmul.mubr.bf16.gmra.mxu0 %v611
  %v694 = vpop.f32.mrf.mxu0
  %v695 = vadd.f32 %v270, %v694
  %v696 = vpop.f32.mrf.mxu0
  %v697 = vpop.f32.mrf.mxu0
  %v698 = vadd.f32 %v271, %v697
  %v699 = vpop.f32.mrf.mxu0
  %700 = vmatprep.mubr.bf16.mxu0 0
  %701 = vmatmul.mubr.bf16.gmra.mxu0 %v614
  %v702 = vpop.f32.mrf.mxu0
  %v703 = vadd.f32 %v272, %v702
  %v704 = vpop.f32.mrf.mxu0
  %v705 = vpop.f32.mrf.mxu0
  %v706 = vadd.f32 %v273, %v705
  %v707 = vpop.f32.mrf.mxu0
  %708 = vmatprep.mubr.bf16.mxu0 0
  %709 = vmatmul.mubr.bf16.gmra.mxu0 %v617
  %v710 = vpop.f32.mrf.mxu0
  %v711 = vadd.f32 %v274, %v710
  %v712 = vpop.f32.mrf.mxu0
  %v713 = vpop.f32.mrf.mxu0
  %v714 = vadd.f32 %v275, %v713
  %v715 = vpop.f32.mrf.mxu0
  %716 = vmatprep.mubr.bf16.mxu0 0
  %717 = vmatmul.mubr.bf16.gmra.mxu0 %v620
  %v718 = vpop.f32.mrf.mxu0
  %v719 = vadd.f32 %v276, %v718
  %v720 = vpop.f32.mrf.mxu0
  %v721 = vpop.f32.mrf.mxu0
  %v722 = vadd.f32 %v277, %v721
  %v723 = vpop.f32.mrf.mxu0
  %724 = vmatprep.mubr.bf16.mxu0 0
  %725 = vmatmul.mubr.bf16.gmra.mxu0 %v623
  %v726 = vpop.f32.mrf.mxu0
  %v727 = vadd.f32 %v278, %v726
  %v728 = vpop.f32.mrf.mxu0
  %v729 = vpop.f32.mrf.mxu0
  %v730 = vadd.f32 %v279, %v729
  %v731 = vpop.f32.mrf.mxu0
  %732 = vmatprep.mubr.bf16.mxu0 0
  %733 = vmatmul.mubr.bf16.gmra.mxu0 %v626
  %v734 = vpop.f32.mrf.mxu0
  %v735 = vadd.f32 %v280, %v734
  %v736 = vpop.f32.mrf.mxu0
  %v737 = vpop.f32.mrf.mxu0
  %v738 = vadd.f32 %v281, %v737
  %v739 = vpop.f32.mrf.mxu0
  %740 = vmatprep.mubr.bf16.mxu0 0
  %741 = vmatmul.mubr.bf16.gmra.mxu0 %v629
  %v742 = vpop.f32.mrf.mxu0
  %v743 = vadd.f32 %v282, %v742
  %v744 = vpop.f32.mrf.mxu0
  %v745 = vpop.f32.mrf.mxu0
  %v746 = vadd.f32 %v283, %v745
  %v747 = vpop.f32.mrf.mxu0
  %748 = vmatprep.mubr.bf16.mxu0 0
  %749 = vmatmul.mubr.bf16.gmra.mxu0 %v632
  %v750 = vpop.f32.mrf.mxu0
  %v751 = vadd.f32 %v284, %v750
  %v752 = vpop.f32.mrf.mxu0
  %v753 = vpop.f32.mrf.mxu0
  %v754 = vadd.f32 %v285, %v753
  %v755 = vpop.f32.mrf.mxu0
  %756 = vmatprep.mubr.bf16.mxu0 0
  %757 = vmatmul.mubr.bf16.gmra.mxu0 %v635
  %v758 = vpop.f32.mrf.mxu0
  %v759 = vadd.f32 %v286, %v758
  %v760 = vpop.f32.mrf.mxu0
  %v761 = vpop.f32.mrf.mxu0
  %v762 = vadd.f32 %v287, %v761
  %v763 = vpop.f32.mrf.mxu0
  %764 = vmatprep.mubr.bf16.mxu0 0
  %765 = vmatmul.mubr.bf16.gmra.mxu0 %v638
  %v766 = vpop.f32.mrf.mxu0
  %v767 = vadd.f32 %v288, %v766
  %v768 = vpop.f32.mrf.mxu0
  %v769 = vpop.f32.mrf.mxu0
  %v770 = vadd.f32 %v289, %v769
  %v771 = vpop.f32.mrf.mxu0
  %772 = vmatprep.mubr.bf16.mxu0 0
  %773 = vmatmul.mubr.bf16.gmra.mxu0 %v641
  %v774 = vpop.f32.mrf.mxu0
  %v775 = vadd.f32 %v290, %v774
  %v776 = vpop.f32.mrf.mxu0
  %v777 = vpop.f32.mrf.mxu0
  %v778 = vadd.f32 %v291, %v777
  %v779 = vpop.f32.mrf.mxu0
  %780 = vdwg.mxu0
  %vm781 = vcmask 392192
  %v782 = vsel %vm781, %v687, -inf
  %783 = vmax.xlane.f32.xlu0 %v782
  %v784 = vpop.xlane.xlu0 %783
  %v785 = vsel %vm781, %v690, -inf
  %786 = vmax.xlane.f32.xlu0 %v785
  %v787 = vpop.xlane.xlu0 %786
  %v788 = vsel %vm781, %v695, -inf
  %789 = vmax.xlane.f32.xlu0 %v788
  %v790 = vpop.xlane.xlu0 %789
  %v791 = vsel %vm781, %v698, -inf
  %792 = vmax.xlane.f32.xlu0 %v791
  %v793 = vpop.xlane.xlu0 %792
  %v794 = vsel %vm781, %v703, -inf
  %795 = vmax.xlane.f32.xlu0 %v794
  %v796 = vpop.xlane.xlu0 %795
  %v797 = vsel %vm781, %v706, -inf
  %798 = vmax.xlane.f32.xlu0 %v797
  %v799 = vpop.xlane.xlu0 %798
  %v800 = vsel %vm781, %v711, -inf
  %801 = vmax.xlane.f32.xlu0 %v800
  %v802 = vpop.xlane.xlu0 %801
  %v803 = vsel %vm781, %v714, -inf
  %804 = vmax.xlane.f32.xlu0 %v803
  %v805 = vpop.xlane.xlu0 %804
  %v806 = vsel %vm781, %v719, -inf
  %807 = vmax.xlane.f32.xlu0 %v806
  %v808 = vpop.xlane.xlu0 %807
  %v809 = vsel %vm781, %v722, -inf
  %810 = vmax.xlane.f32.xlu0 %v809
  %v811 = vpop.xlane.xlu0 %810
  %v812 = vsel %vm781, %v727, -inf
  %813 = vmax.xlane.f32.xlu0 %v812
  %v814 = vpop.xlane.xlu0 %813
  %v815 = vsel %vm781, %v730, -inf
  %816 = vmax.xlane.f32.xlu0 %v815
  %v817 = vpop.xlane.xlu0 %816
  %v818 = vsel %vm781, %v735, -inf
  %819 = vmax.xlane.f32.xlu0 %v818
  %v820 = vpop.xlane.xlu0 %819
  %v821 = vsel %vm781, %v738, -inf
  %822 = vmax.xlane.f32.xlu0 %v821
  %v823 = vpop.xlane.xlu0 %822
  %v824 = vsel %vm781, %v743, -inf
  %825 = vmax.xlane.f32.xlu0 %v824
  %v826 = vpop.xlane.xlu0 %825
  %v827 = vsel %vm781, %v746, -inf
  %828 = vmax.xlane.f32.xlu0 %v827
  %v829 = vpop.xlane.xlu0 %828
  %v830 = vsel %vm781, %v751, -inf
  %831 = vmax.xlane.f32.xlu0 %v830
  %v832 = vpop.xlane.xlu0 %831
  %v833 = vsel %vm781, %v754, -inf
  %834 = vmax.xlane.f32.xlu0 %v833
  %v835 = vpop.xlane.xlu0 %834
  %v836 = vsel %vm781, %v759, -inf
  %837 = vmax.xlane.f32.xlu0 %v836
  %v838 = vpop.xlane.xlu0 %837
  %v839 = vsel %vm781, %v762, -inf
  %840 = vmax.xlane.f32.xlu0 %v839
  %v841 = vpop.xlane.xlu0 %840
  %v842 = vsel %vm781, %v767, -inf
  %843 = vmax.xlane.f32.xlu0 %v842
  %v844 = vpop.xlane.xlu0 %843
  %v845 = vsel %vm781, %v770, -inf
  %846 = vmax.xlane.f32.xlu0 %v845
  %v847 = vpop.xlane.xlu0 %846
  %v848 = vsel %vm781, %v775, -inf
  %849 = vmax.xlane.f32.xlu0 %v848
  %v850 = vpop.xlane.xlu0 %849
  %v851 = vsel %vm781, %v778, -inf
  %852 = vmax.xlane.f32.xlu0 %v851
  %v853 = vpop.xlane.xlu0 %852
  %v854 = vsub.f32 %v687, %v784
  %v855 = vsub.f32 %v690, %v787
  %v856 = vsub.f32 %v695, %v790
  %v857 = vsub.f32 %v698, %v793
  %v858 = vsub.f32 %v703, %v796
  %v859 = vsub.f32 %v706, %v799
  %v860 = vsub.f32 %v711, %v802
  %v861 = vsub.f32 %v714, %v805
  %v862 = vsub.f32 %v719, %v808
  %v863 = vsub.f32 %v722, %v811
  %v864 = vsub.f32 %v727, %v814
  %v865 = vsub.f32 %v730, %v817
  %v866 = vsub.f32 %v735, %v820
  %v867 = vsub.f32 %v738, %v823
  %v868 = vsub.f32 %v743, %v826
  %v869 = vsub.f32 %v746, %v829
  %v870 = vsub.f32 %v751, %v832
  %v871 = vsub.f32 %v754, %v835
  %v872 = vsub.f32 %v759, %v838
  %v873 = vsub.f32 %v762, %v841
  %v874 = vsub.f32 %v767, %v844
  %v875 = vsub.f32 %v770, %v847
  %v876 = vsub.f32 %v775, %v850
  %v877 = vsub.f32 %v778, %v853
  %v878 = vmul.f32 %v854, 1.442695
  %v879 = vpow.pop %v878
  %v880 = vmul.f32 %v855, 1.442695
  %v881 = vpow.pop %v880
  %v882 = vmul.f32 %v856, 1.442695
  %v883 = vpow.pop %v882
  %v884 = vmul.f32 %v857, 1.442695
  %v885 = vpow.pop %v884
  %v886 = vmul.f32 %v858, 1.442695
  %v887 = vpow.pop %v886
  %v888 = vmul.f32 %v859, 1.442695
  %v889 = vpow.pop %v888
  %v890 = vmul.f32 %v860, 1.442695
  %v891 = vpow.pop %v890
  %v892 = vmul.f32 %v861, 1.442695
  %v893 = vpow.pop %v892
  %v894 = vmul.f32 %v862, 1.442695
  %v895 = vpow.pop %v894
  %v896 = vmul.f32 %v863, 1.442695
  %v897 = vpow.pop %v896
  %v898 = vmul.f32 %v864, 1.442695
  %v899 = vpow.pop %v898
  %v900 = vmul.f32 %v865, 1.442695
  %v901 = vpow.pop %v900
  %v902 = vmul.f32 %v866, 1.442695
  %v903 = vpow.pop %v902
  %v904 = vmul.f32 %v867, 1.442695
  %v905 = vpow.pop %v904
  %v906 = vmul.f32 %v868, 1.442695
  %v907 = vpow.pop %v906
  %v908 = vmul.f32 %v869, 1.442695
  %v909 = vpow.pop %v908
  %v910 = vmul.f32 %v870, 1.442695
  %v911 = vpow.pop %v910
  %v912 = vmul.f32 %v871, 1.442695
  %v913 = vpow.pop %v912
  %v914 = vmul.f32 %v872, 1.442695
  %v915 = vpow.pop %v914
  %v916 = vmul.f32 %v873, 1.442695
  %v917 = vpow.pop %v916
  %v918 = vmul.f32 %v874, 1.442695
  %v919 = vpow.pop %v918
  %v920 = vmul.f32 %v875, 1.442695
  %v921 = vpow.pop %v920
  %v922 = vmul.f32 %v876, 1.442695
  %v923 = vpow.pop %v922
  %v924 = vmul.f32 %v877, 1.442695
  %v925 = vpow.pop %v924
  %v926 = vsel %vm781, %v879, 0.0
  %927 = vadd.xlane.f32.xlu0 %v926
  %v928 = vpop.xlane.xlu0 %927
  %v929 = vsel %vm781, %v881, 0.0
  %930 = vadd.xlane.f32.xlu0 %v929
  %v931 = vpop.xlane.xlu0 %930
  %v932 = vsel %vm781, %v883, 0.0
  %933 = vadd.xlane.f32.xlu0 %v932
  %v934 = vpop.xlane.xlu0 %933
  %v935 = vsel %vm781, %v885, 0.0
  %936 = vadd.xlane.f32.xlu0 %v935
  %v937 = vpop.xlane.xlu0 %936
  %v938 = vsel %vm781, %v887, 0.0
  %939 = vadd.xlane.f32.xlu0 %v938
  %v940 = vpop.xlane.xlu0 %939
  %v941 = vsel %vm781, %v889, 0.0
  %942 = vadd.xlane.f32.xlu0 %v941
  %v943 = vpop.xlane.xlu0 %942
  %v944 = vsel %vm781, %v891, 0.0
  %945 = vadd.xlane.f32.xlu0 %v944
  %v946 = vpop.xlane.xlu0 %945
  %v947 = vsel %vm781, %v893, 0.0
  %948 = vadd.xlane.f32.xlu0 %v947
  %v949 = vpop.xlane.xlu0 %948
  %v950 = vsel %vm781, %v895, 0.0
  %951 = vadd.xlane.f32.xlu0 %v950
  %v952 = vpop.xlane.xlu0 %951
  %v953 = vsel %vm781, %v897, 0.0
  %954 = vadd.xlane.f32.xlu0 %v953
  %v955 = vpop.xlane.xlu0 %954
  %v956 = vsel %vm781, %v899, 0.0
  %957 = vadd.xlane.f32.xlu0 %v956
  %v958 = vpop.xlane.xlu0 %957
  %v959 = vsel %vm781, %v901, 0.0
  %960 = vadd.xlane.f32.xlu0 %v959
  %v961 = vpop.xlane.xlu0 %960
  %v962 = vsel %vm781, %v903, 0.0
  %963 = vadd.xlane.f32.xlu0 %v962
  %v964 = vpop.xlane.xlu0 %963
  %v965 = vsel %vm781, %v905, 0.0
  %966 = vadd.xlane.f32.xlu0 %v965
  %v967 = vpop.xlane.xlu0 %966
  %v968 = vsel %vm781, %v907, 0.0
  %969 = vadd.xlane.f32.xlu0 %v968
  %v970 = vpop.xlane.xlu0 %969
  %v971 = vsel %vm781, %v909, 0.0
  %972 = vadd.xlane.f32.xlu0 %v971
  %v973 = vpop.xlane.xlu0 %972
  %v974 = vsel %vm781, %v911, 0.0
  %975 = vadd.xlane.f32.xlu0 %v974
  %v976 = vpop.xlane.xlu0 %975
  %v977 = vsel %vm781, %v913, 0.0
  %978 = vadd.xlane.f32.xlu0 %v977
  %v979 = vpop.xlane.xlu0 %978
  %v980 = vsel %vm781, %v915, 0.0
  %981 = vadd.xlane.f32.xlu0 %v980
  %v982 = vpop.xlane.xlu0 %981
  %v983 = vsel %vm781, %v917, 0.0
  %984 = vadd.xlane.f32.xlu0 %v983
  %v985 = vpop.xlane.xlu0 %984
  %v986 = vsel %vm781, %v919, 0.0
  %987 = vadd.xlane.f32.xlu0 %v986
  %v988 = vpop.xlane.xlu0 %987
  %v989 = vsel %vm781, %v921, 0.0
  %990 = vadd.xlane.f32.xlu0 %v989
  %v991 = vpop.xlane.xlu0 %990
  %v992 = vsel %vm781, %v923, 0.0
  %993 = vadd.xlane.f32.xlu0 %v992
  %v994 = vpop.xlane.xlu0 %993
  %v995 = vsel %vm781, %v925, 0.0
  %996 = vadd.xlane.f32.xlu0 %v995
  %v997 = vpop.xlane.xlu0 %996
  %v998 = vrcp.pop %v928
  %v999 = vrcp.pop %v931
  %v1000 = vrcp.pop %v934
  %v1001 = vrcp.pop %v937
  %v1002 = vrcp.pop %v940
  %v1003 = vrcp.pop %v943
  %v1004 = vrcp.pop %v946
  %v1005 = vrcp.pop %v949
  %v1006 = vrcp.pop %v952
  %v1007 = vrcp.pop %v955
  %v1008 = vrcp.pop %v958
  %v1009 = vrcp.pop %v961
  %v1010 = vrcp.pop %v964
  %v1011 = vrcp.pop %v967
  %v1012 = vrcp.pop %v970
  %v1013 = vrcp.pop %v973
  %v1014 = vrcp.pop %v976
  %v1015 = vrcp.pop %v979
  %v1016 = vrcp.pop %v982
  %v1017 = vrcp.pop %v985
  %v1018 = vrcp.pop %v988
  %v1019 = vrcp.pop %v991
  %v1020 = vrcp.pop %v994
  %v1021 = vrcp.pop %v997
  %v1022 = vmul.f32 %v879, %v998
  %v1023 = vmul.f32 %v881, %v999
  %v1024 = vmul.f32 %v883, %v1000
  %v1025 = vmul.f32 %v885, %v1001
  %v1026 = vmul.f32 %v887, %v1002
  %v1027 = vmul.f32 %v889, %v1003
  %v1028 = vmul.f32 %v891, %v1004
  %v1029 = vmul.f32 %v893, %v1005
  %v1030 = vmul.f32 %v895, %v1006
  %v1031 = vmul.f32 %v897, %v1007
  %v1032 = vmul.f32 %v899, %v1008
  %v1033 = vmul.f32 %v901, %v1009
  %v1034 = vmul.f32 %v903, %v1010
  %v1035 = vmul.f32 %v905, %v1011
  %v1036 = vmul.f32 %v907, %v1012
  %v1037 = vmul.f32 %v909, %v1013
  %v1038 = vmul.f32 %v911, %v1014
  %v1039 = vmul.f32 %v913, %v1015
  %v1040 = vmul.f32 %v915, %v1016
  %v1041 = vmul.f32 %v917, %v1017
  %v1042 = vmul.f32 %v919, %v1018
  %v1043 = vmul.f32 %v921, %v1019
  %v1044 = vmul.f32 %v923, %v1020
  %v1045 = vmul.f32 %v925, %v1021
  %v1046 = vpack.c.bf16 %v1023, %v1022
  %v1047 = vpack.c.bf16 %v1025, %v1024
  %v1048 = vpack.c.bf16 %v1027, %v1026
  %v1049 = vpack.c.bf16 %v1029, %v1028
  %v1050 = vpack.c.bf16 %v1031, %v1030
  %v1051 = vpack.c.bf16 %v1033, %v1032
  %v1052 = vpack.c.bf16 %v1035, %v1034
  %v1053 = vpack.c.bf16 %v1037, %v1036
  %v1054 = vpack.c.bf16 %v1039, %v1038
  %v1055 = vpack.c.bf16 %v1041, %v1040
  %v1056 = vpack.c.bf16 %v1043, %v1042
  %v1057 = vpack.c.bf16 %v1045, %v1044
  %v1059 = vsel %vm781, %v1046, 0
  %v1062 = vsel %vm781, %v1047, 0
  %v1065 = vsel %vm781, %v1048, 0
  %v1068 = vsel %vm781, %v1049, 0
  %v1071 = vsel %vm781, %v1050, 0
  %v1074 = vsel %vm781, %v1051, 0
  %v1077 = vsel %vm781, %v1052, 0
  %v1080 = vsel %vm781, %v1053, 0
  %v1083 = vsel %vm781, %v1054, 0
  %v1086 = vsel %vm781, %v1055, 0
  %v1089 = vsel %vm781, %v1056, 0
  %v1092 = vsel %vm781, %v1057, 0
  %1094 = vmatprep.subr.bf16.mxu0 0
  %1095 = vmatpush1.bf16.msra.mxu0 0
  %1096 = vmatprep.subr.bf16.mxu0 0
  %1097 = vmatpush1.bf16.msra.mxu0 0
  %1098 = vmatprep.subr.bf16.mxu0 0
  %1099 = vmatpush1.bf16.msra.mxu0 0
  %1100 = vmatprep.subr.bf16.mxu0 0
  %1101 = vmatpush1.bf16.msra.mxu0 0
  %1102 = vmatprep.subr.bf16.mxu0 0
  %1103 = vmatpush1.bf16.msra.mxu0 0
  %1104 = vmatprep.subr.bf16.mxu0 0
  %1105 = vmatpush1.bf16.msra.mxu0 %v561
  %1106 = vmatprep.subr.bf16.mxu0 0
  %1107 = vmatpush1.bf16.msra.mxu0 %v560
  %1108 = vmatprep.subr.bf16.mxu0 0
  %1109 = vmatpush1.bf16.msra.mxu0 %v559
  %1110 = vmatprep.subr.bf16.mxu0 0
  %1111 = vmatpush2.bf16.msra.mxu0 0
  %1112 = vmatprep.subr.bf16.mxu0 0
  %1113 = vmatpush2.bf16.msra.mxu0 0
  %1114 = vmatprep.subr.bf16.mxu0 0
  %1115 = vmatpush2.bf16.msra.mxu0 0
  %1116 = vmatprep.subr.bf16.mxu0 0
  %1117 = vmatpush2.bf16.msra.mxu0 0
  %1118 = vmatprep.subr.bf16.mxu0 0
  %1119 = vmatpush2.bf16.msra.mxu0 0
  %1120 = vmatprep.subr.bf16.mxu0 0
  %1121 = vmatpush2.bf16.msra.mxu0 0
  %1122 = vmatprep.subr.bf16.mxu0 0
  %1123 = vmatpush2.bf16.msra.mxu0 0
  %1124 = vmatprep.subr.bf16.mxu0 0
  %1125 = vmatpush2.bf16.msra.mxu0 0
  %1126 = vmatprep.mubr.bf16.mxu0 0
  %1127 = vmatmul.mubr.bf16.gmra.mxu0 %v1059
  %v1128 = vpop.f32.mrf.mxu0
  %v1129 = vadd.f32 0.0, %v1128
  %v1130 = vpop.f32.mrf.mxu0
  %v1131 = vpop.f32.mrf.mxu0
  %v1132 = vadd.f32 0.0, %v1131
  %v1133 = vpop.f32.mrf.mxu0
  %1134 = vmatprep.mubr.bf16.mxu0 0
  %1135 = vmatmul.mubr.bf16.gmra.mxu0 %v1062
  %v1136 = vpop.f32.mrf.mxu0
  %v1137 = vadd.f32 0.0, %v1136
  %v1138 = vpop.f32.mrf.mxu0
  %v1139 = vpop.f32.mrf.mxu0
  %v1140 = vadd.f32 0.0, %v1139
  %v1141 = vpop.f32.mrf.mxu0
  %1142 = vmatprep.mubr.bf16.mxu0 0
  %1143 = vmatmul.mubr.bf16.gmra.mxu0 %v1065
  %v1144 = vpop.f32.mrf.mxu0
  %v1145 = vadd.f32 0.0, %v1144
  %v1146 = vpop.f32.mrf.mxu0
  %v1147 = vpop.f32.mrf.mxu0
  %v1148 = vadd.f32 0.0, %v1147
  %v1149 = vpop.f32.mrf.mxu0
  %1150 = vmatprep.mubr.bf16.mxu0 0
  %1151 = vmatmul.mubr.bf16.gmra.mxu0 %v1068
  %v1152 = vpop.f32.mrf.mxu0
  %v1153 = vadd.f32 0.0, %v1152
  %v1154 = vpop.f32.mrf.mxu0
  %v1155 = vpop.f32.mrf.mxu0
  %v1156 = vadd.f32 0.0, %v1155
  %v1157 = vpop.f32.mrf.mxu0
  %1158 = vmatprep.mubr.bf16.mxu0 0
  %1159 = vmatmul.mubr.bf16.gmra.mxu0 %v1071
  %v1160 = vpop.f32.mrf.mxu0
  %v1161 = vadd.f32 0.0, %v1160
  %v1162 = vpop.f32.mrf.mxu0
  %v1163 = vpop.f32.mrf.mxu0
  %v1164 = vadd.f32 0.0, %v1163
  %v1165 = vpop.f32.mrf.mxu0
  %1166 = vmatprep.mubr.bf16.mxu0 0
  %1167 = vmatmul.mubr.bf16.gmra.mxu0 %v1074
  %v1168 = vpop.f32.mrf.mxu0
  %v1169 = vadd.f32 0.0, %v1168
  %v1170 = vpop.f32.mrf.mxu0
  %v1171 = vpop.f32.mrf.mxu0
  %v1172 = vadd.f32 0.0, %v1171
  %v1173 = vpop.f32.mrf.mxu0
  %1174 = vmatprep.mubr.bf16.mxu0 0
  %1175 = vmatmul.mubr.bf16.gmra.mxu0 %v1077
  %v1176 = vpop.f32.mrf.mxu0
  %v1177 = vadd.f32 0.0, %v1176
  %v1178 = vpop.f32.mrf.mxu0
  %v1179 = vpop.f32.mrf.mxu0
  %v1180 = vadd.f32 0.0, %v1179
  %v1181 = vpop.f32.mrf.mxu0
  %1182 = vmatprep.mubr.bf16.mxu0 0
  %1183 = vmatmul.mubr.bf16.gmra.mxu0 %v1080
  %v1184 = vpop.f32.mrf.mxu0
  %v1185 = vadd.f32 0.0, %v1184
  %v1186 = vpop.f32.mrf.mxu0
  %v1187 = vpop.f32.mrf.mxu0
  %v1188 = vadd.f32 0.0, %v1187
  %v1189 = vpop.f32.mrf.mxu0
  %1190 = vmatprep.mubr.bf16.mxu0 0
  %1191 = vmatmul.mubr.bf16.gmra.mxu0 %v1083
  %v1192 = vpop.f32.mrf.mxu0
  %v1193 = vadd.f32 0.0, %v1192
  %v1194 = vpop.f32.mrf.mxu0
  %v1195 = vpop.f32.mrf.mxu0
  %v1196 = vadd.f32 0.0, %v1195
  %v1197 = vpop.f32.mrf.mxu0
  %1198 = vmatprep.mubr.bf16.mxu0 0
  %1199 = vmatmul.mubr.bf16.gmra.mxu0 %v1086
  %v1200 = vpop.f32.mrf.mxu0
  %v1201 = vadd.f32 0.0, %v1200
  %v1202 = vpop.f32.mrf.mxu0
  %v1203 = vpop.f32.mrf.mxu0
  %v1204 = vadd.f32 0.0, %v1203
  %v1205 = vpop.f32.mrf.mxu0
  %1206 = vmatprep.mubr.bf16.mxu0 0
  %1207 = vmatmul.mubr.bf16.gmra.mxu0 %v1089
  %v1208 = vpop.f32.mrf.mxu0
  %v1209 = vadd.f32 0.0, %v1208
  %v1210 = vpop.f32.mrf.mxu0
  %v1211 = vpop.f32.mrf.mxu0
  %v1212 = vadd.f32 0.0, %v1211
  %v1213 = vpop.f32.mrf.mxu0
  %1214 = vmatprep.mubr.bf16.mxu0 0
  %1215 = vmatmul.mubr.bf16.gmra.mxu0 %v1092
  %v1216 = vpop.f32.mrf.mxu0
  %v1217 = vadd.f32 0.0, %v1216
  %v1218 = vpop.f32.mrf.mxu0
  %v1219 = vpop.f32.mrf.mxu0
  %v1220 = vadd.f32 0.0, %v1219
  %v1221 = vpop.f32.mrf.mxu0
  %1222 = vdwg.mxu0
  %v1223 = vmul.f32 %v1129, %v292
  %v1224 = vmul.f32 %v1132, %v293
  %v1225 = vmul.f32 %v1137, %v294
  %v1226 = vmul.f32 %v1140, %v295
  %v1227 = vmul.f32 %v1145, %v296
  %v1228 = vmul.f32 %v1148, %v297
  %v1229 = vmul.f32 %v1153, %v298
  %v1230 = vmul.f32 %v1156, %v299
  %v1231 = vmul.f32 %v1161, %v300
  %v1232 = vmul.f32 %v1164, %v301
  %v1233 = vmul.f32 %v1169, %v302
  %v1234 = vmul.f32 %v1172, %v303
  %v1235 = vmul.f32 %v1177, %v304
  %v1236 = vmul.f32 %v1180, %v305
  %v1237 = vmul.f32 %v1185, %v306
  %v1238 = vmul.f32 %v1188, %v307
  %v1239 = vmul.f32 %v1193, %v308
  %v1240 = vmul.f32 %v1196, %v309
  %v1241 = vmul.f32 %v1201, %v310
  %v1242 = vmul.f32 %v1204, %v311
  %v1243 = vmul.f32 %v1209, %v312
  %v1244 = vmul.f32 %v1212, %v313
  %v1245 = vmul.f32 %v1217, %v314
  %v1246 = vmul.f32 %v1220, %v315
  %v1247 = vadd.f32 %v1223, %v1229
  %v1248 = vadd.f32 %v1224, %v1230
  %v1249 = vadd.f32 %v1225, %v1231
  %v1250 = vadd.f32 %v1226, %v1232
  %v1251 = vadd.f32 %v1227, %v1233
  %v1252 = vadd.f32 %v1228, %v1234
  %v1253 = vadd.f32 %v1247, %v1235
  %v1254 = vadd.f32 %v1248, %v1236
  %v1255 = vadd.f32 %v1249, %v1237
  %v1256 = vadd.f32 %v1250, %v1238
  %v1257 = vadd.f32 %v1251, %v1239
  %v1258 = vadd.f32 %v1252, %v1240
  %v1259 = vadd.f32 %v1253, %v1241
  %v1260 = vadd.f32 %v1254, %v1242
  %v1261 = vadd.f32 %v1255, %v1243
  %v1262 = vadd.f32 %v1256, %v1244
  %v1263 = vadd.f32 %v1257, %v1245
  %v1264 = vadd.f32 %v1258, %v1246
  %v1265 = vpack.c.bf16 %v1260, %v1259
  %v1266 = vpack.c.bf16 %v1262, %v1261
  %v1267 = vpack.c.bf16 %v1264, %v1263
  %v1268 = vld [vmem:[%s9] sm:$0xf]
  %v1269 = vld [vmem:[%s9 + $0x4] sm:$0xf]
  %v1270 = vld [vmem:[%s9 + $0x8] sm:$0xf]
  %v1271 = vld [vmem:[%s9 + $0xc] sm:$0xf]
  %v1272 = vld [vmem:[%s9 + $0x10] sm:$0xf]
  %v1273 = vld [vmem:[%s9 + $0x14] sm:$0xf]
  %v1274 = vld [vmem:[%s9 + $0x18] sm:$0xf]
  %v1275 = vld [vmem:[%s9 + $0x1c] sm:$0xf]
  %v1276 = vld [vmem:[%s10] sm:$0x1]
  %v1278 = vlaneseq
  %v1279 = vshrl.u32 %v1278, 7
  %v1280 = vsub.s32 0, %v1279
  %v1281 = vrot.slane %v1276, %v1280
  %v1291 = vunpack.c.l.b16 %v1268
  %v1292 = vunpack.c.l.b16 %v1269
  %v1293 = vunpack.c.l.b16 %v1270
  %v1294 = vunpack.c.l.b16 %v1271
  %v1295 = vunpack.c.l.b16 %v1272
  %v1296 = vunpack.c.l.b16 %v1273
  %v1297 = vunpack.c.l.b16 %v1274
  %v1298 = vunpack.c.l.b16 %v1275
  %v1299 = vpack.c.b16 %v1292, %v1291
  %v1300 = vpack.c.b16 %v1294, %v1293
  %v1301 = vpack.c.b16 %v1296, %v1295
  %v1302 = vpack.c.b16 %v1298, %v1297
  %v1308 = vsel %vm201, %v1265, 0
  %v1311 = vsel %vm201, %v1266, 0
  %v1314 = vsel %vm201, %v1267, 0
  %1316 = vmatprep.subr.bf16.mxu0 0
  %1317 = vmatpush1.bf16.msra.mxu0 0
  %1318 = vmatprep.subr.bf16.mxu0 0
  %1319 = vmatpush1.bf16.msra.mxu0 0
  %1320 = vmatprep.subr.bf16.mxu0 0
  %1321 = vmatpush1.bf16.msra.mxu0 0
  %1322 = vmatprep.subr.bf16.mxu0 0
  %1323 = vmatpush1.bf16.msra.mxu0 0
  %1324 = vmatprep.subr.bf16.mxu0 0
  %1325 = vmatpush1.bf16.msra.mxu0 %v1302
  %1326 = vmatprep.subr.bf16.mxu0 0
  %1327 = vmatpush1.bf16.msra.mxu0 %v1301
  %1328 = vmatprep.subr.bf16.mxu0 0
  %1329 = vmatpush1.bf16.msra.mxu0 %v1300
  %1330 = vmatprep.subr.bf16.mxu0 0
  %1331 = vmatpush1.bf16.msra.mxu0 %v1299
  %1332 = vmatprep.subr.bf16.mxu0 0
  %1333 = vmatpush2.bf16.msra.mxu0 0
  %1334 = vmatprep.subr.bf16.mxu0 0
  %1335 = vmatpush2.bf16.msra.mxu0 0
  %1336 = vmatprep.subr.bf16.mxu0 0
  %1337 = vmatpush2.bf16.msra.mxu0 0
  %1338 = vmatprep.subr.bf16.mxu0 0
  %1339 = vmatpush2.bf16.msra.mxu0 0
  %1340 = vmatprep.subr.bf16.mxu0 0
  %1341 = vmatpush2.bf16.msra.mxu0 0
  %1342 = vmatprep.subr.bf16.mxu0 0
  %1343 = vmatpush2.bf16.msra.mxu0 0
  %1344 = vmatprep.subr.bf16.mxu0 0
  %1345 = vmatpush2.bf16.msra.mxu0 0
  %1346 = vmatprep.subr.bf16.mxu0 0
  %1347 = vmatpush2.bf16.msra.mxu0 0
  %1348 = vmatprep.mubr.bf16.mxu0 0
  %1349 = vmatmul.mubr.bf16.gmra.mxu0 %v1308
  %v1350 = vpop.f32.mrf.mxu0
  %v1351 = vadd.f32 %v1281, %v1350
  %v1352 = vpop.f32.mrf.mxu0
  %v1353 = vpop.f32.mrf.mxu0
  %v1354 = vadd.f32 %v1281, %v1353
  %v1355 = vpop.f32.mrf.mxu0
  %1356 = vmatprep.mubr.bf16.mxu0 0
  %1357 = vmatmul.mubr.bf16.gmra.mxu0 %v1311
  %v1358 = vpop.f32.mrf.mxu0
  %v1359 = vadd.f32 %v1281, %v1358
  %v1360 = vpop.f32.mrf.mxu0
  %v1361 = vpop.f32.mrf.mxu0
  %v1362 = vadd.f32 %v1281, %v1361
  %v1363 = vpop.f32.mrf.mxu0
  %1364 = vmatprep.mubr.bf16.mxu0 0
  %1365 = vmatmul.mubr.bf16.gmra.mxu0 %v1314
  %v1366 = vpop.f32.mrf.mxu0
  %v1367 = vadd.f32 %v1281, %v1366
  %v1368 = vpop.f32.mrf.mxu0
  %v1369 = vpop.f32.mrf.mxu0
  %v1370 = vadd.f32 %v1281, %v1369
  %v1371 = vpop.f32.mrf.mxu0
  %1372 = vdwg.mxu0
  %v1373 = vadd.f32 %v246, %v1351
  %v1374 = vadd.f32 %v249, %v1354
  %v1375 = vadd.f32 %v254, %v1359
  %v1376 = vadd.f32 %v257, %v1362
  %v1377 = vadd.f32 %v262, %v1367
  %v1378 = vadd.f32 %v265, %v1370
  %v1379 = vld [vmem:[%s11] sm:$0x1]
  %v1380 = vld [vmem:[%s12] sm:$0x1]
  %v1381 = vsel %vm201, %v1373, 0.0
  %1382 = vadd.xlane.f32.xlu0 %v1381
  %v1383 = vpop.xlane.xlu0 %1382
  %v1384 = vsel %vm201, %v1374, 0.0
  %1385 = vadd.xlane.f32.xlu0 %v1384
  %v1386 = vpop.xlane.xlu0 %1385
  %v1387 = vsel %vm201, %v1375, 0.0
  %1388 = vadd.xlane.f32.xlu0 %v1387
  %v1389 = vpop.xlane.xlu0 %1388
  %v1390 = vsel %vm201, %v1376, 0.0
  %1391 = vadd.xlane.f32.xlu0 %v1390
  %v1392 = vpop.xlane.xlu0 %1391
  %v1393 = vsel %vm201, %v1377, 0.0
  %1394 = vadd.xlane.f32.xlu0 %v1393
  %v1395 = vpop.xlane.xlu0 %1394
  %v1396 = vsel %vm201, %v1378, 0.0
  %1397 = vadd.xlane.f32.xlu0 %v1396
  %v1398 = vpop.xlane.xlu0 %1397
  %v1399 = vmul.f32 %v1383, %v336
  %v1400 = vmul.f32 %v1386, %v336
  %v1401 = vmul.f32 %v1389, %v336
  %v1402 = vmul.f32 %v1392, %v336
  %v1403 = vmul.f32 %v1395, %v336
  %v1404 = vmul.f32 %v1398, %v336
  %v1405 = vsub.f32 %v1373, %v1399
  %v1406 = vsub.f32 %v1374, %v1400
  %v1407 = vsub.f32 %v1375, %v1401
  %v1408 = vsub.f32 %v1376, %v1402
  %v1409 = vsub.f32 %v1377, %v1403
  %v1410 = vsub.f32 %v1378, %v1404
  %v1411 = vmul.f32 %v1405, %v1405
  %v1412 = vmul.f32 %v1406, %v1406
  %v1413 = vmul.f32 %v1407, %v1407
  %v1414 = vmul.f32 %v1408, %v1408
  %v1415 = vmul.f32 %v1409, %v1409
  %v1416 = vmul.f32 %v1410, %v1410
  %v1417 = vsel %vm201, %v1411, 0.0
  %1418 = vadd.xlane.f32.xlu0 %v1417
  %v1419 = vpop.xlane.xlu0 %1418
  %v1420 = vsel %vm201, %v1412, 0.0
  %1421 = vadd.xlane.f32.xlu0 %v1420
  %v1422 = vpop.xlane.xlu0 %1421
  %v1423 = vsel %vm201, %v1413, 0.0
  %1424 = vadd.xlane.f32.xlu0 %v1423
  %v1425 = vpop.xlane.xlu0 %1424
  %v1426 = vsel %vm201, %v1414, 0.0
  %1427 = vadd.xlane.f32.xlu0 %v1426
  %v1428 = vpop.xlane.xlu0 %1427
  %v1429 = vsel %vm201, %v1415, 0.0
  %1430 = vadd.xlane.f32.xlu0 %v1429
  %v1431 = vpop.xlane.xlu0 %1430
  %v1432 = vsel %vm201, %v1416, 0.0
  %1433 = vadd.xlane.f32.xlu0 %v1432
  %v1434 = vpop.xlane.xlu0 %1433
  %v1435 = vmul.f32 %v1419, %v336
  %v1436 = vmul.f32 %v1422, %v336
  %v1437 = vmul.f32 %v1425, %v336
  %v1438 = vmul.f32 %v1428, %v336
  %v1439 = vmul.f32 %v1431, %v336
  %v1440 = vmul.f32 %v1434, %v336
  %v1441 = vadd.f32 %v1435, 1e-06
  %v1442 = vadd.f32 %v1436, 1e-06
  %v1443 = vadd.f32 %v1437, 1e-06
  %v1444 = vadd.f32 %v1438, 1e-06
  %v1445 = vadd.f32 %v1439, 1e-06
  %v1446 = vadd.f32 %v1440, 1e-06
  %v1447 = vrsqrt.pop %v1441
  %v1448 = vrsqrt.pop %v1442
  %v1449 = vrsqrt.pop %v1443
  %v1450 = vrsqrt.pop %v1444
  %v1451 = vrsqrt.pop %v1445
  %v1452 = vrsqrt.pop %v1446
  %v1453 = vmul.f32 %v1405, %v1447
  %v1454 = vmul.f32 %v1406, %v1448
  %v1455 = vmul.f32 %v1407, %v1449
  %v1456 = vmul.f32 %v1408, %v1450
  %v1457 = vmul.f32 %v1409, %v1451
  %v1458 = vmul.f32 %v1410, %v1452
  %v1460 = vlaneseq
  %v1461 = vshrl.u32 %v1460, 7
  %v1462 = vsub.s32 0, %v1461
  %v1463 = vrot.slane %v1379, %v1462
  %v1465 = vmul.f32 %v1453, %v1463
  %v1466 = vmul.f32 %v1454, %v1463
  %v1467 = vmul.f32 %v1455, %v1463
  %v1468 = vmul.f32 %v1456, %v1463
  %v1469 = vmul.f32 %v1457, %v1463
  %v1470 = vmul.f32 %v1458, %v1463
  %v1472 = vlaneseq
  %v1473 = vshrl.u32 %v1472, 7
  %v1474 = vsub.s32 0, %v1473
  %v1475 = vrot.slane %v1380, %v1474
  %v1477 = vadd.f32 %v1465, %v1475
  %v1478 = vadd.f32 %v1466, %v1475
  %v1479 = vadd.f32 %v1467, %v1475
  %v1480 = vadd.f32 %v1468, %v1475
  %v1481 = vadd.f32 %v1469, %v1475
  %v1482 = vadd.f32 %v1470, %v1475
  %v1483 = vpack.c.bf16 %v1478, %v1477
  %v1484 = vpack.c.bf16 %v1480, %v1479
  %v1485 = vpack.c.bf16 %v1482, %v1481
  %v1486 = vld [vmem:[%s13] sm:$0xff]
  %v1487 = vld [vmem:[%s13 + $0x8] sm:$0xff]
  %v1488 = vld [vmem:[%s13 + $0x10] sm:$0xff]
  %v1489 = vld [vmem:[%s13 + $0x18] sm:$0xff]
  %v1490 = vld [vmem:[%s13 + $0x20] sm:$0xff]
  %v1491 = vld [vmem:[%s13 + $0x28] sm:$0xff]
  %v1492 = vld [vmem:[%s13 + $0x30] sm:$0xff]
  %v1493 = vld [vmem:[%s13 + $0x38] sm:$0xff]
  %v1494 = vld [vmem:[%s14] sm:$0x3]
  %v1496 = vlaneseq
  %v1497 = vshrl.u32 %v1496, 7
  %v1498 = vsub.s32 0, %v1497
  %v1499 = vrot.slane %v1494, %v1498
  %v1500 = vlaneseq
  %v1501 = vshrl.u32 %v1500, 7
  %v1502 = vsub.s32 1, %v1501
  %v1503 = vrot.slane %v1494, %v1502
  %v1514 = vunpack.c.l.b16 %v1486
  %v1515 = vunpack.c.h.b16 %v1486
  %v1516 = vunpack.c.l.b16 %v1487
  %v1517 = vunpack.c.h.b16 %v1487
  %v1518 = vunpack.c.l.b16 %v1488
  %v1519 = vunpack.c.h.b16 %v1488
  %v1520 = vunpack.c.l.b16 %v1489
  %v1521 = vunpack.c.h.b16 %v1489
  %v1522 = vunpack.c.l.b16 %v1490
  %v1523 = vunpack.c.h.b16 %v1490
  %v1524 = vunpack.c.l.b16 %v1491
  %v1525 = vunpack.c.h.b16 %v1491
  %v1526 = vunpack.c.l.b16 %v1492
  %v1527 = vunpack.c.h.b16 %v1492
  %v1528 = vunpack.c.l.b16 %v1493
  %v1529 = vunpack.c.h.b16 %v1493
  %v1530 = vpack.c.b16 %v1516, %v1514
  %v1531 = vpack.c.b16 %v1517, %v1515
  %v1532 = vpack.c.b16 %v1520, %v1518
  %v1533 = vpack.c.b16 %v1521, %v1519
  %v1534 = vpack.c.b16 %v1524, %v1522
  %v1535 = vpack.c.b16 %v1525, %v1523
  %v1536 = vpack.c.b16 %v1528, %v1526
  %v1537 = vpack.c.b16 %v1529, %v1527
  %v1547 = vsel %vm201, %v1483, 0
  %v1550 = vsel %vm201, %v1484, 0
  %v1553 = vsel %vm201, %v1485, 0
  %1555 = vmatprep.subr.bf16.mxu0 0
  %1556 = vmatpush1.bf16.msra.mxu0 0
  %1557 = vmatprep.subr.bf16.mxu0 0
  %1558 = vmatpush1.bf16.msra.mxu0 0
  %1559 = vmatprep.subr.bf16.mxu0 0
  %1560 = vmatpush1.bf16.msra.mxu0 0
  %1561 = vmatprep.subr.bf16.mxu0 0
  %1562 = vmatpush1.bf16.msra.mxu0 0
  %1563 = vmatprep.subr.bf16.mxu0 %v1537
  %1564 = vmatpush1.bf16.msra.mxu0 %v1536
  %1565 = vmatprep.subr.bf16.mxu0 %v1535
  %1566 = vmatpush1.bf16.msra.mxu0 %v1534
  %1567 = vmatprep.subr.bf16.mxu0 %v1533
  %1568 = vmatpush1.bf16.msra.mxu0 %v1532
  %1569 = vmatprep.subr.bf16.mxu0 %v1531
  %1570 = vmatpush1.bf16.msra.mxu0 %v1530
  %1571 = vmatprep.subr.bf16.mxu0 0
  %1572 = vmatpush2.bf16.msra.mxu0 0
  %1573 = vmatprep.subr.bf16.mxu0 0
  %1574 = vmatpush2.bf16.msra.mxu0 0
  %1575 = vmatprep.subr.bf16.mxu0 0
  %1576 = vmatpush2.bf16.msra.mxu0 0
  %1577 = vmatprep.subr.bf16.mxu0 0
  %1578 = vmatpush2.bf16.msra.mxu0 0
  %1579 = vmatprep.subr.bf16.mxu0 0
  %1580 = vmatpush2.bf16.msra.mxu0 0
  %1581 = vmatprep.subr.bf16.mxu0 0
  %1582 = vmatpush2.bf16.msra.mxu0 0
  %1583 = vmatprep.subr.bf16.mxu0 0
  %1584 = vmatpush2.bf16.msra.mxu0 0
  %1585 = vmatprep.subr.bf16.mxu0 0
  %1586 = vmatpush2.bf16.msra.mxu0 0
  %1587 = vmatprep.mubr.bf16.mxu0 0
  %1588 = vmatmul.mubr.bf16.gmra.mxu0 %v1547
  %v1589 = vpop.f32.mrf.mxu0
  %v1590 = vadd.f32 %v1499, %v1589
  %v1591 = vpop.f32.mrf.mxu0
  %v1592 = vadd.f32 %v1503, %v1591
  %v1593 = vpop.f32.mrf.mxu0
  %v1594 = vadd.f32 %v1499, %v1593
  %v1595 = vpop.f32.mrf.mxu0
  %v1596 = vadd.f32 %v1503, %v1595
  %1597 = vmatprep.mubr.bf16.mxu0 0
  %1598 = vmatmul.mubr.bf16.gmra.mxu0 %v1550
  %v1599 = vpop.f32.mrf.mxu0
  %v1600 = vadd.f32 %v1499, %v1599
  %v1601 = vpop.f32.mrf.mxu0
  %v1602 = vadd.f32 %v1503, %v1601
  %v1603 = vpop.f32.mrf.mxu0
  %v1604 = vadd.f32 %v1499, %v1603
  %v1605 = vpop.f32.mrf.mxu0
  %v1606 = vadd.f32 %v1503, %v1605
  %1607 = vmatprep.mubr.bf16.mxu0 0
  %1608 = vmatmul.mubr.bf16.gmra.mxu0 %v1553
  %v1609 = vpop.f32.mrf.mxu0
  %v1610 = vadd.f32 %v1499, %v1609
  %v1611 = vpop.f32.mrf.mxu0
  %v1612 = vadd.f32 %v1503, %v1611
  %v1613 = vpop.f32.mrf.mxu0
  %v1614 = vadd.f32 %v1499, %v1613
  %v1615 = vpop.f32.mrf.mxu0
  %v1616 = vadd.f32 %v1503, %v1615
  %1617 = vdwg.mxu0
  %v1618 = vmul.f32 %v1590, 0.5
  %v1619 = vmul.f32 %v1592, 0.5
  %v1620 = vmul.f32 %v1594, 0.5
  %v1621 = vmul.f32 %v1596, 0.5
  %v1622 = vmul.f32 %v1600, 0.5
  %v1623 = vmul.f32 %v1602, 0.5
  %v1624 = vmul.f32 %v1604, 0.5
  %v1625 = vmul.f32 %v1606, 0.5
  %v1626 = vmul.f32 %v1610, 0.5
  %v1627 = vmul.f32 %v1612, 0.5
  %v1628 = vmul.f32 %v1614, 0.5
  %v1629 = vmul.f32 %v1616, 0.5
  %v1630 = vmul.f32 %v1590, 0.044715
  %v1631 = vmul.f32 %v1592, 0.044715
  %v1632 = vmul.f32 %v1594, 0.044715
  %v1633 = vmul.f32 %v1596, 0.044715
  %v1634 = vmul.f32 %v1600, 0.044715
  %v1635 = vmul.f32 %v1602, 0.044715
  %v1636 = vmul.f32 %v1604, 0.044715
  %v1637 = vmul.f32 %v1606, 0.044715
  %v1638 = vmul.f32 %v1610, 0.044715
  %v1639 = vmul.f32 %v1612, 0.044715
  %v1640 = vmul.f32 %v1614, 0.044715
  %v1641 = vmul.f32 %v1616, 0.044715
  %v1642 = vmul.f32 %v1630, %v1590
  %v1643 = vmul.f32 %v1631, %v1592
  %v1644 = vmul.f32 %v1632, %v1594
  %v1645 = vmul.f32 %v1633, %v1596
  %v1646 = vmul.f32 %v1634, %v1600
  %v1647 = vmul.f32 %v1635, %v1602
  %v1648 = vmul.f32 %v1636, %v1604
  %v1649 = vmul.f32 %v1637, %v1606
  %v1650 = vmul.f32 %v1638, %v1610
  %v1651 = vmul.f32 %v1639, %v1612
  %v1652 = vmul.f32 %v1640, %v1614
  %v1653 = vmul.f32 %v1641, %v1616
  %v1654 = vmul.f32 %v1642, %v1590
  %v1655 = vmul.f32 %v1643, %v1592
  %v1656 = vmul.f32 %v1644, %v1594
  %v1657 = vmul.f32 %v1645, %v1596
  %v1658 = vmul.f32 %v1646, %v1600
  %v1659 = vmul.f32 %v1647, %v1602
  %v1660 = vmul.f32 %v1648, %v1604
  %v1661 = vmul.f32 %v1649, %v1606
  %v1662 = vmul.f32 %v1650, %v1610
  %v1663 = vmul.f32 %v1651, %v1612
  %v1664 = vmul.f32 %v1652, %v1614
  %v1665 = vmul.f32 %v1653, %v1616
  %v1666 = vadd.f32 %v1590, %v1654
  %v1667 = vadd.f32 %v1592, %v1655
  %v1668 = vadd.f32 %v1594, %v1656
  %v1669 = vadd.f32 %v1596, %v1657
  %v1670 = vadd.f32 %v1600, %v1658
  %v1671 = vadd.f32 %v1602, %v1659
  %v1672 = vadd.f32 %v1604, %v1660
  %v1673 = vadd.f32 %v1606, %v1661
  %v1674 = vadd.f32 %v1610, %v1662
  %v1675 = vadd.f32 %v1612, %v1663
  %v1676 = vadd.f32 %v1614, %v1664
  %v1677 = vadd.f32 %v1616, %v1665
  %v1678 = vmul.f32 %v1666, 0.7978846
  %v1679 = vmul.f32 %v1667, 0.7978846
  %v1680 = vmul.f32 %v1668, 0.7978846
  %v1681 = vmul.f32 %v1669, 0.7978846
  %v1682 = vmul.f32 %v1670, 0.7978846
  %v1683 = vmul.f32 %v1671, 0.7978846
  %v1684 = vmul.f32 %v1672, 0.7978846
  %v1685 = vmul.f32 %v1673, 0.7978846
  %v1686 = vmul.f32 %v1674, 0.7978846
  %v1687 = vmul.f32 %v1675, 0.7978846
  %v1688 = vmul.f32 %v1676, 0.7978846
  %v1689 = vmul.f32 %v1677, 0.7978846
  %v1690 = vtanh.pop %v1678
  %v1691 = vtanh.pop %v1679
  %v1692 = vtanh.pop %v1680
  %v1693 = vtanh.pop %v1681
  %v1694 = vtanh.pop %v1682
  %v1695 = vtanh.pop %v1683
  %v1696 = vtanh.pop %v1684
  %v1697 = vtanh.pop %v1685
  %v1698 = vtanh.pop %v1686
  %v1699 = vtanh.pop %v1687
  %v1700 = vtanh.pop %v1688
  %v1701 = vtanh.pop %v1689
  %v1702 = vadd.f32 %v1690, 1.0
  %v1703 = vadd.f32 %v1691, 1.0
  %v1704 = vadd.f32 %v1692, 1.0
  %v1705 = vadd.f32 %v1693, 1.0
  %v1706 = vadd.f32 %v1694, 1.0
  %v1707 = vadd.f32 %v1695, 1.0
  %v1708 = vadd.f32 %v1696, 1.0
  %v1709 = vadd.f32 %v1697, 1.0
  %v1710 = vadd.f32 %v1698, 1.0
  %v1711 = vadd.f32 %v1699, 1.0
  %v1712 = vadd.f32 %v1700, 1.0
  %v1713 = vadd.f32 %v1701, 1.0
  %v1714 = vmul.f32 %v1618, %v1702
  %v1715 = vmul.f32 %v1619, %v1703
  %v1716 = vmul.f32 %v1620, %v1704
  %v1717 = vmul.f32 %v1621, %v1705
  %v1718 = vmul.f32 %v1622, %v1706
  %v1719 = vmul.f32 %v1623, %v1707
  %v1720 = vmul.f32 %v1624, %v1708
  %v1721 = vmul.f32 %v1625, %v1709
  %v1722 = vmul.f32 %v1626, %v1710
  %v1723 = vmul.f32 %v1627, %v1711
  %v1724 = vmul.f32 %v1628, %v1712
  %v1725 = vmul.f32 %v1629, %v1713
  %v1726 = vpack.c.bf16 %v1716, %v1714
  %v1727 = vpack.c.bf16 %v1717, %v1715
  %v1728 = vpack.c.bf16 %v1720, %v1718
  %v1729 = vpack.c.bf16 %v1721, %v1719
  %v1730 = vpack.c.bf16 %v1724, %v1722
  %v1731 = vpack.c.bf16 %v1725, %v1723
  %v1732 = vld [vmem:[%s15] sm:$0xf]
  %v1733 = vld [vmem:[%s15 + $0x4] sm:$0xf]
  %v1734 = vld [vmem:[%s15 + $0x8] sm:$0xf]
  %v1735 = vld [vmem:[%s15 + $0xc] sm:$0xf]
  %v1736 = vld [vmem:[%s15 + $0x10] sm:$0xf]
  %v1737 = vld [vmem:[%s15 + $0x14] sm:$0xf]
  %v1738 = vld [vmem:[%s15 + $0x18] sm:$0xf]
  %v1739 = vld [vmem:[%s15 + $0x1c] sm:$0xf]
  %v1740 = vld [vmem:[%s15 + $0x20] sm:$0xf]
  %v1741 = vld [vmem:[%s15 + $0x24] sm:$0xf]
  %v1742 = vld [vmem:[%s15 + $0x28] sm:$0xf]
  %v1743 = vld [vmem:[%s15 + $0x2c] sm:$0xf]
  %v1744 = vld [vmem:[%s15 + $0x30] sm:$0xf]
  %v1745 = vld [vmem:[%s15 + $0x34] sm:$0xf]
  %v1746 = vld [vmem:[%s15 + $0x38] sm:$0xf]
  %v1747 = vld [vmem:[%s15 + $0x3c] sm:$0xf]
  %v1748 = vld [vmem:[%s15 + $0x40] sm:$0xf]
  %v1749 = vld [vmem:[%s15 + $0x44] sm:$0xf]
  %v1750 = vld [vmem:[%s15 + $0x48] sm:$0xf]
  %v1751 = vld [vmem:[%s15 + $0x4c] sm:$0xf]
  %v1752 = vld [vmem:[%s15 + $0x50] sm:$0xf]
  %v1753 = vld [vmem:[%s15 + $0x54] sm:$0xf]
  %v1754 = vld [vmem:[%s15 + $0x58] sm:$0xf]
  %v1755 = vld [vmem:[%s15 + $0x5c] sm:$0xf]
  %v1756 = vld [vmem:[%s15 + $0x60] sm:$0xf]
  %v1757 = vld [vmem:[%s15 + $0x64] sm:$0xf]
  %v1758 = vld [vmem:[%s15 + $0x68] sm:$0xf]
  %v1759 = vld [vmem:[%s15 + $0x6c] sm:$0xf]
  %v1760 = vld [vmem:[%s15 + $0x70] sm:$0xf]
  %v1761 = vld [vmem:[%s15 + $0x74] sm:$0xf]
  %v1762 = vld [vmem:[%s15 + $0x78] sm:$0xf]
  %v1763 = vld [vmem:[%s15 + $0x7c] sm:$0xf]
  %v1764 = vld [vmem:[%s16] sm:$0x1]
  %v1766 = vlaneseq
  %v1767 = vshrl.u32 %v1766, 7
  %v1768 = vsub.s32 0, %v1767
  %v1769 = vrot.slane %v1764, %v1768
  %v1803 = vunpack.c.l.b16 %v1732
  %v1804 = vunpack.c.l.b16 %v1733
  %v1805 = vunpack.c.l.b16 %v1734
  %v1806 = vunpack.c.l.b16 %v1735
  %v1807 = vunpack.c.l.b16 %v1736
  %v1808 = vunpack.c.l.b16 %v1737
  %v1809 = vunpack.c.l.b16 %v1738
  %v1810 = vunpack.c.l.b16 %v1739
  %v1811 = vunpack.c.l.b16 %v1740
  %v1812 = vunpack.c.l.b16 %v1741
  %v1813 = vunpack.c.l.b16 %v1742
  %v1814 = vunpack.c.l.b16 %v1743
  %v1815 = vunpack.c.l.b16 %v1744
  %v1816 = vunpack.c.l.b16 %v1745
  %v1817 = vunpack.c.l.b16 %v1746
  %v1818 = vunpack.c.l.b16 %v1747
  %v1819 = vunpack.c.l.b16 %v1748
  %v1820 = vunpack.c.l.b16 %v1749
  %v1821 = vunpack.c.l.b16 %v1750
  %v1822 = vunpack.c.l.b16 %v1751
  %v1823 = vunpack.c.l.b16 %v1752
  %v1824 = vunpack.c.l.b16 %v1753
  %v1825 = vunpack.c.l.b16 %v1754
  %v1826 = vunpack.c.l.b16 %v1755
  %v1827 = vunpack.c.l.b16 %v1756
  %v1828 = vunpack.c.l.b16 %v1757
  %v1829 = vunpack.c.l.b16 %v1758
  %v1830 = vunpack.c.l.b16 %v1759
  %v1831 = vunpack.c.l.b16 %v1760
  %v1832 = vunpack.c.l.b16 %v1761
  %v1833 = vunpack.c.l.b16 %v1762
  %v1834 = vunpack.c.l.b16 %v1763
  %v1835 = vpack.c.b16 %v1804, %v1803
  %v1836 = vpack.c.b16 %v1806, %v1805
  %v1837 = vpack.c.b16 %v1808, %v1807
  %v1838 = vpack.c.b16 %v1810, %v1809
  %v1839 = vpack.c.b16 %v1812, %v1811
  %v1840 = vpack.c.b16 %v1814, %v1813
  %v1841 = vpack.c.b16 %v1816, %v1815
  %v1842 = vpack.c.b16 %v1818, %v1817
  %v1843 = vpack.c.b16 %v1820, %v1819
  %v1844 = vpack.c.b16 %v1822, %v1821
  %v1845 = vpack.c.b16 %v1824, %v1823
  %v1846 = vpack.c.b16 %v1826, %v1825
  %v1847 = vpack.c.b16 %v1828, %v1827
  %v1848 = vpack.c.b16 %v1830, %v1829
  %v1849 = vpack.c.b16 %v1832, %v1831
  %v1850 = vpack.c.b16 %v1834, %v1833
  %1867 = vmatprep.subr.bf16.mxu0 0
  %1868 = vmatpush1.bf16.msra.mxu0 %v1842
  %1869 = vmatprep.subr.bf16.mxu0 0
  %1870 = vmatpush1.bf16.msra.mxu0 %v1841
  %1871 = vmatprep.subr.bf16.mxu0 0
  %1872 = vmatpush1.bf16.msra.mxu0 %v1840
  %1873 = vmatprep.subr.bf16.mxu0 0
  %1874 = vmatpush1.bf16.msra.mxu0 %v1839
  %1875 = vmatprep.subr.bf16.mxu0 0
  %1876 = vmatpush1.bf16.msra.mxu0 %v1838
  %1877 = vmatprep.subr.bf16.mxu0 0
  %1878 = vmatpush1.bf16.msra.mxu0 %v1837
  %1879 = vmatprep.subr.bf16.mxu0 0
  %1880 = vmatpush1.bf16.msra.mxu0 %v1836
  %1881 = vmatprep.subr.bf16.mxu0 0
  %1882 = vmatpush1.bf16.msra.mxu0 %v1835
  %1883 = vmatprep.subr.bf16.mxu0 0
  %1884 = vmatpush2.bf16.msra.mxu0 %v1850
  %1885 = vmatprep.subr.bf16.mxu0 0
  %1886 = vmatpush2.bf16.msra.mxu0 %v1849
  %1887 = vmatprep.subr.bf16.mxu0 0
  %1888 = vmatpush2.bf16.msra.mxu0 %v1848
  %1889 = vmatprep.subr.bf16.mxu0 0
  %1890 = vmatpush2.bf16.msra.mxu0 %v1847
  %1891 = vmatprep.subr.bf16.mxu0 0
  %1892 = vmatpush2.bf16.msra.mxu0 %v1846
  %1893 = vmatprep.subr.bf16.mxu0 0
  %1894 = vmatpush2.bf16.msra.mxu0 %v1845
  %1895 = vmatprep.subr.bf16.mxu0 0
  %1896 = vmatpush2.bf16.msra.mxu0 %v1844
  %1897 = vmatprep.subr.bf16.mxu0 0
  %1898 = vmatpush2.bf16.msra.mxu0 %v1843
  %1899 = vmatprep.mubr.bf16.mxu0 %v1727
  %1900 = vmatmul.mubr.bf16.gmra.mxu0 %v1726
  %v1901 = vpop.f32.mrf.mxu0
  %v1902 = vadd.f32 %v1769, %v1901
  %v1903 = vpop.f32.mrf.mxu0
  %v1904 = vpop.f32.mrf.mxu0
  %v1905 = vadd.f32 %v1769, %v1904
  %v1906 = vpop.f32.mrf.mxu0
  %1907 = vmatprep.mubr.bf16.mxu0 %v1729
  %1908 = vmatmul.mubr.bf16.gmra.mxu0 %v1728
  %v1909 = vpop.f32.mrf.mxu0
  %v1910 = vadd.f32 %v1769, %v1909
  %v1911 = vpop.f32.mrf.mxu0
  %v1912 = vpop.f32.mrf.mxu0
  %v1913 = vadd.f32 %v1769, %v1912
  %v1914 = vpop.f32.mrf.mxu0
  %1915 = vmatprep.mubr.bf16.mxu0 %v1731
  %1916 = vmatmul.mubr.bf16.gmra.mxu0 %v1730
  %v1917 = vpop.f32.mrf.mxu0
  %v1918 = vadd.f32 %v1769, %v1917
  %v1919 = vpop.f32.mrf.mxu0
  %v1920 = vpop.f32.mrf.mxu0
  %v1921 = vadd.f32 %v1769, %v1920
  %v1922 = vpop.f32.mrf.mxu0
  %1923 = vdwg.mxu0
  %v1924 = vadd.f32 %v1373, %v1902
  %v1925 = vadd.f32 %v1374, %v1905
  %v1926 = vadd.f32 %v1375, %v1910
  %v1927 = vadd.f32 %v1376, %v1913
  %v1928 = vadd.f32 %v1377, %v1918
  %v1929 = vadd.f32 %v1378, %v1921
  %s1930 = scalar_lea.vmem %s5, 1
  %v1931 = vld [vmem:[%s1930] sm:$0x1]
  %s1932 = scalar_lea.vmem %s6, 1
  %v1933 = vld [vmem:[%s1932] sm:$0x1]
  %v1934 = vsel %vm201, %v1924, 0.0
  %1935 = vadd.xlane.f32.xlu0 %v1934
  %v1936 = vpop.xlane.xlu0 %1935
  %v1937 = vsel %vm201, %v1925, 0.0
  %1938 = vadd.xlane.f32.xlu0 %v1937
  %v1939 = vpop.xlane.xlu0 %1938
  %v1940 = vsel %vm201, %v1926, 0.0
  %1941 = vadd.xlane.f32.xlu0 %v1940
  %v1942 = vpop.xlane.xlu0 %1941
  %v1943 = vsel %vm201, %v1927, 0.0
  %1944 = vadd.xlane.f32.xlu0 %v1943
  %v1945 = vpop.xlane.xlu0 %1944
  %v1946 = vsel %vm201, %v1928, 0.0
  %1947 = vadd.xlane.f32.xlu0 %v1946
  %v1948 = vpop.xlane.xlu0 %1947
  %v1949 = vsel %vm201, %v1929, 0.0
  %1950 = vadd.xlane.f32.xlu0 %v1949
  %v1951 = vpop.xlane.xlu0 %1950
  %v1952 = vmul.f32 %v1936, %v336
  %v1953 = vmul.f32 %v1939, %v336
  %v1954 = vmul.f32 %v1942, %v336
  %v1955 = vmul.f32 %v1945, %v336
  %v1956 = vmul.f32 %v1948, %v336
  %v1957 = vmul.f32 %v1951, %v336
  %v1958 = vsub.f32 %v1924, %v1952
  %v1959 = vsub.f32 %v1925, %v1953
  %v1960 = vsub.f32 %v1926, %v1954
  %v1961 = vsub.f32 %v1927, %v1955
  %v1962 = vsub.f32 %v1928, %v1956
  %v1963 = vsub.f32 %v1929, %v1957
  %v1964 = vmul.f32 %v1958, %v1958
  %v1965 = vmul.f32 %v1959, %v1959
  %v1966 = vmul.f32 %v1960, %v1960
  %v1967 = vmul.f32 %v1961, %v1961
  %v1968 = vmul.f32 %v1962, %v1962
  %v1969 = vmul.f32 %v1963, %v1963
  %v1970 = vsel %vm201, %v1964, 0.0
  %1971 = vadd.xlane.f32.xlu0 %v1970
  %v1972 = vpop.xlane.xlu0 %1971
  %v1973 = vsel %vm201, %v1965, 0.0
  %1974 = vadd.xlane.f32.xlu0 %v1973
  %v1975 = vpop.xlane.xlu0 %1974
  %v1976 = vsel %vm201, %v1966, 0.0
  %1977 = vadd.xlane.f32.xlu0 %v1976
  %v1978 = vpop.xlane.xlu0 %1977
  %v1979 = vsel %vm201, %v1967, 0.0
  %1980 = vadd.xlane.f32.xlu0 %v1979
  %v1981 = vpop.xlane.xlu0 %1980
  %v1982 = vsel %vm201, %v1968, 0.0
  %1983 = vadd.xlane.f32.xlu0 %v1982
  %v1984 = vpop.xlane.xlu0 %1983
  %v1985 = vsel %vm201, %v1969, 0.0
  %1986 = vadd.xlane.f32.xlu0 %v1985
  %v1987 = vpop.xlane.xlu0 %1986
  %v1988 = vmul.f32 %v1972, %v336
  %v1989 = vmul.f32 %v1975, %v336
  %v1990 = vmul.f32 %v1978, %v336
  %v1991 = vmul.f32 %v1981, %v336
  %v1992 = vmul.f32 %v1984, %v336
  %v1993 = vmul.f32 %v1987, %v336
  %v1994 = vadd.f32 %v1988, 1e-06
  %v1995 = vadd.f32 %v1989, 1e-06
  %v1996 = vadd.f32 %v1990, 1e-06
  %v1997 = vadd.f32 %v1991, 1e-06
  %v1998 = vadd.f32 %v1992, 1e-06
  %v1999 = vadd.f32 %v1993, 1e-06
  %v2000 = vrsqrt.pop %v1994
  %v2001 = vrsqrt.pop %v1995
  %v2002 = vrsqrt.pop %v1996
  %v2003 = vrsqrt.pop %v1997
  %v2004 = vrsqrt.pop %v1998
  %v2005 = vrsqrt.pop %v1999
  %v2006 = vmul.f32 %v1958, %v2000
  %v2007 = vmul.f32 %v1959, %v2001
  %v2008 = vmul.f32 %v1960, %v2002
  %v2009 = vmul.f32 %v1961, %v2003
  %v2010 = vmul.f32 %v1962, %v2004
  %v2011 = vmul.f32 %v1963, %v2005
  %v2013 = vlaneseq
  %v2014 = vshrl.u32 %v2013, 7
  %v2015 = vsub.s32 0, %v2014
  %v2016 = vrot.slane %v1931, %v2015
  %v2018 = vmul.f32 %v2006, %v2016
  %v2019 = vmul.f32 %v2007, %v2016
  %v2020 = vmul.f32 %v2008, %v2016
  %v2021 = vmul.f32 %v2009, %v2016
  %v2022 = vmul.f32 %v2010, %v2016
  %v2023 = vmul.f32 %v2011, %v2016
  %v2025 = vlaneseq
  %v2026 = vshrl.u32 %v2025, 7
  %v2027 = vsub.s32 0, %v2026
  %v2028 = vrot.slane %v1933, %v2027
  %v2030 = vadd.f32 %v2018, %v2028
  %v2031 = vadd.f32 %v2019, %v2028
  %v2032 = vadd.f32 %v2020, %v2028
  %v2033 = vadd.f32 %v2021, %v2028
  %v2034 = vadd.f32 %v2022, %v2028
  %v2035 = vadd.f32 %v2023, %v2028
  %v2036 = vpack.c.bf16 %v2031, %v2030
  %v2037 = vpack.c.bf16 %v2033, %v2032
  %v2038 = vpack.c.bf16 %v2035, %v2034
  %s2039 = scalar_lea.vmem %s7, 64
  %v2040 = vld [vmem:[%s2039] sm:$0xff]
  %v2041 = vld [vmem:[%s2039 + $0x8] sm:$0xff]
  %v2042 = vld [vmem:[%s2039 + $0x10] sm:$0xff]
  %v2043 = vld [vmem:[%s2039 + $0x18] sm:$0xff]
  %v2044 = vld [vmem:[%s2039 + $0x20] sm:$0xff]
  %v2045 = vld [vmem:[%s2039 + $0x28] sm:$0xff]
  %v2046 = vld [vmem:[%s2039 + $0x30] sm:$0xff]
  %v2047 = vld [vmem:[%s2039 + $0x38] sm:$0xff]
  %s2048 = scalar_lea.vmem %s8, 2
  %v2049 = vld [vmem:[%s2048] sm:$0x3]
  %v2051 = vlaneseq
  %v2052 = vshrl.u32 %v2051, 7
  %v2053 = vsub.s32 0, %v2052
  %v2054 = vrot.slane %v2049, %v2053
  %v2055 = vlaneseq
  %v2056 = vshrl.u32 %v2055, 7
  %v2057 = vsub.s32 1, %v2056
  %v2058 = vrot.slane %v2049, %v2057
  %v2069 = vunpack.c.l.b16 %v2040
  %v2070 = vunpack.c.h.b16 %v2040
  %v2071 = vunpack.c.l.b16 %v2041
  %v2072 = vunpack.c.h.b16 %v2041
  %v2073 = vunpack.c.l.b16 %v2042
  %v2074 = vunpack.c.h.b16 %v2042
  %v2075 = vunpack.c.l.b16 %v2043
  %v2076 = vunpack.c.h.b16 %v2043
  %v2077 = vunpack.c.l.b16 %v2044
  %v2078 = vunpack.c.h.b16 %v2044
  %v2079 = vunpack.c.l.b16 %v2045
  %v2080 = vunpack.c.h.b16 %v2045
  %v2081 = vunpack.c.l.b16 %v2046
  %v2082 = vunpack.c.h.b16 %v2046
  %v2083 = vunpack.c.l.b16 %v2047
  %v2084 = vunpack.c.h.b16 %v2047
  %v2085 = vpack.c.b16 %v2071, %v2069
  %v2086 = vpack.c.b16 %v2072, %v2070
  %v2087 = vpack.c.b16 %v2075, %v2073
  %v2088 = vpack.c.b16 %v2076, %v2074
  %v2089 = vpack.c.b16 %v2079, %v2077
  %v2090 = vpack.c.b16 %v2080, %v2078
  %v2091 = vpack.c.b16 %v2083, %v2081
  %v2092 = vpack.c.b16 %v2084, %v2082
  %v2102 = vsel %vm201, %v2036, 0
  %v2105 = vsel %vm201, %v2037, 0
  %v2108 = vsel %vm201, %v2038, 0
  %2110 = vmatprep.subr.bf16.mxu0 0
  %2111 = vmatpush1.bf16.msra.mxu0 0
  %2112 = vmatprep.subr.bf16.mxu0 0
  %2113 = vmatpush1.bf16.msra.mxu0 0
  %2114 = vmatprep.subr.bf16.mxu0 0
  %2115 = vmatpush1.bf16.msra.mxu0 0
  %2116 = vmatprep.subr.bf16.mxu0 0
  %2117 = vmatpush1.bf16.msra.mxu0 0
  %2118 = vmatprep.subr.bf16.mxu0 %v2092
  %2119 = vmatpush1.bf16.msra.mxu0 %v2091
  %2120 = vmatprep.subr.bf16.mxu0 %v2090
  %2121 = vmatpush1.bf16.msra.mxu0 %v2089
  %2122 = vmatprep.subr.bf16.mxu0 %v2088
  %2123 = vmatpush1.bf16.msra.mxu0 %v2087
  %2124 = vmatprep.subr.bf16.mxu0 %v2086
  %2125 = vmatpush1.bf16.msra.mxu0 %v2085
  %2126 = vmatprep.subr.bf16.mxu0 0
  %2127 = vmatpush2.bf16.msra.mxu0 0
  %2128 = vmatprep.subr.bf16.mxu0 0
  %2129 = vmatpush2.bf16.msra.mxu0 0
  %2130 = vmatprep.subr.bf16.mxu0 0
  %2131 = vmatpush2.bf16.msra.mxu0 0
  %2132 = vmatprep.subr.bf16.mxu0 0
  %2133 = vmatpush2.bf16.msra.mxu0 0
  %2134 = vmatprep.subr.bf16.mxu0 0
  %2135 = vmatpush2.bf16.msra.mxu0 0
  %2136 = vmatprep.subr.bf16.mxu0 0
  %2137 = vmatpush2.bf16.msra.mxu0 0
  %2138 = vmatprep.subr.bf16.mxu0 0
  %2139 = vmatpush2.bf16.msra.mxu0 0
  %2140 = vmatprep.subr.bf16.mxu0 0
  %2141 = vmatpush2.bf16.msra.mxu0 0
  %2142 = vmatprep.mubr.bf16.mxu0 0
  %2143 = vmatmul.mubr.bf16.gmra.mxu0 %v2102
  %v2144 = vpop.f32.mrf.mxu0
  %v2145 = vadd.f32 %v2054, %v2144
  %v2146 = vpop.f32.mrf.mxu0
  %v2147 = vadd.f32 %v2058, %v2146
  %v2148 = vpop.f32.mrf.mxu0
  %v2149 = vadd.f32 %v2054, %v2148
  %v2150 = vpop.f32.mrf.mxu0
  %v2151 = vadd.f32 %v2058, %v2150
  %2152 = vmatprep.mubr.bf16.mxu0 0
  %2153 = vmatmul.mubr.bf16.gmra.mxu0 %v2105
  %v2154 = vpop.f32.mrf.mxu0
  %v2155 = vadd.f32 %v2054, %v2154
  %v2156 = vpop.f32.mrf.mxu0
  %v2157 = vadd.f32 %v2058, %v2156
  %v2158 = vpop.f32.mrf.mxu0
  %v2159 = vadd.f32 %v2054, %v2158
  %v2160 = vpop.f32.mrf.mxu0
  %v2161 = vadd.f32 %v2058, %v2160
  %2162 = vmatprep.mubr.bf16.mxu0 0
  %2163 = vmatmul.mubr.bf16.gmra.mxu0 %v2108
  %v2164 = vpop.f32.mrf.mxu0
  %v2165 = vadd.f32 %v2054, %v2164
  %v2166 = vpop.f32.mrf.mxu0
  %v2167 = vadd.f32 %v2058, %v2166
  %v2168 = vpop.f32.mrf.mxu0
  %v2169 = vadd.f32 %v2054, %v2168
  %v2170 = vpop.f32.mrf.mxu0
  %v2171 = vadd.f32 %v2058, %v2170
  %2172 = vdwg.mxu0
  %v2173 = vpack.c.bf16 %v2149, %v2145
  %v2174 = vpack.c.bf16 %v2159, %v2155
  %v2175 = vpack.c.bf16 %v2169, %v2165
  %v2176 = vpack.c.bf16 %v2151, %v2147
  %v2177 = vpack.c.bf16 %v2161, %v2157
  %v2178 = vpack.c.bf16 %v2171, %v2167
  %v2179 = vmul.f32 %v2145, %v292
  %v2180 = vmul.f32 %v2149, %v293
  %v2181 = vmul.f32 %v2155, %v294
  %v2182 = vmul.f32 %v2159, %v295
  %v2183 = vmul.f32 %v2165, %v296
  %v2184 = vmul.f32 %v2169, %v297
  %v2185 = vmul.f32 %v2145, %v298
  %v2186 = vmul.f32 %v2149, %v299
  %v2187 = vmul.f32 %v2155, %v300
  %v2188 = vmul.f32 %v2159, %v301
  %v2189 = vmul.f32 %v2165, %v302
  %v2190 = vmul.f32 %v2169, %v303
  %v2191 = vmul.f32 %v2145, %v304
  %v2192 = vmul.f32 %v2149, %v305
  %v2193 = vmul.f32 %v2155, %v306
  %v2194 = vmul.f32 %v2159, %v307
  %v2195 = vmul.f32 %v2165, %v308
  %v2196 = vmul.f32 %v2169, %v309
  %v2197 = vmul.f32 %v2145, %v310
  %v2198 = vmul.f32 %v2149, %v311
  %v2199 = vmul.f32 %v2155, %v312
  %v2200 = vmul.f32 %v2159, %v313
  %v2201 = vmul.f32 %v2165, %v314
  %v2202 = vmul.f32 %v2169, %v315
  %v2203 = vpack.c.bf16 %v2180, %v2179
  %v2204 = vpack.c.bf16 %v2182, %v2181
  %v2205 = vpack.c.bf16 %v2184, %v2183
  %v2206 = vpack.c.bf16 %v2186, %v2185
  %v2207 = vpack.c.bf16 %v2188, %v2187
  %v2208 = vpack.c.bf16 %v2190, %v2189
  %v2209 = vpack.c.bf16 %v2192, %v2191
  %v2210 = vpack.c.bf16 %v2194, %v2193
  %v2211 = vpack.c.bf16 %v2196, %v2195
  %v2212 = vpack.c.bf16 %v2198, %v2197
  %v2213 = vpack.c.bf16 %v2200, %v2199
  %v2214 = vpack.c.bf16 %v2202, %v2201
  %2218 = vrot.lane.b32.xlu0 %v2173, 64
  %v2219 = vpop.permute.xlu0 %2218
  %2220 = vrot.lane.b32.xlu0 %v2174, 64
  %v2221 = vpop.permute.xlu0 %2220
  %2222 = vrot.lane.b32.xlu0 %v2175, 64
  %v2223 = vpop.permute.xlu0 %2222
  %v2225 = vsel %vm201, %v2203, 0
  %v2228 = vsel %vm201, %v2204, 0
  %v2231 = vsel %vm201, %v2205, 0
  %v2234 = vsel %vm201, %v2206, 0
  %v2237 = vsel %vm201, %v2207, 0
  %v2240 = vsel %vm201, %v2208, 0
  %v2243 = vsel %vm201, %v2209, 0
  %v2246 = vsel %vm201, %v2210, 0
  %v2249 = vsel %vm201, %v2211, 0
  %v2252 = vsel %vm201, %v2212, 0
  %v2255 = vsel %vm201, %v2213, 0
  %v2258 = vsel %vm201, %v2214, 0
  %v2261 = vsel %vm201, %v2219, 0
  %v2264 = vsel %vm201, %v2221, 0
  %v2267 = vsel %vm201, %v2223, 0
  %2269 = vmatprep.subr.bf16.mxu0 0
  %2270 = vmatpush1.bf16.xpose.msra.mxu0 0
  %2271 = vmatprep.subr.bf16.mxu0 0
  %2272 = vmatpush1.bf16.xpose.msra.mxu0 0
  %2273 = vmatprep.subr.bf16.mxu0 0
  %2274 = vmatpush1.bf16.xpose.msra.mxu0 0
  %2275 = vmatprep.subr.bf16.mxu0 0
  %2276 = vmatpush1.bf16.xpose.msra.mxu0 0
  %2277 = vmatprep.subr.bf16.mxu0 0
  %2278 = vmatpush1.bf16.xpose.msra.mxu0 0
  %2279 = vmatprep.subr.bf16.mxu0 0
  %2280 = vmatpush1.bf16.xpose.msra.mxu0 %v2267
  %2281 = vmatprep.subr.bf16.mxu0 0
  %2282 = vmatpush1.bf16.xpose.msra.mxu0 %v2264
  %2283 = vmatprep.subr.bf16.mxu0 0
  %2284 = vmatpush1.bf16.xpose.msra.mxu0 %v2261
  %2285 = vmatprep.subr.bf16.mxu0 0
  %2286 = vmatpush2.bf16.xpose.msra.mxu0 0
  %2287 = vmatprep.subr.bf16.mxu0 0
  %2288 = vmatpush2.bf16.xpose.msra.mxu0 0
  %2289 = vmatprep.subr.bf16.mxu0 0
  %2290 = vmatpush2.bf16.xpose.msra.mxu0 0
  %2291 = vmatprep.subr.bf16.mxu0 0
  %2292 = vmatpush2.bf16.xpose.msra.mxu0 0
  %2293 = vmatprep.subr.bf16.mxu0 0
  %2294 = vmatpush2.bf16.xpose.msra.mxu0 0
  %2295 = vmatprep.subr.bf16.mxu0 0
  %2296 = vmatpush2.bf16.xpose.msra.mxu0 0
  %2297 = vmatprep.subr.bf16.mxu0 0
  %2298 = vmatpush2.bf16.xpose.msra.mxu0 0
  %2299 = vmatprep.subr.bf16.mxu0 0
  %2300 = vmatpush2.bf16.xpose.msra.mxu0 0
  %2301 = vmatprep.mubr.bf16.mxu0 0
  %2302 = vmatmul.mubr.bf16.gmra.mxu0 %v2225
  %v2303 = vpop.f32.mrf.mxu0
  %v2304 = vadd.f32 %v268, %v2303
  %v2305 = vpop.f32.mrf.mxu0
  %v2306 = vpop.f32.mrf.mxu0
  %v2307 = vadd.f32 %v269, %v2306
  %v2308 = vpop.f32.mrf.mxu0
  %2309 = vmatprep.mubr.bf16.mxu0 0
  %2310 = vmatmul.mubr.bf16.gmra.mxu0 %v2228
  %v2311 = vpop.f32.mrf.mxu0
  %v2312 = vadd.f32 %v270, %v2311
  %v2313 = vpop.f32.mrf.mxu0
  %v2314 = vpop.f32.mrf.mxu0
  %v2315 = vadd.f32 %v271, %v2314
  %v2316 = vpop.f32.mrf.mxu0
  %2317 = vmatprep.mubr.bf16.mxu0 0
  %2318 = vmatmul.mubr.bf16.gmra.mxu0 %v2231
  %v2319 = vpop.f32.mrf.mxu0
  %v2320 = vadd.f32 %v272, %v2319
  %v2321 = vpop.f32.mrf.mxu0
  %v2322 = vpop.f32.mrf.mxu0
  %v2323 = vadd.f32 %v273, %v2322
  %v2324 = vpop.f32.mrf.mxu0
  %2325 = vmatprep.mubr.bf16.mxu0 0
  %2326 = vmatmul.mubr.bf16.gmra.mxu0 %v2234
  %v2327 = vpop.f32.mrf.mxu0
  %v2328 = vadd.f32 %v274, %v2327
  %v2329 = vpop.f32.mrf.mxu0
  %v2330 = vpop.f32.mrf.mxu0
  %v2331 = vadd.f32 %v275, %v2330
  %v2332 = vpop.f32.mrf.mxu0
  %2333 = vmatprep.mubr.bf16.mxu0 0
  %2334 = vmatmul.mubr.bf16.gmra.mxu0 %v2237
  %v2335 = vpop.f32.mrf.mxu0
  %v2336 = vadd.f32 %v276, %v2335
  %v2337 = vpop.f32.mrf.mxu0
  %v2338 = vpop.f32.mrf.mxu0
  %v2339 = vadd.f32 %v277, %v2338
  %v2340 = vpop.f32.mrf.mxu0
  %2341 = vmatprep.mubr.bf16.mxu0 0
  %2342 = vmatmul.mubr.bf16.gmra.mxu0 %v2240
  %v2343 = vpop.f32.mrf.mxu0
  %v2344 = vadd.f32 %v278, %v2343
  %v2345 = vpop.f32.mrf.mxu0
  %v2346 = vpop.f32.mrf.mxu0
  %v2347 = vadd.f32 %v279, %v2346
  %v2348 = vpop.f32.mrf.mxu0
  %2349 = vmatprep.mubr.bf16.mxu0 0
  %2350 = vmatmul.mubr.bf16.gmra.mxu0 %v2243
  %v2351 = vpop.f32.mrf.mxu0
  %v2352 = vadd.f32 %v280, %v2351
  %v2353 = vpop.f32.mrf.mxu0
  %v2354 = vpop.f32.mrf.mxu0
  %v2355 = vadd.f32 %v281, %v2354
  %v2356 = vpop.f32.mrf.mxu0
  %2357 = vmatprep.mubr.bf16.mxu0 0
  %2358 = vmatmul.mubr.bf16.gmra.mxu0 %v2246
  %v2359 = vpop.f32.mrf.mxu0
  %v2360 = vadd.f32 %v282, %v2359
  %v2361 = vpop.f32.mrf.mxu0
  %v2362 = vpop.f32.mrf.mxu0
  %v2363 = vadd.f32 %v283, %v2362
  %v2364 = vpop.f32.mrf.mxu0
  %2365 = vmatprep.mubr.bf16.mxu0 0
  %2366 = vmatmul.mubr.bf16.gmra.mxu0 %v2249
  %v2367 = vpop.f32.mrf.mxu0
  %v2368 = vadd.f32 %v284, %v2367
  %v2369 = vpop.f32.mrf.mxu0
  %v2370 = vpop.f32.mrf.mxu0
  %v2371 = vadd.f32 %v285, %v2370
  %v2372 = vpop.f32.mrf.mxu0
  %2373 = vmatprep.mubr.bf16.mxu0 0
  %2374 = vmatmul.mubr.bf16.gmra.mxu0 %v2252
  %v2375 = vpop.f32.mrf.mxu0
  %v2376 = vadd.f32 %v286, %v2375
  %v2377 = vpop.f32.mrf.mxu0
  %v2378 = vpop.f32.mrf.mxu0
  %v2379 = vadd.f32 %v287, %v2378
  %v2380 = vpop.f32.mrf.mxu0
  %2381 = vmatprep.mubr.bf16.mxu0 0
  %2382 = vmatmul.mubr.bf16.gmra.mxu0 %v2255
  %v2383 = vpop.f32.mrf.mxu0
  %v2384 = vadd.f32 %v288, %v2383
  %v2385 = vpop.f32.mrf.mxu0
  %v2386 = vpop.f32.mrf.mxu0
  %v2387 = vadd.f32 %v289, %v2386
  %v2388 = vpop.f32.mrf.mxu0
  %2389 = vmatprep.mubr.bf16.mxu0 0
  %2390 = vmatmul.mubr.bf16.gmra.mxu0 %v2258
  %v2391 = vpop.f32.mrf.mxu0
  %v2392 = vadd.f32 %v290, %v2391
  %v2393 = vpop.f32.mrf.mxu0
  %v2394 = vpop.f32.mrf.mxu0
  %v2395 = vadd.f32 %v291, %v2394
  %v2396 = vpop.f32.mrf.mxu0
  %2397 = vdwg.mxu0
  %v2398 = vsel %vm781, %v2304, -inf
  %2399 = vmax.xlane.f32.xlu0 %v2398
  %v2400 = vpop.xlane.xlu0 %2399
  %v2401 = vsel %vm781, %v2307, -inf
  %2402 = vmax.xlane.f32.xlu0 %v2401
  %v2403 = vpop.xlane.xlu0 %2402
  %v2404 = vsel %vm781, %v2312, -inf
  %2405 = vmax.xlane.f32.xlu0 %v2404
  %v2406 = vpop.xlane.xlu0 %2405
  %v2407 = vsel %vm781, %v2315, -inf
  %2408 = vmax.xlane.f32.xlu0 %v2407
  %v2409 = vpop.xlane.xlu0 %2408
  %v2410 = vsel %vm781, %v2320, -inf
  %2411 = vmax.xlane.f32.xlu0 %v2410
  %v2412 = vpop.xlane.xlu0 %2411
  %v2413 = vsel %vm781, %v2323, -inf
  %2414 = vmax.xlane.f32.xlu0 %v2413
  %v2415 = vpop.xlane.xlu0 %2414
  %v2416 = vsel %vm781, %v2328, -inf
  %2417 = vmax.xlane.f32.xlu0 %v2416
  %v2418 = vpop.xlane.xlu0 %2417
  %v2419 = vsel %vm781, %v2331, -inf
  %2420 = vmax.xlane.f32.xlu0 %v2419
  %v2421 = vpop.xlane.xlu0 %2420
  %v2422 = vsel %vm781, %v2336, -inf
  %2423 = vmax.xlane.f32.xlu0 %v2422
  %v2424 = vpop.xlane.xlu0 %2423
  %v2425 = vsel %vm781, %v2339, -inf
  %2426 = vmax.xlane.f32.xlu0 %v2425
  %v2427 = vpop.xlane.xlu0 %2426
  %v2428 = vsel %vm781, %v2344, -inf
  %2429 = vmax.xlane.f32.xlu0 %v2428
  %v2430 = vpop.xlane.xlu0 %2429
  %v2431 = vsel %vm781, %v2347, -inf
  %2432 = vmax.xlane.f32.xlu0 %v2431
  %v2433 = vpop.xlane.xlu0 %2432
  %v2434 = vsel %vm781, %v2352, -inf
  %2435 = vmax.xlane.f32.xlu0 %v2434
  %v2436 = vpop.xlane.xlu0 %2435
  %v2437 = vsel %vm781, %v2355, -inf
  %2438 = vmax.xlane.f32.xlu0 %v2437
  %v2439 = vpop.xlane.xlu0 %2438
  %v2440 = vsel %vm781, %v2360, -inf
  %2441 = vmax.xlane.f32.xlu0 %v2440
  %v2442 = vpop.xlane.xlu0 %2441
  %v2443 = vsel %vm781, %v2363, -inf
  %2444 = vmax.xlane.f32.xlu0 %v2443
  %v2445 = vpop.xlane.xlu0 %2444
  %v2446 = vsel %vm781, %v2368, -inf
  %2447 = vmax.xlane.f32.xlu0 %v2446
  %v2448 = vpop.xlane.xlu0 %2447
  %v2449 = vsel %vm781, %v2371, -inf
  %2450 = vmax.xlane.f32.xlu0 %v2449
  %v2451 = vpop.xlane.xlu0 %2450
  %v2452 = vsel %vm781, %v2376, -inf
  %2453 = vmax.xlane.f32.xlu0 %v2452
  %v2454 = vpop.xlane.xlu0 %2453
  %v2455 = vsel %vm781, %v2379, -inf
  %2456 = vmax.xlane.f32.xlu0 %v2455
  %v2457 = vpop.xlane.xlu0 %2456
  %v2458 = vsel %vm781, %v2384, -inf
  %2459 = vmax.xlane.f32.xlu0 %v2458
  %v2460 = vpop.xlane.xlu0 %2459
  %v2461 = vsel %vm781, %v2387, -inf
  %2462 = vmax.xlane.f32.xlu0 %v2461
  %v2463 = vpop.xlane.xlu0 %2462
  %v2464 = vsel %vm781, %v2392, -inf
  %2465 = vmax.xlane.f32.xlu0 %v2464
  %v2466 = vpop.xlane.xlu0 %2465
  %v2467 = vsel %vm781, %v2395, -inf
  %2468 = vmax.xlane.f32.xlu0 %v2467
  %v2469 = vpop.xlane.xlu0 %2468
  %v2470 = vsub.f32 %v2304, %v2400
  %v2471 = vsub.f32 %v2307, %v2403
  %v2472 = vsub.f32 %v2312, %v2406
  %v2473 = vsub.f32 %v2315, %v2409
  %v2474 = vsub.f32 %v2320, %v2412
  %v2475 = vsub.f32 %v2323, %v2415
  %v2476 = vsub.f32 %v2328, %v2418
  %v2477 = vsub.f32 %v2331, %v2421
  %v2478 = vsub.f32 %v2336, %v2424
  %v2479 = vsub.f32 %v2339, %v2427
  %v2480 = vsub.f32 %v2344, %v2430
  %v2481 = vsub.f32 %v2347, %v2433
  %v2482 = vsub.f32 %v2352, %v2436
  %v2483 = vsub.f32 %v2355, %v2439
  %v2484 = vsub.f32 %v2360, %v2442
  %v2485 = vsub.f32 %v2363, %v2445
  %v2486 = vsub.f32 %v2368, %v2448
  %v2487 = vsub.f32 %v2371, %v2451
  %v2488 = vsub.f32 %v2376, %v2454
  %v2489 = vsub.f32 %v2379, %v2457
  %v2490 = vsub.f32 %v2384, %v2460
  %v2491 = vsub.f32 %v2387, %v2463
  %v2492 = vsub.f32 %v2392, %v2466
  %v2493 = vsub.f32 %v2395, %v2469
  %v2494 = vmul.f32 %v2470, 1.442695
  %v2495 = vpow.pop %v2494
  %v2496 = vmul.f32 %v2471, 1.442695
  %v2497 = vpow.pop %v2496
  %v2498 = vmul.f32 %v2472, 1.442695
  %v2499 = vpow.pop %v2498
  %v2500 = vmul.f32 %v2473, 1.442695
  %v2501 = vpow.pop %v2500
  %v2502 = vmul.f32 %v2474, 1.442695
  %v2503 = vpow.pop %v2502
  %v2504 = vmul.f32 %v2475, 1.442695
  %v2505 = vpow.pop %v2504
  %v2506 = vmul.f32 %v2476, 1.442695
  %v2507 = vpow.pop %v2506
  %v2508 = vmul.f32 %v2477, 1.442695
  %v2509 = vpow.pop %v2508
  %v2510 = vmul.f32 %v2478, 1.442695
  %v2511 = vpow.pop %v2510
  %v2512 = vmul.f32 %v2479, 1.442695
  %v2513 = vpow.pop %v2512
  %v2514 = vmul.f32 %v2480, 1.442695
  %v2515 = vpow.pop %v2514
  %v2516 = vmul.f32 %v2481, 1.442695
  %v2517 = vpow.pop %v2516
  %v2518 = vmul.f32 %v2482, 1.442695
  %v2519 = vpow.pop %v2518
  %v2520 = vmul.f32 %v2483, 1.442695
  %v2521 = vpow.pop %v2520
  %v2522 = vmul.f32 %v2484, 1.442695
  %v2523 = vpow.pop %v2522
  %v2524 = vmul.f32 %v2485, 1.442695
  %v2525 = vpow.pop %v2524
  %v2526 = vmul.f32 %v2486, 1.442695
  %v2527 = vpow.pop %v2526
  %v2528 = vmul.f32 %v2487, 1.442695
  %v2529 = vpow.pop %v2528
  %v2530 = vmul.f32 %v2488, 1.442695
  %v2531 = vpow.pop %v2530
  %v2532 = vmul.f32 %v2489, 1.442695
  %v2533 = vpow.pop %v2532
  %v2534 = vmul.f32 %v2490, 1.442695
  %v2535 = vpow.pop %v2534
  %v2536 = vmul.f32 %v2491, 1.442695
  %v2537 = vpow.pop %v2536
  %v2538 = vmul.f32 %v2492, 1.442695
  %v2539 = vpow.pop %v2538
  %v2540 = vmul.f32 %v2493, 1.442695
  %v2541 = vpow.pop %v2540
  %v2542 = vsel %vm781, %v2495, 0.0
  %2543 = vadd.xlane.f32.xlu0 %v2542
  %v2544 = vpop.xlane.xlu0 %2543
  %v2545 = vsel %vm781, %v2497, 0.0
  %2546 = vadd.xlane.f32.xlu0 %v2545
  %v2547 = vpop.xlane.xlu0 %2546
  %v2548 = vsel %vm781, %v2499, 0.0
  %2549 = vadd.xlane.f32.xlu0 %v2548
  %v2550 = vpop.xlane.xlu0 %2549
  %v2551 = vsel %vm781, %v2501, 0.0
  %2552 = vadd.xlane.f32.xlu0 %v2551
  %v2553 = vpop.xlane.xlu0 %2552
  %v2554 = vsel %vm781, %v2503, 0.0
  %2555 = vadd.xlane.f32.xlu0 %v2554
  %v2556 = vpop.xlane.xlu0 %2555
  %v2557 = vsel %vm781, %v2505, 0.0
  %2558 = vadd.xlane.f32.xlu0 %v2557
  %v2559 = vpop.xlane.xlu0 %2558
  %v2560 = vsel %vm781, %v2507, 0.0
  %2561 = vadd.xlane.f32.xlu0 %v2560
  %v2562 = vpop.xlane.xlu0 %2561
  %v2563 = vsel %vm781, %v2509, 0.0
  %2564 = vadd.xlane.f32.xlu0 %v2563
  %v2565 = vpop.xlane.xlu0 %2564
  %v2566 = vsel %vm781, %v2511, 0.0
  %2567 = vadd.xlane.f32.xlu0 %v2566
  %v2568 = vpop.xlane.xlu0 %2567
  %v2569 = vsel %vm781, %v2513, 0.0
  %2570 = vadd.xlane.f32.xlu0 %v2569
  %v2571 = vpop.xlane.xlu0 %2570
  %v2572 = vsel %vm781, %v2515, 0.0
  %2573 = vadd.xlane.f32.xlu0 %v2572
  %v2574 = vpop.xlane.xlu0 %2573
  %v2575 = vsel %vm781, %v2517, 0.0
  %2576 = vadd.xlane.f32.xlu0 %v2575
  %v2577 = vpop.xlane.xlu0 %2576
  %v2578 = vsel %vm781, %v2519, 0.0
  %2579 = vadd.xlane.f32.xlu0 %v2578
  %v2580 = vpop.xlane.xlu0 %2579
  %v2581 = vsel %vm781, %v2521, 0.0
  %2582 = vadd.xlane.f32.xlu0 %v2581
  %v2583 = vpop.xlane.xlu0 %2582
  %v2584 = vsel %vm781, %v2523, 0.0
  %2585 = vadd.xlane.f32.xlu0 %v2584
  %v2586 = vpop.xlane.xlu0 %2585
  %v2587 = vsel %vm781, %v2525, 0.0
  %2588 = vadd.xlane.f32.xlu0 %v2587
  %v2589 = vpop.xlane.xlu0 %2588
  %v2590 = vsel %vm781, %v2527, 0.0
  %2591 = vadd.xlane.f32.xlu0 %v2590
  %v2592 = vpop.xlane.xlu0 %2591
  %v2593 = vsel %vm781, %v2529, 0.0
  %2594 = vadd.xlane.f32.xlu0 %v2593
  %v2595 = vpop.xlane.xlu0 %2594
  %v2596 = vsel %vm781, %v2531, 0.0
  %2597 = vadd.xlane.f32.xlu0 %v2596
  %v2598 = vpop.xlane.xlu0 %2597
  %v2599 = vsel %vm781, %v2533, 0.0
  %2600 = vadd.xlane.f32.xlu0 %v2599
  %v2601 = vpop.xlane.xlu0 %2600
  %v2602 = vsel %vm781, %v2535, 0.0
  %2603 = vadd.xlane.f32.xlu0 %v2602
  %v2604 = vpop.xlane.xlu0 %2603
  %v2605 = vsel %vm781, %v2537, 0.0
  %2606 = vadd.xlane.f32.xlu0 %v2605
  %v2607 = vpop.xlane.xlu0 %2606
  %v2608 = vsel %vm781, %v2539, 0.0
  %2609 = vadd.xlane.f32.xlu0 %v2608
  %v2610 = vpop.xlane.xlu0 %2609
  %v2611 = vsel %vm781, %v2541, 0.0
  %2612 = vadd.xlane.f32.xlu0 %v2611
  %v2613 = vpop.xlane.xlu0 %2612
  %v2614 = vrcp.pop %v2544
  %v2615 = vrcp.pop %v2547
  %v2616 = vrcp.pop %v2550
  %v2617 = vrcp.pop %v2553
  %v2618 = vrcp.pop %v2556
  %v2619 = vrcp.pop %v2559
  %v2620 = vrcp.pop %v2562
  %v2621 = vrcp.pop %v2565
  %v2622 = vrcp.pop %v2568
  %v2623 = vrcp.pop %v2571
  %v2624 = vrcp.pop %v2574
  %v2625 = vrcp.pop %v2577
  %v2626 = vrcp.pop %v2580
  %v2627 = vrcp.pop %v2583
  %v2628 = vrcp.pop %v2586
  %v2629 = vrcp.pop %v2589
  %v2630 = vrcp.pop %v2592
  %v2631 = vrcp.pop %v2595
  %v2632 = vrcp.pop %v2598
  %v2633 = vrcp.pop %v2601
  %v2634 = vrcp.pop %v2604
  %v2635 = vrcp.pop %v2607
  %v2636 = vrcp.pop %v2610
  %v2637 = vrcp.pop %v2613
  %v2638 = vmul.f32 %v2495, %v2614
  %v2639 = vmul.f32 %v2497, %v2615
  %v2640 = vmul.f32 %v2499, %v2616
  %v2641 = vmul.f32 %v2501, %v2617
  %v2642 = vmul.f32 %v2503, %v2618
  %v2643 = vmul.f32 %v2505, %v2619
  %v2644 = vmul.f32 %v2507, %v2620
  %v2645 = vmul.f32 %v2509, %v2621
  %v2646 = vmul.f32 %v2511, %v2622
  %v2647 = vmul.f32 %v2513, %v2623
  %v2648 = vmul.f32 %v2515, %v2624
  %v2649 = vmul.f32 %v2517, %v2625
  %v2650 = vmul.f32 %v2519, %v2626
  %v2651 = vmul.f32 %v2521, %v2627
  %v2652 = vmul.f32 %v2523, %v2628
  %v2653 = vmul.f32 %v2525, %v2629
  %v2654 = vmul.f32 %v2527, %v2630
  %v2655 = vmul.f32 %v2529, %v2631
  %v2656 = vmul.f32 %v2531, %v2632
  %v2657 = vmul.f32 %v2533, %v2633
  %v2658 = vmul.f32 %v2535, %v2634
  %v2659 = vmul.f32 %v2537, %v2635
  %v2660 = vmul.f32 %v2539, %v2636
  %v2661 = vmul.f32 %v2541, %v2637
  %v2662 = vpack.c.bf16 %v2639, %v2638
  %v2663 = vpack.c.bf16 %v2641, %v2640
  %v2664 = vpack.c.bf16 %v2643, %v2642
  %v2665 = vpack.c.bf16 %v2645, %v2644
  %v2666 = vpack.c.bf16 %v2647, %v2646
  %v2667 = vpack.c.bf16 %v2649, %v2648
  %v2668 = vpack.c.bf16 %v2651, %v2650
  %v2669 = vpack.c.bf16 %v2653, %v2652
  %v2670 = vpack.c.bf16 %v2655, %v2654
  %v2671 = vpack.c.bf16 %v2657, %v2656
  %v2672 = vpack.c.bf16 %v2659, %v2658
  %v2673 = vpack.c.bf16 %v2661, %v2660
  %v2675 = vsel %vm781, %v2662, 0
  %v2678 = vsel %vm781, %v2663, 0
  %v2681 = vsel %vm781, %v2664, 0
  %v2684 = vsel %vm781, %v2665, 0
  %v2687 = vsel %vm781, %v2666, 0
  %v2690 = vsel %vm781, %v2667, 0
  %v2693 = vsel %vm781, %v2668, 0
  %v2696 = vsel %vm781, %v2669, 0
  %v2699 = vsel %vm781, %v2670, 0
  %v2702 = vsel %vm781, %v2671, 0
  %v2705 = vsel %vm781, %v2672, 0
  %v2708 = vsel %vm781, %v2673, 0
  %2710 = vmatprep.subr.bf16.mxu0 0
  %2711 = vmatpush1.bf16.msra.mxu0 0
  %2712 = vmatprep.subr.bf16.mxu0 0
  %2713 = vmatpush1.bf16.msra.mxu0 0
  %2714 = vmatprep.subr.bf16.mxu0 0
  %2715 = vmatpush1.bf16.msra.mxu0 0
  %2716 = vmatprep.subr.bf16.mxu0 0
  %2717 = vmatpush1.bf16.msra.mxu0 0
  %2718 = vmatprep.subr.bf16.mxu0 0
  %2719 = vmatpush1.bf16.msra.mxu0 0
  %2720 = vmatprep.subr.bf16.mxu0 0
  %2721 = vmatpush1.bf16.msra.mxu0 %v2178
  %2722 = vmatprep.subr.bf16.mxu0 0
  %2723 = vmatpush1.bf16.msra.mxu0 %v2177
  %2724 = vmatprep.subr.bf16.mxu0 0
  %2725 = vmatpush1.bf16.msra.mxu0 %v2176
  %2726 = vmatprep.subr.bf16.mxu0 0
  %2727 = vmatpush2.bf16.msra.mxu0 0
  %2728 = vmatprep.subr.bf16.mxu0 0
  %2729 = vmatpush2.bf16.msra.mxu0 0
  %2730 = vmatprep.subr.bf16.mxu0 0
  %2731 = vmatpush2.bf16.msra.mxu0 0
  %2732 = vmatprep.subr.bf16.mxu0 0
  %2733 = vmatpush2.bf16.msra.mxu0 0
  %2734 = vmatprep.subr.bf16.mxu0 0
  %2735 = vmatpush2.bf16.msra.mxu0 0
  %2736 = vmatprep.subr.bf16.mxu0 0
  %2737 = vmatpush2.bf16.msra.mxu0 0
  %2738 = vmatprep.subr.bf16.mxu0 0
  %2739 = vmatpush2.bf16.msra.mxu0 0
  %2740 = vmatprep.subr.bf16.mxu0 0
  %2741 = vmatpush2.bf16.msra.mxu0 0
  %2742 = vmatprep.mubr.bf16.mxu0 0
  %2743 = vmatmul.mubr.bf16.gmra.mxu0 %v2675
  %v2744 = vpop.f32.mrf.mxu0
  %v2745 = vadd.f32 0.0, %v2744
  %v2746 = vpop.f32.mrf.mxu0
  %v2747 = vpop.f32.mrf.mxu0
  %v2748 = vadd.f32 0.0, %v2747
  %v2749 = vpop.f32.mrf.mxu0
  %2750 = vmatprep.mubr.bf16.mxu0 0
  %2751 = vmatmul.mubr.bf16.gmra.mxu0 %v2678
  %v2752 = vpop.f32.mrf.mxu0
  %v2753 = vadd.f32 0.0, %v2752
  %v2754 = vpop.f32.mrf.mxu0
  %v2755 = vpop.f32.mrf.mxu0
  %v2756 = vadd.f32 0.0, %v2755
  %v2757 = vpop.f32.mrf.mxu0
  %2758 = vmatprep.mubr.bf16.mxu0 0
  %2759 = vmatmul.mubr.bf16.gmra.mxu0 %v2681
  %v2760 = vpop.f32.mrf.mxu0
  %v2761 = vadd.f32 0.0, %v2760
  %v2762 = vpop.f32.mrf.mxu0
  %v2763 = vpop.f32.mrf.mxu0
  %v2764 = vadd.f32 0.0, %v2763
  %v2765 = vpop.f32.mrf.mxu0
  %2766 = vmatprep.mubr.bf16.mxu0 0
  %2767 = vmatmul.mubr.bf16.gmra.mxu0 %v2684
  %v2768 = vpop.f32.mrf.mxu0
  %v2769 = vadd.f32 0.0, %v2768
  %v2770 = vpop.f32.mrf.mxu0
  %v2771 = vpop.f32.mrf.mxu0
  %v2772 = vadd.f32 0.0, %v2771
  %v2773 = vpop.f32.mrf.mxu0
  %2774 = vmatprep.mubr.bf16.mxu0 0
  %2775 = vmatmul.mubr.bf16.gmra.mxu0 %v2687
  %v2776 = vpop.f32.mrf.mxu0
  %v2777 = vadd.f32 0.0, %v2776
  %v2778 = vpop.f32.mrf.mxu0
  %v2779 = vpop.f32.mrf.mxu0
  %v2780 = vadd.f32 0.0, %v2779
  %v2781 = vpop.f32.mrf.mxu0
  %2782 = vmatprep.mubr.bf16.mxu0 0
  %2783 = vmatmul.mubr.bf16.gmra.mxu0 %v2690
  %v2784 = vpop.f32.mrf.mxu0
  %v2785 = vadd.f32 0.0, %v2784
  %v2786 = vpop.f32.mrf.mxu0
  %v2787 = vpop.f32.mrf.mxu0
  %v2788 = vadd.f32 0.0, %v2787
  %v2789 = vpop.f32.mrf.mxu0
  %2790 = vmatprep.mubr.bf16.mxu0 0
  %2791 = vmatmul.mubr.bf16.gmra.mxu0 %v2693
  %v2792 = vpop.f32.mrf.mxu0
  %v2793 = vadd.f32 0.0, %v2792
  %v2794 = vpop.f32.mrf.mxu0
  %v2795 = vpop.f32.mrf.mxu0
  %v2796 = vadd.f32 0.0, %v2795
  %v2797 = vpop.f32.mrf.mxu0
  %2798 = vmatprep.mubr.bf16.mxu0 0
  %2799 = vmatmul.mubr.bf16.gmra.mxu0 %v2696
  %v2800 = vpop.f32.mrf.mxu0
  %v2801 = vadd.f32 0.0, %v2800
  %v2802 = vpop.f32.mrf.mxu0
  %v2803 = vpop.f32.mrf.mxu0
  %v2804 = vadd.f32 0.0, %v2803
  %v2805 = vpop.f32.mrf.mxu0
  %2806 = vmatprep.mubr.bf16.mxu0 0
  %2807 = vmatmul.mubr.bf16.gmra.mxu0 %v2699
  %v2808 = vpop.f32.mrf.mxu0
  %v2809 = vadd.f32 0.0, %v2808
  %v2810 = vpop.f32.mrf.mxu0
  %v2811 = vpop.f32.mrf.mxu0
  %v2812 = vadd.f32 0.0, %v2811
  %v2813 = vpop.f32.mrf.mxu0
  %2814 = vmatprep.mubr.bf16.mxu0 0
  %2815 = vmatmul.mubr.bf16.gmra.mxu0 %v2702
  %v2816 = vpop.f32.mrf.mxu0
  %v2817 = vadd.f32 0.0, %v2816
  %v2818 = vpop.f32.mrf.mxu0
  %v2819 = vpop.f32.mrf.mxu0
  %v2820 = vadd.f32 0.0, %v2819
  %v2821 = vpop.f32.mrf.mxu0
  %2822 = vmatprep.mubr.bf16.mxu0 0
  %2823 = vmatmul.mubr.bf16.gmra.mxu0 %v2705
  %v2824 = vpop.f32.mrf.mxu0
  %v2825 = vadd.f32 0.0, %v2824
  %v2826 = vpop.f32.mrf.mxu0
  %v2827 = vpop.f32.mrf.mxu0
  %v2828 = vadd.f32 0.0, %v2827
  %v2829 = vpop.f32.mrf.mxu0
  %2830 = vmatprep.mubr.bf16.mxu0 0
  %2831 = vmatmul.mubr.bf16.gmra.mxu0 %v2708
  %v2832 = vpop.f32.mrf.mxu0
  %v2833 = vadd.f32 0.0, %v2832
  %v2834 = vpop.f32.mrf.mxu0
  %v2835 = vpop.f32.mrf.mxu0
  %v2836 = vadd.f32 0.0, %v2835
  %v2837 = vpop.f32.mrf.mxu0
  %2838 = vdwg.mxu0
  %v2839 = vmul.f32 %v2745, %v292
  %v2840 = vmul.f32 %v2748, %v293
  %v2841 = vmul.f32 %v2753, %v294
  %v2842 = vmul.f32 %v2756, %v295
  %v2843 = vmul.f32 %v2761, %v296
  %v2844 = vmul.f32 %v2764, %v297
  %v2845 = vmul.f32 %v2769, %v298
  %v2846 = vmul.f32 %v2772, %v299
  %v2847 = vmul.f32 %v2777, %v300
  %v2848 = vmul.f32 %v2780, %v301
  %v2849 = vmul.f32 %v2785, %v302
  %v2850 = vmul.f32 %v2788, %v303
  %v2851 = vmul.f32 %v2793, %v304
  %v2852 = vmul.f32 %v2796, %v305
  %v2853 = vmul.f32 %v2801, %v306
  %v2854 = vmul.f32 %v2804, %v307
  %v2855 = vmul.f32 %v2809, %v308
  %v2856 = vmul.f32 %v2812, %v309
  %v2857 = vmul.f32 %v2817, %v310
  %v2858 = vmul.f32 %v2820, %v311
  %v2859 = vmul.f32 %v2825, %v312
  %v2860 = vmul.f32 %v2828, %v313
  %v2861 = vmul.f32 %v2833, %v314
  %v2862 = vmul.f32 %v2836, %v315
  %v2863 = vadd.f32 %v2839, %v2845
  %v2864 = vadd.f32 %v2840, %v2846
  %v2865 = vadd.f32 %v2841, %v2847
  %v2866 = vadd.f32 %v2842, %v2848
  %v2867 = vadd.f32 %v2843, %v2849
  %v2868 = vadd.f32 %v2844, %v2850
  %v2869 = vadd.f32 %v2863, %v2851
  %v2870 = vadd.f32 %v2864, %v2852
  %v2871 = vadd.f32 %v2865, %v2853
  %v2872 = vadd.f32 %v2866, %v2854
  %v2873 = vadd.f32 %v2867, %v2855
  %v2874 = vadd.f32 %v2868, %v2856
  %v2875 = vadd.f32 %v2869, %v2857
  %v2876 = vadd.f32 %v2870, %v2858
  %v2877 = vadd.f32 %v2871, %v2859
  %v2878 = vadd.f32 %v2872, %v2860
  %v2879 = vadd.f32 %v2873, %v2861
  %v2880 = vadd.f32 %v2874, %v2862
  %v2881 = vpack.c.bf16 %v2876, %v2875
  %v2882 = vpack.c.bf16 %v2878, %v2877
  %v2883 = vpack.c.bf16 %v2880, %v2879
  %s2884 = scalar_lea.vmem %s9, 32
  %v2885 = vld [vmem:[%s2884] sm:$0xf]
  %v2886 = vld [vmem:[%s2884 + $0x4] sm:$0xf]
  %v2887 = vld [vmem:[%s2884 + $0x8] sm:$0xf]
  %v2888 = vld [vmem:[%s2884 + $0xc] sm:$0xf]
  %v2889 = vld [vmem:[%s2884 + $0x10] sm:$0xf]
  %v2890 = vld [vmem:[%s2884 + $0x14] sm:$0xf]
  %v2891 = vld [vmem:[%s2884 + $0x18] sm:$0xf]
  %v2892 = vld [vmem:[%s2884 + $0x1c] sm:$0xf]
  %s2893 = scalar_lea.vmem %s10, 1
  %v2894 = vld [vmem:[%s2893] sm:$0x1]
  %v2896 = vlaneseq
  %v2897 = vshrl.u32 %v2896, 7
  %v2898 = vsub.s32 0, %v2897
  %v2899 = vrot.slane %v2894, %v2898
  %v2909 = vunpack.c.l.b16 %v2885
  %v2910 = vunpack.c.l.b16 %v2886
  %v2911 = vunpack.c.l.b16 %v2887
  %v2912 = vunpack.c.l.b16 %v2888
  %v2913 = vunpack.c.l.b16 %v2889
  %v2914 = vunpack.c.l.b16 %v2890
  %v2915 = vunpack.c.l.b16 %v2891
  %v2916 = vunpack.c.l.b16 %v2892
  %v2917 = vpack.c.b16 %v2910, %v2909
  %v2918 = vpack.c.b16 %v2912, %v2911
  %v2919 = vpack.c.b16 %v2914, %v2913
  %v2920 = vpack.c.b16 %v2916, %v2915
  %v2926 = vsel %vm201, %v2881, 0
  %v2929 = vsel %vm201, %v2882, 0
  %v2932 = vsel %vm201, %v2883, 0
  %2934 = vmatprep.subr.bf16.mxu0 0
  %2935 = vmatpush1.bf16.msra.mxu0 0
  %2936 = vmatprep.subr.bf16.mxu0 0
  %2937 = vmatpush1.bf16.msra.mxu0 0
  %2938 = vmatprep.subr.bf16.mxu0 0
  %2939 = vmatpush1.bf16.msra.mxu0 0
  %2940 = vmatprep.subr.bf16.mxu0 0
  %2941 = vmatpush1.bf16.msra.mxu0 0
  %2942 = vmatprep.subr.bf16.mxu0 0
  %2943 = vmatpush1.bf16.msra.mxu0 %v2920
  %2944 = vmatprep.subr.bf16.mxu0 0
  %2945 = vmatpush1.bf16.msra.mxu0 %v2919
  %2946 = vmatprep.subr.bf16.mxu0 0
  %2947 = vmatpush1.bf16.msra.mxu0 %v2918
  %2948 = vmatprep.subr.bf16.mxu0 0
  %2949 = vmatpush1.bf16.msra.mxu0 %v2917
  %2950 = vmatprep.subr.bf16.mxu0 0
  %2951 = vmatpush2.bf16.msra.mxu0 0
  %2952 = vmatprep.subr.bf16.mxu0 0
  %2953 = vmatpush2.bf16.msra.mxu0 0
  %2954 = vmatprep.subr.bf16.mxu0 0
  %2955 = vmatpush2.bf16.msra.mxu0 0
  %2956 = vmatprep.subr.bf16.mxu0 0
  %2957 = vmatpush2.bf16.msra.mxu0 0
  %2958 = vmatprep.subr.bf16.mxu0 0
  %2959 = vmatpush2.bf16.msra.mxu0 0
  %2960 = vmatprep.subr.bf16.mxu0 0
  %2961 = vmatpush2.bf16.msra.mxu0 0
  %2962 = vmatprep.subr.bf16.mxu0 0
  %2963 = vmatpush2.bf16.msra.mxu0 0
  %2964 = vmatprep.subr.bf16.mxu0 0
  %2965 = vmatpush2.bf16.msra.mxu0 0
  %2966 = vmatprep.mubr.bf16.mxu0 0
  %2967 = vmatmul.mubr.bf16.gmra.mxu0 %v2926
  %v2968 = vpop.f32.mrf.mxu0
  %v2969 = vadd.f32 %v2899, %v2968
  %v2970 = vpop.f32.mrf.mxu0
  %v2971 = vpop.f32.mrf.mxu0
  %v2972 = vadd.f32 %v2899, %v2971
  %v2973 = vpop.f32.mrf.mxu0
  %2974 = vmatprep.mubr.bf16.mxu0 0
  %2975 = vmatmul.mubr.bf16.gmra.mxu0 %v2929
  %v2976 = vpop.f32.mrf.mxu0
  %v2977 = vadd.f32 %v2899, %v2976
  %v2978 = vpop.f32.mrf.mxu0
  %v2979 = vpop.f32.mrf.mxu0
  %v2980 = vadd.f32 %v2899, %v2979
  %v2981 = vpop.f32.mrf.mxu0
  %2982 = vmatprep.mubr.bf16.mxu0 0
  %2983 = vmatmul.mubr.bf16.gmra.mxu0 %v2932
  %v2984 = vpop.f32.mrf.mxu0
  %v2985 = vadd.f32 %v2899, %v2984
  %v2986 = vpop.f32.mrf.mxu0
  %v2987 = vpop.f32.mrf.mxu0
  %v2988 = vadd.f32 %v2899, %v2987
  %v2989 = vpop.f32.mrf.mxu0
  %2990 = vdwg.mxu0
  %v2991 = vadd.f32 %v1924, %v2969
  %v2992 = vadd.f32 %v1925, %v2972
  %v2993 = vadd.f32 %v1926, %v2977
  %v2994 = vadd.f32 %v1927, %v2980
  %v2995 = vadd.f32 %v1928, %v2985
  %v2996 = vadd.f32 %v1929, %v2988
  %s2997 = scalar_lea.vmem %s11, 1
  %v2998 = vld [vmem:[%s2997] sm:$0x1]
  %s2999 = scalar_lea.vmem %s12, 1
  %v3000 = vld [vmem:[%s2999] sm:$0x1]
  %v3001 = vsel %vm201, %v2991, 0.0
  %3002 = vadd.xlane.f32.xlu0 %v3001
  %v3003 = vpop.xlane.xlu0 %3002
  %v3004 = vsel %vm201, %v2992, 0.0
  %3005 = vadd.xlane.f32.xlu0 %v3004
  %v3006 = vpop.xlane.xlu0 %3005
  %v3007 = vsel %vm201, %v2993, 0.0
  %3008 = vadd.xlane.f32.xlu0 %v3007
  %v3009 = vpop.xlane.xlu0 %3008
  %v3010 = vsel %vm201, %v2994, 0.0
  %3011 = vadd.xlane.f32.xlu0 %v3010
  %v3012 = vpop.xlane.xlu0 %3011
  %v3013 = vsel %vm201, %v2995, 0.0
  %3014 = vadd.xlane.f32.xlu0 %v3013
  %v3015 = vpop.xlane.xlu0 %3014
  %v3016 = vsel %vm201, %v2996, 0.0
  %3017 = vadd.xlane.f32.xlu0 %v3016
  %v3018 = vpop.xlane.xlu0 %3017
  %v3019 = vmul.f32 %v3003, %v336
  %v3020 = vmul.f32 %v3006, %v336
  %v3021 = vmul.f32 %v3009, %v336
  %v3022 = vmul.f32 %v3012, %v336
  %v3023 = vmul.f32 %v3015, %v336
  %v3024 = vmul.f32 %v3018, %v336
  %v3025 = vsub.f32 %v2991, %v3019
  %v3026 = vsub.f32 %v2992, %v3020
  %v3027 = vsub.f32 %v2993, %v3021
  %v3028 = vsub.f32 %v2994, %v3022
  %v3029 = vsub.f32 %v2995, %v3023
  %v3030 = vsub.f32 %v2996, %v3024
  %v3031 = vmul.f32 %v3025, %v3025
  %v3032 = vmul.f32 %v3026, %v3026
  %v3033 = vmul.f32 %v3027, %v3027
  %v3034 = vmul.f32 %v3028, %v3028
  %v3035 = vmul.f32 %v3029, %v3029
  %v3036 = vmul.f32 %v3030, %v3030
  %v3037 = vsel %vm201, %v3031, 0.0
  %3038 = vadd.xlane.f32.xlu0 %v3037
  %v3039 = vpop.xlane.xlu0 %3038
  %v3040 = vsel %vm201, %v3032, 0.0
  %3041 = vadd.xlane.f32.xlu0 %v3040
  %v3042 = vpop.xlane.xlu0 %3041
  %v3043 = vsel %vm201, %v3033, 0.0
  %3044 = vadd.xlane.f32.xlu0 %v3043
  %v3045 = vpop.xlane.xlu0 %3044
  %v3046 = vsel %vm201, %v3034, 0.0
  %3047 = vadd.xlane.f32.xlu0 %v3046
  %v3048 = vpop.xlane.xlu0 %3047
  %v3049 = vsel %vm201, %v3035, 0.0
  %3050 = vadd.xlane.f32.xlu0 %v3049
  %v3051 = vpop.xlane.xlu0 %3050
  %v3052 = vsel %vm201, %v3036, 0.0
  %3053 = vadd.xlane.f32.xlu0 %v3052
  %v3054 = vpop.xlane.xlu0 %3053
  %v3055 = vmul.f32 %v3039, %v336
  %v3056 = vmul.f32 %v3042, %v336
  %v3057 = vmul.f32 %v3045, %v336
  %v3058 = vmul.f32 %v3048, %v336
  %v3059 = vmul.f32 %v3051, %v336
  %v3060 = vmul.f32 %v3054, %v336
  %v3061 = vadd.f32 %v3055, 1e-06
  %v3062 = vadd.f32 %v3056, 1e-06
  %v3063 = vadd.f32 %v3057, 1e-06
  %v3064 = vadd.f32 %v3058, 1e-06
  %v3065 = vadd.f32 %v3059, 1e-06
  %v3066 = vadd.f32 %v3060, 1e-06
  %v3067 = vrsqrt.pop %v3061
  %v3068 = vrsqrt.pop %v3062
  %v3069 = vrsqrt.pop %v3063
  %v3070 = vrsqrt.pop %v3064
  %v3071 = vrsqrt.pop %v3065
  %v3072 = vrsqrt.pop %v3066
  %v3073 = vmul.f32 %v3025, %v3067
  %v3074 = vmul.f32 %v3026, %v3068
  %v3075 = vmul.f32 %v3027, %v3069
  %v3076 = vmul.f32 %v3028, %v3070
  %v3077 = vmul.f32 %v3029, %v3071
  %v3078 = vmul.f32 %v3030, %v3072
  %v3080 = vlaneseq
  %v3081 = vshrl.u32 %v3080, 7
  %v3082 = vsub.s32 0, %v3081
  %v3083 = vrot.slane %v2998, %v3082
  %v3085 = vmul.f32 %v3073, %v3083
  %v3086 = vmul.f32 %v3074, %v3083
  %v3087 = vmul.f32 %v3075, %v3083
  %v3088 = vmul.f32 %v3076, %v3083
  %v3089 = vmul.f32 %v3077, %v3083
  %v3090 = vmul.f32 %v3078, %v3083
  %v3092 = vlaneseq
  %v3093 = vshrl.u32 %v3092, 7
  %v3094 = vsub.s32 0, %v3093
  %v3095 = vrot.slane %v3000, %v3094
  %v3097 = vadd.f32 %v3085, %v3095
  %v3098 = vadd.f32 %v3086, %v3095
  %v3099 = vadd.f32 %v3087, %v3095
  %v3100 = vadd.f32 %v3088, %v3095
  %v3101 = vadd.f32 %v3089, %v3095
  %v3102 = vadd.f32 %v3090, %v3095
  %v3103 = vpack.c.bf16 %v3098, %v3097
  %v3104 = vpack.c.bf16 %v3100, %v3099
  %v3105 = vpack.c.bf16 %v3102, %v3101
  %s3106 = scalar_lea.vmem %s13, 64
  %v3107 = vld [vmem:[%s3106] sm:$0xff]
  %v3108 = vld [vmem:[%s3106 + $0x8] sm:$0xff]
  %v3109 = vld [vmem:[%s3106 + $0x10] sm:$0xff]
  %v3110 = vld [vmem:[%s3106 + $0x18] sm:$0xff]
  %v3111 = vld [vmem:[%s3106 + $0x20] sm:$0xff]
  %v3112 = vld [vmem:[%s3106 + $0x28] sm:$0xff]
  %v3113 = vld [vmem:[%s3106 + $0x30] sm:$0xff]
  %v3114 = vld [vmem:[%s3106 + $0x38] sm:$0xff]
  %s3115 = scalar_lea.vmem %s14, 2
  %v3116 = vld [vmem:[%s3115] sm:$0x3]
  %v3118 = vlaneseq
  %v3119 = vshrl.u32 %v3118, 7
  %v3120 = vsub.s32 0, %v3119
  %v3121 = vrot.slane %v3116, %v3120
  %v3122 = vlaneseq
  %v3123 = vshrl.u32 %v3122, 7
  %v3124 = vsub.s32 1, %v3123
  %v3125 = vrot.slane %v3116, %v3124
  %v3136 = vunpack.c.l.b16 %v3107
  %v3137 = vunpack.c.h.b16 %v3107
  %v3138 = vunpack.c.l.b16 %v3108
  %v3139 = vunpack.c.h.b16 %v3108
  %v3140 = vunpack.c.l.b16 %v3109
  %v3141 = vunpack.c.h.b16 %v3109
  %v3142 = vunpack.c.l.b16 %v3110
  %v3143 = vunpack.c.h.b16 %v3110
  %v3144 = vunpack.c.l.b16 %v3111
  %v3145 = vunpack.c.h.b16 %v3111
  %v3146 = vunpack.c.l.b16 %v3112
  %v3147 = vunpack.c.h.b16 %v3112
  %v3148 = vunpack.c.l.b16 %v3113
  %v3149 = vunpack.c.h.b16 %v3113
  %v3150 = vunpack.c.l.b16 %v3114
  %v3151 = vunpack.c.h.b16 %v3114
  %v3152 = vpack.c.b16 %v3138, %v3136
  %v3153 = vpack.c.b16 %v3139, %v3137
  %v3154 = vpack.c.b16 %v3142, %v3140
  %v3155 = vpack.c.b16 %v3143, %v3141
  %v3156 = vpack.c.b16 %v3146, %v3144
  %v3157 = vpack.c.b16 %v3147, %v3145
  %v3158 = vpack.c.b16 %v3150, %v3148
  %v3159 = vpack.c.b16 %v3151, %v3149
  %v3169 = vsel %vm201, %v3103, 0
  %v3172 = vsel %vm201, %v3104, 0
  %v3175 = vsel %vm201, %v3105, 0
  %3177 = vmatprep.subr.bf16.mxu0 0
  %3178 = vmatpush1.bf16.msra.mxu0 0
  %3179 = vmatprep.subr.bf16.mxu0 0
  %3180 = vmatpush1.bf16.msra.mxu0 0
  %3181 = vmatprep.subr.bf16.mxu0 0
  %3182 = vmatpush1.bf16.msra.mxu0 0
  %3183 = vmatprep.subr.bf16.mxu0 0
  %3184 = vmatpush1.bf16.msra.mxu0 0
  %3185 = vmatprep.subr.bf16.mxu0 %v3159
  %3186 = vmatpush1.bf16.msra.mxu0 %v3158
  %3187 = vmatprep.subr.bf16.mxu0 %v3157
  %3188 = vmatpush1.bf16.msra.mxu0 %v3156
  %3189 = vmatprep.subr.bf16.mxu0 %v3155
  %3190 = vmatpush1.bf16.msra.mxu0 %v3154
  %3191 = vmatprep.subr.bf16.mxu0 %v3153
  %3192 = vmatpush1.bf16.msra.mxu0 %v3152
  %3193 = vmatprep.subr.bf16.mxu0 0
  %3194 = vmatpush2.bf16.msra.mxu0 0
  %3195 = vmatprep.subr.bf16.mxu0 0
  %3196 = vmatpush2.bf16.msra.mxu0 0
  %3197 = vmatprep.subr.bf16.mxu0 0
  %3198 = vmatpush2.bf16.msra.mxu0 0
  %3199 = vmatprep.subr.bf16.mxu0 0
  %3200 = vmatpush2.bf16.msra.mxu0 0
  %3201 = vmatprep.subr.bf16.mxu0 0
  %3202 = vmatpush2.bf16.msra.mxu0 0
  %3203 = vmatprep.subr.bf16.mxu0 0
  %3204 = vmatpush2.bf16.msra.mxu0 0
  %3205 = vmatprep.subr.bf16.mxu0 0
  %3206 = vmatpush2.bf16.msra.mxu0 0
  %3207 = vmatprep.subr.bf16.mxu0 0
  %3208 = vmatpush2.bf16.msra.mxu0 0
  %3209 = vmatprep.mubr.bf16.mxu0 0
  %3210 = vmatmul.mubr.bf16.gmra.mxu0 %v3169
  %v3211 = vpop.f32.mrf.mxu0
  %v3212 = vadd.f32 %v3121, %v3211
  %v3213 = vpop.f32.mrf.mxu0
  %v3214 = vadd.f32 %v3125, %v3213
  %v3215 = vpop.f32.mrf.mxu0
  %v3216 = vadd.f32 %v3121, %v3215
  %v3217 = vpop.f32.mrf.mxu0
  %v3218 = vadd.f32 %v3125, %v3217
  %3219 = vmatprep.mubr.bf16.mxu0 0
  %3220 = vmatmul.mubr.bf16.gmra.mxu0 %v3172
  %v3221 = vpop.f32.mrf.mxu0
  %v3222 = vadd.f32 %v3121, %v3221
  %v3223 = vpop.f32.mrf.mxu0
  %v3224 = vadd.f32 %v3125, %v3223
  %v3225 = vpop.f32.mrf.mxu0
  %v3226 = vadd.f32 %v3121, %v3225
  %v3227 = vpop.f32.mrf.mxu0
  %v3228 = vadd.f32 %v3125, %v3227
  %3229 = vmatprep.mubr.bf16.mxu0 0
  %3230 = vmatmul.mubr.bf16.gmra.mxu0 %v3175
  %v3231 = vpop.f32.mrf.mxu0
  %v3232 = vadd.f32 %v3121, %v3231
  %v3233 = vpop.f32.mrf.mxu0
  %v3234 = vadd.f32 %v3125, %v3233
  %v3235 = vpop.f32.mrf.mxu0
  %v3236 = vadd.f32 %v3121, %v3235
  %v3237 = vpop.f32.mrf.mxu0
  %v3238 = vadd.f32 %v3125, %v3237
  %3239 = vdwg.mxu0
  %v3240 = vmul.f32 %v3212, 0.5
  %v3241 = vmul.f32 %v3214, 0.5
  %v3242 = vmul.f32 %v3216, 0.5
  %v3243 = vmul.f32 %v3218, 0.5
  %v3244 = vmul.f32 %v3222, 0.5
  %v3245 = vmul.f32 %v3224, 0.5
  %v3246 = vmul.f32 %v3226, 0.5
  %v3247 = vmul.f32 %v3228, 0.5
  %v3248 = vmul.f32 %v3232, 0.5
  %v3249 = vmul.f32 %v3234, 0.5
  %v3250 = vmul.f32 %v3236, 0.5
  %v3251 = vmul.f32 %v3238, 0.5
  %v3252 = vmul.f32 %v3212, 0.044715
  %v3253 = vmul.f32 %v3214, 0.044715
  %v3254 = vmul.f32 %v3216, 0.044715
  %v3255 = vmul.f32 %v3218, 0.044715
  %v3256 = vmul.f32 %v3222, 0.044715
  %v3257 = vmul.f32 %v3224, 0.044715
  %v3258 = vmul.f32 %v3226, 0.044715
  %v3259 = vmul.f32 %v3228, 0.044715
  %v3260 = vmul.f32 %v3232, 0.044715
  %v3261 = vmul.f32 %v3234, 0.044715
  %v3262 = vmul.f32 %v3236, 0.044715
  %v3263 = vmul.f32 %v3238, 0.044715
  %v3264 = vmul.f32 %v3252, %v3212
  %v3265 = vmul.f32 %v3253, %v3214
  %v3266 = vmul.f32 %v3254, %v3216
  %v3267 = vmul.f32 %v3255, %v3218
  %v3268 = vmul.f32 %v3256, %v3222
  %v3269 = vmul.f32 %v3257, %v3224
  %v3270 = vmul.f32 %v3258, %v3226
  %v3271 = vmul.f32 %v3259, %v3228
  %v3272 = vmul.f32 %v3260, %v3232
  %v3273 = vmul.f32 %v3261, %v3234
  %v3274 = vmul.f32 %v3262, %v3236
  %v3275 = vmul.f32 %v3263, %v3238
  %v3276 = vmul.f32 %v3264, %v3212
  %v3277 = vmul.f32 %v3265, %v3214
  %v3278 = vmul.f32 %v3266, %v3216
  %v3279 = vmul.f32 %v3267, %v3218
  %v3280 = vmul.f32 %v3268, %v3222
  %v3281 = vmul.f32 %v3269, %v3224
  %v3282 = vmul.f32 %v3270, %v3226
  %v3283 = vmul.f32 %v3271, %v3228
  %v3284 = vmul.f32 %v3272, %v3232
  %v3285 = vmul.f32 %v3273, %v3234
  %v3286 = vmul.f32 %v3274, %v3236
  %v3287 = vmul.f32 %v3275, %v3238
  %v3288 = vadd.f32 %v3212, %v3276
  %v3289 = vadd.f32 %v3214, %v3277
  %v3290 = vadd.f32 %v3216, %v3278
  %v3291 = vadd.f32 %v3218, %v3279
  %v3292 = vadd.f32 %v3222, %v3280
  %v3293 = vadd.f32 %v3224, %v3281
  %v3294 = vadd.f32 %v3226, %v3282
  %v3295 = vadd.f32 %v3228, %v3283
  %v3296 = vadd.f32 %v3232, %v3284
  %v3297 = vadd.f32 %v3234, %v3285
  %v3298 = vadd.f32 %v3236, %v3286
  %v3299 = vadd.f32 %v3238, %v3287
  %v3300 = vmul.f32 %v3288, 0.7978846
  %v3301 = vmul.f32 %v3289, 0.7978846
  %v3302 = vmul.f32 %v3290, 0.7978846
  %v3303 = vmul.f32 %v3291, 0.7978846
  %v3304 = vmul.f32 %v3292, 0.7978846
  %v3305 = vmul.f32 %v3293, 0.7978846
  %v3306 = vmul.f32 %v3294, 0.7978846
  %v3307 = vmul.f32 %v3295, 0.7978846
  %v3308 = vmul.f32 %v3296, 0.7978846
  %v3309 = vmul.f32 %v3297, 0.7978846
  %v3310 = vmul.f32 %v3298, 0.7978846
  %v3311 = vmul.f32 %v3299, 0.7978846
  %v3312 = vtanh.pop %v3300
  %v3313 = vtanh.pop %v3301
  %v3314 = vtanh.pop %v3302
  %v3315 = vtanh.pop %v3303
  %v3316 = vtanh.pop %v3304
  %v3317 = vtanh.pop %v3305
  %v3318 = vtanh.pop %v3306
  %v3319 = vtanh.pop %v3307
  %v3320 = vtanh.pop %v3308
  %v3321 = vtanh.pop %v3309
  %v3322 = vtanh.pop %v3310
  %v3323 = vtanh.pop %v3311
  %v3324 = vadd.f32 %v3312, 1.0
  %v3325 = vadd.f32 %v3313, 1.0
  %v3326 = vadd.f32 %v3314, 1.0
  %v3327 = vadd.f32 %v3315, 1.0
  %v3328 = vadd.f32 %v3316, 1.0
  %v3329 = vadd.f32 %v3317, 1.0
  %v3330 = vadd.f32 %v3318, 1.0
  %v3331 = vadd.f32 %v3319, 1.0
  %v3332 = vadd.f32 %v3320, 1.0
  %v3333 = vadd.f32 %v3321, 1.0
  %v3334 = vadd.f32 %v3322, 1.0
  %v3335 = vadd.f32 %v3323, 1.0
  %v3336 = vmul.f32 %v3240, %v3324
  %v3337 = vmul.f32 %v3241, %v3325
  %v3338 = vmul.f32 %v3242, %v3326
  %v3339 = vmul.f32 %v3243, %v3327
  %v3340 = vmul.f32 %v3244, %v3328
  %v3341 = vmul.f32 %v3245, %v3329
  %v3342 = vmul.f32 %v3246, %v3330
  %v3343 = vmul.f32 %v3247, %v3331
  %v3344 = vmul.f32 %v3248, %v3332
  %v3345 = vmul.f32 %v3249, %v3333
  %v3346 = vmul.f32 %v3250, %v3334
  %v3347 = vmul.f32 %v3251, %v3335
  %v3348 = vpack.c.bf16 %v3338, %v3336
  %v3349 = vpack.c.bf16 %v3339, %v3337
  %v3350 = vpack.c.bf16 %v3342, %v3340
  %v3351 = vpack.c.bf16 %v3343, %v3341
  %v3352 = vpack.c.bf16 %v3346, %v3344
  %v3353 = vpack.c.bf16 %v3347, %v3345
  %s3354 = scalar_lea.vmem %s15, 128
  %v3355 = vld [vmem:[%s3354] sm:$0xf]
  %v3356 = vld [vmem:[%s3354 + $0x4] sm:$0xf]
  %v3357 = vld [vmem:[%s3354 + $0x8] sm:$0xf]
  %v3358 = vld [vmem:[%s3354 + $0xc] sm:$0xf]
  %v3359 = vld [vmem:[%s3354 + $0x10] sm:$0xf]
  %v3360 = vld [vmem:[%s3354 + $0x14] sm:$0xf]
  %v3361 = vld [vmem:[%s3354 + $0x18] sm:$0xf]
  %v3362 = vld [vmem:[%s3354 + $0x1c] sm:$0xf]
  %v3363 = vld [vmem:[%s3354 + $0x20] sm:$0xf]
  %v3364 = vld [vmem:[%s3354 + $0x24] sm:$0xf]
  %v3365 = vld [vmem:[%s3354 + $0x28] sm:$0xf]
  %v3366 = vld [vmem:[%s3354 + $0x2c] sm:$0xf]
  %v3367 = vld [vmem:[%s3354 + $0x30] sm:$0xf]
  %v3368 = vld [vmem:[%s3354 + $0x34] sm:$0xf]
  %v3369 = vld [vmem:[%s3354 + $0x38] sm:$0xf]
  %v3370 = vld [vmem:[%s3354 + $0x3c] sm:$0xf]
  %v3371 = vld [vmem:[%s3354 + $0x40] sm:$0xf]
  %v3372 = vld [vmem:[%s3354 + $0x44] sm:$0xf]
  %v3373 = vld [vmem:[%s3354 + $0x48] sm:$0xf]
  %v3374 = vld [vmem:[%s3354 + $0x4c] sm:$0xf]
  %v3375 = vld [vmem:[%s3354 + $0x50] sm:$0xf]
  %v3376 = vld [vmem:[%s3354 + $0x54] sm:$0xf]
  %v3377 = vld [vmem:[%s3354 + $0x58] sm:$0xf]
  %v3378 = vld [vmem:[%s3354 + $0x5c] sm:$0xf]
  %v3379 = vld [vmem:[%s3354 + $0x60] sm:$0xf]
  %v3380 = vld [vmem:[%s3354 + $0x64] sm:$0xf]
  %v3381 = vld [vmem:[%s3354 + $0x68] sm:$0xf]
  %v3382 = vld [vmem:[%s3354 + $0x6c] sm:$0xf]
  %v3383 = vld [vmem:[%s3354 + $0x70] sm:$0xf]
  %v3384 = vld [vmem:[%s3354 + $0x74] sm:$0xf]
  %v3385 = vld [vmem:[%s3354 + $0x78] sm:$0xf]
  %v3386 = vld [vmem:[%s3354 + $0x7c] sm:$0xf]
  %s3387 = scalar_lea.vmem %s16, 1
  %v3388 = vld [vmem:[%s3387] sm:$0x1]
  %v3390 = vlaneseq
  %v3391 = vshrl.u32 %v3390, 7
  %v3392 = vsub.s32 0, %v3391
  %v3393 = vrot.slane %v3388, %v3392
  %v3427 = vunpack.c.l.b16 %v3355
  %v3428 = vunpack.c.l.b16 %v3356
  %v3429 = vunpack.c.l.b16 %v3357
  %v3430 = vunpack.c.l.b16 %v3358
  %v3431 = vunpack.c.l.b16 %v3359
  %v3432 = vunpack.c.l.b16 %v3360
  %v3433 = vunpack.c.l.b16 %v3361
  %v3434 = vunpack.c.l.b16 %v3362
  %v3435 = vunpack.c.l.b16 %v3363
  %v3436 = vunpack.c.l.b16 %v3364
  %v3437 = vunpack.c.l.b16 %v3365
  %v3438 = vunpack.c.l.b16 %v3366
  %v3439 = vunpack.c.l.b16 %v3367
  %v3440 = vunpack.c.l.b16 %v3368
  %v3441 = vunpack.c.l.b16 %v3369
  %v3442 = vunpack.c.l.b16 %v3370
  %v3443 = vunpack.c.l.b16 %v3371
  %v3444 = vunpack.c.l.b16 %v3372
  %v3445 = vunpack.c.l.b16 %v3373
  %v3446 = vunpack.c.l.b16 %v3374
  %v3447 = vunpack.c.l.b16 %v3375
  %v3448 = vunpack.c.l.b16 %v3376
  %v3449 = vunpack.c.l.b16 %v3377
  %v3450 = vunpack.c.l.b16 %v3378
  %v3451 = vunpack.c.l.b16 %v3379
  %v3452 = vunpack.c.l.b16 %v3380
  %v3453 = vunpack.c.l.b16 %v3381
  %v3454 = vunpack.c.l.b16 %v3382
  %v3455 = vunpack.c.l.b16 %v3383
  %v3456 = vunpack.c.l.b16 %v3384
  %v3457 = vunpack.c.l.b16 %v3385
  %v3458 = vunpack.c.l.b16 %v3386
  %v3459 = vpack.c.b16 %v3428, %v3427
  %v3460 = vpack.c.b16 %v3430, %v3429
  %v3461 = vpack.c.b16 %v3432, %v3431
  %v3462 = vpack.c.b16 %v3434, %v3433
  %v3463 = vpack.c.b16 %v3436, %v3435
  %v3464 = vpack.c.b16 %v3438, %v3437
  %v3465 = vpack.c.b16 %v3440, %v3439
  %v3466 = vpack.c.b16 %v3442, %v3441
  %v3467 = vpack.c.b16 %v3444, %v3443
  %v3468 = vpack.c.b16 %v3446, %v3445
  %v3469 = vpack.c.b16 %v3448, %v3447
  %v3470 = vpack.c.b16 %v3450, %v3449
  %v3471 = vpack.c.b16 %v3452, %v3451
  %v3472 = vpack.c.b16 %v3454, %v3453
  %v3473 = vpack.c.b16 %v3456, %v3455
  %v3474 = vpack.c.b16 %v3458, %v3457
  %3491 = vmatprep.subr.bf16.mxu0 0
  %3492 = vmatpush1.bf16.msra.mxu0 %v3466
  %3493 = vmatprep.subr.bf16.mxu0 0
  %3494 = vmatpush1.bf16.msra.mxu0 %v3465
  %3495 = vmatprep.subr.bf16.mxu0 0
  %3496 = vmatpush1.bf16.msra.mxu0 %v3464
  %3497 = vmatprep.subr.bf16.mxu0 0
  %3498 = vmatpush1.bf16.msra.mxu0 %v3463
  %3499 = vmatprep.subr.bf16.mxu0 0
  %3500 = vmatpush1.bf16.msra.mxu0 %v3462
  %3501 = vmatprep.subr.bf16.mxu0 0
  %3502 = vmatpush1.bf16.msra.mxu0 %v3461
  %3503 = vmatprep.subr.bf16.mxu0 0
  %3504 = vmatpush1.bf16.msra.mxu0 %v3460
  %3505 = vmatprep.subr.bf16.mxu0 0
  %3506 = vmatpush1.bf16.msra.mxu0 %v3459
  %3507 = vmatprep.subr.bf16.mxu0 0
  %3508 = vmatpush2.bf16.msra.mxu0 %v3474
  %3509 = vmatprep.subr.bf16.mxu0 0
  %3510 = vmatpush2.bf16.msra.mxu0 %v3473
  %3511 = vmatprep.subr.bf16.mxu0 0
  %3512 = vmatpush2.bf16.msra.mxu0 %v3472
  %3513 = vmatprep.subr.bf16.mxu0 0
  %3514 = vmatpush2.bf16.msra.mxu0 %v3471
  %3515 = vmatprep.subr.bf16.mxu0 0
  %3516 = vmatpush2.bf16.msra.mxu0 %v3470
  %3517 = vmatprep.subr.bf16.mxu0 0
  %3518 = vmatpush2.bf16.msra.mxu0 %v3469
  %3519 = vmatprep.subr.bf16.mxu0 0
  %3520 = vmatpush2.bf16.msra.mxu0 %v3468
  %3521 = vmatprep.subr.bf16.mxu0 0
  %3522 = vmatpush2.bf16.msra.mxu0 %v3467
  %3523 = vmatprep.mubr.bf16.mxu0 %v3349
  %3524 = vmatmul.mubr.bf16.gmra.mxu0 %v3348
  %v3525 = vpop.f32.mrf.mxu0
  %v3526 = vadd.f32 %v3393, %v3525
  %v3527 = vpop.f32.mrf.mxu0
  %v3528 = vpop.f32.mrf.mxu0
  %v3529 = vadd.f32 %v3393, %v3528
  %v3530 = vpop.f32.mrf.mxu0
  %3531 = vmatprep.mubr.bf16.mxu0 %v3351
  %3532 = vmatmul.mubr.bf16.gmra.mxu0 %v3350
  %v3533 = vpop.f32.mrf.mxu0
  %v3534 = vadd.f32 %v3393, %v3533
  %v3535 = vpop.f32.mrf.mxu0
  %v3536 = vpop.f32.mrf.mxu0
  %v3537 = vadd.f32 %v3393, %v3536
  %v3538 = vpop.f32.mrf.mxu0
  %3539 = vmatprep.mubr.bf16.mxu0 %v3353
  %3540 = vmatmul.mubr.bf16.gmra.mxu0 %v3352
  %v3541 = vpop.f32.mrf.mxu0
  %v3542 = vadd.f32 %v3393, %v3541
  %v3543 = vpop.f32.mrf.mxu0
  %v3544 = vpop.f32.mrf.mxu0
  %v3545 = vadd.f32 %v3393, %v3544
  %v3546 = vpop.f32.mrf.mxu0
  %3547 = vdwg.mxu0
  %v3548 = vadd.f32 %v2991, %v3526
  %v3549 = vadd.f32 %v2992, %v3529
  %v3550 = vadd.f32 %v2993, %v3534
  %v3551 = vadd.f32 %v2994, %v3537
  %v3552 = vadd.f32 %v2995, %v3542
  %v3553 = vadd.f32 %v2996, %v3545
  %v3554 = vld [vmem:[%s17] sm:$0x1]
  %v3555 = vld [vmem:[%s18] sm:$0x1]
  %v3556 = vsel %vm201, %v3548, 0.0
  %3557 = vadd.xlane.f32.xlu0 %v3556
  %v3558 = vpop.xlane.xlu0 %3557
  %v3559 = vsel %vm201, %v3549, 0.0
  %3560 = vadd.xlane.f32.xlu0 %v3559
  %v3561 = vpop.xlane.xlu0 %3560
  %v3562 = vsel %vm201, %v3550, 0.0
  %3563 = vadd.xlane.f32.xlu0 %v3562
  %v3564 = vpop.xlane.xlu0 %3563
  %v3565 = vsel %vm201, %v3551, 0.0
  %3566 = vadd.xlane.f32.xlu0 %v3565
  %v3567 = vpop.xlane.xlu0 %3566
  %v3568 = vsel %vm201, %v3552, 0.0
  %3569 = vadd.xlane.f32.xlu0 %v3568
  %v3570 = vpop.xlane.xlu0 %3569
  %v3571 = vsel %vm201, %v3553, 0.0
  %3572 = vadd.xlane.f32.xlu0 %v3571
  %v3573 = vpop.xlane.xlu0 %3572
  %v3574 = vmul.f32 %v3558, %v336
  %v3575 = vmul.f32 %v3561, %v336
  %v3576 = vmul.f32 %v3564, %v336
  %v3577 = vmul.f32 %v3567, %v336
  %v3578 = vmul.f32 %v3570, %v336
  %v3579 = vmul.f32 %v3573, %v336
  %v3580 = vsub.f32 %v3548, %v3574
  %v3581 = vsub.f32 %v3549, %v3575
  %v3582 = vsub.f32 %v3550, %v3576
  %v3583 = vsub.f32 %v3551, %v3577
  %v3584 = vsub.f32 %v3552, %v3578
  %v3585 = vsub.f32 %v3553, %v3579
  %v3586 = vmul.f32 %v3580, %v3580
  %v3587 = vmul.f32 %v3581, %v3581
  %v3588 = vmul.f32 %v3582, %v3582
  %v3589 = vmul.f32 %v3583, %v3583
  %v3590 = vmul.f32 %v3584, %v3584
  %v3591 = vmul.f32 %v3585, %v3585
  %v3592 = vsel %vm201, %v3586, 0.0
  %3593 = vadd.xlane.f32.xlu0 %v3592
  %v3594 = vpop.xlane.xlu0 %3593
  %v3595 = vsel %vm201, %v3587, 0.0
  %3596 = vadd.xlane.f32.xlu0 %v3595
  %v3597 = vpop.xlane.xlu0 %3596
  %v3598 = vsel %vm201, %v3588, 0.0
  %3599 = vadd.xlane.f32.xlu0 %v3598
  %v3600 = vpop.xlane.xlu0 %3599
  %v3601 = vsel %vm201, %v3589, 0.0
  %3602 = vadd.xlane.f32.xlu0 %v3601
  %v3603 = vpop.xlane.xlu0 %3602
  %v3604 = vsel %vm201, %v3590, 0.0
  %3605 = vadd.xlane.f32.xlu0 %v3604
  %v3606 = vpop.xlane.xlu0 %3605
  %v3607 = vsel %vm201, %v3591, 0.0
  %3608 = vadd.xlane.f32.xlu0 %v3607
  %v3609 = vpop.xlane.xlu0 %3608
  %v3610 = vmul.f32 %v3594, %v336
  %v3611 = vmul.f32 %v3597, %v336
  %v3612 = vmul.f32 %v3600, %v336
  %v3613 = vmul.f32 %v3603, %v336
  %v3614 = vmul.f32 %v3606, %v336
  %v3615 = vmul.f32 %v3609, %v336
  %v3616 = vadd.f32 %v3610, 1e-06
  %v3617 = vadd.f32 %v3611, 1e-06
  %v3618 = vadd.f32 %v3612, 1e-06
  %v3619 = vadd.f32 %v3613, 1e-06
  %v3620 = vadd.f32 %v3614, 1e-06
  %v3621 = vadd.f32 %v3615, 1e-06
  %v3622 = vrsqrt.pop %v3616
  %v3623 = vrsqrt.pop %v3617
  %v3624 = vrsqrt.pop %v3618
  %v3625 = vrsqrt.pop %v3619
  %v3626 = vrsqrt.pop %v3620
  %v3627 = vrsqrt.pop %v3621
  %v3628 = vmul.f32 %v3580, %v3622
  %v3629 = vmul.f32 %v3581, %v3623
  %v3630 = vmul.f32 %v3582, %v3624
  %v3631 = vmul.f32 %v3583, %v3625
  %v3632 = vmul.f32 %v3584, %v3626
  %v3633 = vmul.f32 %v3585, %v3627
  %v3635 = vlaneseq
  %v3636 = vshrl.u32 %v3635, 7
  %v3637 = vsub.s32 0, %v3636
  %v3638 = vrot.slane %v3554, %v3637
  %v3640 = vmul.f32 %v3628, %v3638
  %v3641 = vmul.f32 %v3629, %v3638
  %v3642 = vmul.f32 %v3630, %v3638
  %v3643 = vmul.f32 %v3631, %v3638
  %v3644 = vmul.f32 %v3632, %v3638
  %v3645 = vmul.f32 %v3633, %v3638
  %v3647 = vlaneseq
  %v3648 = vshrl.u32 %v3647, 7
  %v3649 = vsub.s32 0, %v3648
  %v3650 = vrot.slane %v3555, %v3649
  %v3652 = vadd.f32 %v3640, %v3650
  %v3653 = vadd.f32 %v3641, %v3650
  %v3654 = vadd.f32 %v3642, %v3650
  %v3655 = vadd.f32 %v3643, %v3650
  %v3656 = vadd.f32 %v3644, %v3650
  %v3657 = vadd.f32 %v3645, %v3650
  %v3658 = vld [vmem:[%s19] sm:$0xff]
  %v3659 = vld [vmem:[%s19 + $0x8] sm:$0xff]
  %v3660 = vld [vmem:[%s19 + $0x10] sm:$0xff]
  %v3661 = vld [vmem:[%s19 + $0x18] sm:$0xff]
  %v3662 = vld [vmem:[%s19 + $0x20] sm:$0xff]
  %v3663 = vld [vmem:[%s19 + $0x28] sm:$0xff]
  %v3664 = vld [vmem:[%s19 + $0x30] sm:$0xff]
  %v3665 = vld [vmem:[%s19 + $0x38] sm:$0xff]
  %v3667 = vsel %vm201, %v3652, 0
  %v3670 = vsel %vm201, %v3653, 0
  %v3673 = vsel %vm201, %v3654, 0
  %v3676 = vsel %vm201, %v3655, 0
  %v3679 = vsel %vm201, %v3656, 0
  %v3682 = vsel %vm201, %v3657, 0
  %3684 = vmatprep.subr.mxu0 0.0
  %3685 = vmatpush1.msra.mxu0 0.0
  %3686 = vmatprep.subr.mxu0 0.0
  %3687 = vmatpush1.msra.mxu0 0.0
  %3688 = vmatprep.subr.mxu0 0.0
  %3689 = vmatpush1.msra.mxu0 0.0
  %3690 = vmatprep.subr.mxu0 0.0
  %3691 = vmatpush1.msra.mxu0 0.0
  %3692 = vmatprep.subr.mxu0 0.0
  %3693 = vmatpush1.msra.mxu0 0.0
  %3694 = vmatprep.subr.mxu0 0.0
  %3695 = vmatpush1.msra.mxu0 0.0
  %3696 = vmatprep.subr.mxu0 0.0
  %3697 = vmatpush1.msra.mxu0 0.0
  %3698 = vmatprep.subr.mxu0 0.0
  %3699 = vmatpush1.msra.mxu0 0.0
  %3700 = vmatprep.subr.mxu0 0.0
  %3701 = vmatpush1.msra.mxu0 %v3665
  %3702 = vmatprep.subr.mxu0 0.0
  %3703 = vmatpush1.msra.mxu0 %v3664
  %3704 = vmatprep.subr.mxu0 0.0
  %3705 = vmatpush1.msra.mxu0 %v3663
  %3706 = vmatprep.subr.mxu0 0.0
  %3707 = vmatpush1.msra.mxu0 %v3662
  %3708 = vmatprep.subr.mxu0 0.0
  %3709 = vmatpush1.msra.mxu0 %v3661
  %3710 = vmatprep.subr.mxu0 0.0
  %3711 = vmatpush1.msra.mxu0 %v3660
  %3712 = vmatprep.subr.mxu0 0.0
  %3713 = vmatpush1.msra.mxu0 %v3659
  %3714 = vmatprep.subr.mxu0 0.0
  %3715 = vmatpush1.msra.mxu0 %v3658
  %3716 = vmatprep.subr.mxu0 0.0
  %3717 = vmatpush2.msra.mxu0 0.0
  %3718 = vmatprep.subr.mxu0 0.0
  %3719 = vmatpush2.msra.mxu0 0.0
  %3720 = vmatprep.subr.mxu0 0.0
  %3721 = vmatpush2.msra.mxu0 0.0
  %3722 = vmatprep.subr.mxu0 0.0
  %3723 = vmatpush2.msra.mxu0 0.0
  %3724 = vmatprep.subr.mxu0 0.0
  %3725 = vmatpush2.msra.mxu0 0.0
  %3726 = vmatprep.subr.mxu0 0.0
  %3727 = vmatpush2.msra.mxu0 0.0
  %3728 = vmatprep.subr.mxu0 0.0
  %3729 = vmatpush2.msra.mxu0 0.0
  %3730 = vmatprep.subr.mxu0 0.0
  %3731 = vmatpush2.msra.mxu0 0.0
  %3732 = vmatprep.subr.mxu0 0.0
  %3733 = vmatpush2.msra.mxu0 0.0
  %3734 = vmatprep.subr.mxu0 0.0
  %3735 = vmatpush2.msra.mxu0 0.0
  %3736 = vmatprep.subr.mxu0 0.0
  %3737 = vmatpush2.msra.mxu0 0.0
  %3738 = vmatprep.subr.mxu0 0.0
  %3739 = vmatpush2.msra.mxu0 0.0
  %3740 = vmatprep.subr.mxu0 0.0
  %3741 = vmatpush2.msra.mxu0 0.0
  %3742 = vmatprep.subr.mxu0 0.0
  %3743 = vmatpush2.msra.mxu0 0.0
  %3744 = vmatprep.subr.mxu0 0.0
  %3745 = vmatpush2.msra.mxu0 0.0
  %3746 = vmatprep.subr.mxu0 0.0
  %3747 = vmatpush2.msra.mxu0 0.0
  %3748 = vmatprep.mubr.f32.mxu0 0.0
  %3749 = vmatmul.mubr.f32.gmra.mxu0 %v3667
  %v3750 = vpop.f32.mrf.mxu0
  %v3751 = vadd.f32 0.0, %v3750
  %v3752 = vpop.f32.mrf.mxu0
  %3753 = vmatprep.mubr.f32.mxu0 0.0
  %3754 = vmatmul.mubr.f32.gmra.mxu0 %v3670
  %v3755 = vpop.f32.mrf.mxu0
  %v3756 = vadd.f32 0.0, %v3755
  %v3757 = vpop.f32.mrf.mxu0
  %3758 = vmatprep.mubr.f32.mxu0 0.0
  %3759 = vmatmul.mubr.f32.gmra.mxu0 %v3673
  %v3760 = vpop.f32.mrf.mxu0
  %v3761 = vadd.f32 0.0, %v3760
  %v3762 = vpop.f32.mrf.mxu0
  %3763 = vmatprep.mubr.f32.mxu0 0.0
  %3764 = vmatmul.mubr.f32.gmra.mxu0 %v3676
  %v3765 = vpop.f32.mrf.mxu0
  %v3766 = vadd.f32 0.0, %v3765
  %v3767 = vpop.f32.mrf.mxu0
  %3768 = vmatprep.mubr.f32.mxu0 0.0
  %3769 = vmatmul.mubr.f32.gmra.mxu0 %v3679
  %v3770 = vpop.f32.mrf.mxu0
  %v3771 = vadd.f32 0.0, %v3770
  %v3772 = vpop.f32.mrf.mxu0
  %3773 = vmatprep.mubr.f32.mxu0 0.0
  %3774 = vmatmul.mubr.f32.gmra.mxu0 %v3682
  %v3775 = vpop.f32.mrf.mxu0
  %v3776 = vadd.f32 0.0, %v3775
  %v3777 = vpop.f32.mrf.mxu0
  %3778 = vdwg.mxu0
  %vm3779 = vcmask 261120
  %3780 = vst.msk [vmem:[%s20] sm:$0xff] %vm3779, %v3751
  %3781 = vst.msk [vmem:[%s20 + $0x8] sm:$0xff] %vm3779, %v3756
  %3782 = vst.msk [vmem:[%s20 + $0x10] sm:$0xff] %vm3779, %v3761
  %3783 = vst.msk [vmem:[%s20 + $0x18] sm:$0xff] %vm3779, %v3766
  %3784 = vst.msk [vmem:[%s20 + $0x20] sm:$0xff] %vm3779, %v3771
  %3785 = vst.msk [vmem:[%s20 + $0x28] sm:$0xff] %vm3779, %v3776
  // Predicated region
  $region82: #{encoder_forward.1} parent=0 // pred_check
    _
  $region83: #{encoder_forward.1} parent=0 // pred_check_branch
    %3787 = sbr.rel (0) target = $region85
  $region84: #{encoder_forward.1} parent=0 // pred_region
    _
  $region85: #{encoder_forward.1} parent=0 // pred_fallthru
    _
  // Predicated region
  $region86: #{encoder_forward.1} parent=0 // pred_check
    _
  $region87: #{encoder_forward.1} parent=0 // pred_check_branch
    %3789 = sbr.rel (0) target = $region89
  $region88: #{encoder_forward.1} parent=0 // pred_region
    _
  $region89: #{encoder_forward.1} parent=0 // pred_fallthru
    _

</llo_original>
